<compile_context>
chip_gen: v7x
topology: tpu7x:2x2x1
jax: 0.10.0
libtpu: 0.0.40
codegen_flags: <defaults>
</compile_context>

<pallas_src>
import jax
import jax.numpy as jnp
import numpy as np
from jax import lax
from jax.experimental import pallas as pl
from jax.experimental.pallas import tpu as pltpu

GROUPS = 32
EPS = 1e-5


def _round_up(x, m):
    return (x + m - 1) // m * m


def _padded_rows(H, W):
    # flat padded buffer: (H+2)*(W+2) real rows + 2 overreach rows for the
    # bottom-right tap window, rounded up for tidy tiling.
    return _round_up((H + 2) * (W + 2) + 2, 8)


def _group_agg_matrix(c, groups=GROUPS):
    cpg = c // groups
    g = np.arange(c) // cpg
    return jnp.asarray((g[:, None] == g[None, :]).astype(np.float32))


def _make_resblock_kernel(H, W, Cin, Cout, identity_residual):
    WP = W + 2                      # padded row pitch
    HP = H * WP                     # rows of the "extended" conv output
    TOP = W + 3                     # rows [0, TOP): top border + first left border
    BODY_END = TOP + HP             # == (H+1)*WP + 1 ; big store covers [TOP, BODY_END)
    PADF = _padded_rows(H, W)

    def group_norm_silu(v2d, a_ref, gamma_ref, beta_ref, c):
        # GroupNorm (biased variance, matches PyTorch) + SiLU, stats in f32.
        cpg = c // GROUPS
        inv_n = 1.0 / float(H * W * cpg)
        ones_row = jnp.ones((1, H * W), jnp.float32)
        # column sums on the MXU (keeps XLU/VALU free), then per-group sums
        # broadcast back to channels via the same-group indicator matmul.
        s1 = jnp.dot(ones_row, v2d, preferred_element_type=jnp.float32)          # (1, c)
        s2 = jnp.dot(ones_row, v2d * v2d, preferred_element_type=jnp.float32)    # (1, c)
        gsum = jnp.dot(s1, a_ref[...], preferred_element_type=jnp.float32)
        gsq = jnp.dot(s2, a_ref[...], preferred_element_type=jnp.float32)
        mean = gsum * inv_n
        var = gsq * inv_n - mean * mean
        inv = lax.rsqrt(var + EPS)
        y = (v2d - mean) * (inv * gamma_ref[...]) + beta_ref[...]
        return y * jax.nn.sigmoid(y)                                             # SiLU

    def conv3x3(h2d, pad_ref, w_ref, b_ref, cin, cout):
        # h2d: (H*W, cin) f32. Append 2 zero columns so that ONE contiguous
        # store writes the interior plus the interleaved left/right border
        # zeros of the flat padded buffer; only the small top/bottom chunks
        # need explicit zeroing (done every step -> no cross-step state).
        hp = jnp.concatenate(
            [h2d.reshape(H, W, cin), jnp.zeros((H, 2, cin), jnp.float32)], axis=1)
        pad_ref[0:TOP, :] = jnp.zeros((TOP, cin), jnp.float32)
        pad_ref[BODY_END:PADF, :] = jnp.zeros((PADF - BODY_END, cin), jnp.float32)
        pad_ref[TOP:BODY_END, :] = hp.reshape(HP, cin)

        # im2col: 9 contiguous row-windows of the flat padded buffer,
        # concatenated on the lane axis -> one K = 9*cin bf16 MXU matmul.
        taps = []
        for dy in range(3):
            for dx in range(3):
                off = dy * WP + dx
                taps.append(pad_ref[off:off + HP, :])
        patch = jnp.concatenate(taps, axis=1).astype(jnp.bfloat16)   # (HP, 9*cin)
        acc = jnp.dot(patch, w_ref[...],
                      preferred_element_type=jnp.float32)            # (HP, cout) f32
        acc = acc + b_ref[...]
        # keep only the W valid columns of each image row (single extraction)
        return acc.reshape(H, WP, cout)[:, :W, :].reshape(H * W, cout)

    def kernel(x_ref, g1_ref, bt1_ref, a_in_ref, w1_ref, b1_ref,
               g2_ref, bt2_ref, a_out_ref, w2_ref, b2_ref, *rest):
        if identity_residual:
            o_ref, pad_in_ref, pad_out_ref = rest
        else:
            wr_ref, br_ref, o_ref, pad_in_ref, pad_out_ref = rest

        x2d = x_ref[0].astype(jnp.float32).reshape(H * W, Cin)        # (HW, Cin)

        h = group_norm_silu(x2d, a_in_ref, g1_ref, bt1_ref, Cin)
        h = conv3x3(h, pad_in_ref, w1_ref, b1_ref, Cin, Cout)
        h = group_norm_silu(h, a_out_ref, g2_ref, bt2_ref, Cout)
        h = conv3x3(h, pad_out_ref, w2_ref, b2_ref, Cout, Cout)

        if identity_residual:
            res = x2d                                                  # exact skip-connection
        else:
            res = jnp.dot(x2d.astype(jnp.bfloat16), wr_ref[...],
                          preferred_element_type=jnp.float32) + br_ref[...]

        o_ref[0] = (h + res).reshape(H, W, Cout).astype(o_ref.dtype)

    return kernel


def residual_block_pallas_nhwc(x_nhwc, p):
    N, H, W, Cin = x_nhwc.shape
    Cout = p["b1_2d"].shape[-1]
    assert Cin % GROUPS == 0 and Cout % GROUPS == 0
    identity = p["wr_bf16"] is None
    PADF = _padded_rows(H, W)

    kernel = _make_resblock_kernel(H, W, Cin, Cout, identity)

    def const_spec(shape):
        nd = len(shape)
        return pl.BlockSpec(shape, lambda n, _nd=nd: (0,) * _nd)

    in_specs = [
        pl.BlockSpec((1, H, W, Cin), lambda n: (n, 0, 0, 0)),   # x
        const_spec((1, Cin)),            # gn1 gamma
        const_spec((1, Cin)),            # gn1 beta
        const_spec((Cin, Cin)),          # group-agg matrix (in)
        const_spec((9 * Cin, Cout)),     # w1 im2col-flattened, bf16
        const_spec((1, Cout)),           # b1
        const_spec((1, Cout)),           # gn2 gamma
        const_spec((1, Cout)),           # gn2 beta
        const_spec((Cout, Cout)),        # group-agg matrix (out)
        const_spec((9 * Cout, Cout)),    # w2 im2col-flattened, bf16
        const_spec((1, Cout)),           # b2
    ]
    args = [x_nhwc.astype(jnp.float32),
            p["gn1_gamma_2d"], p["gn1_beta_2d"], p["a_in"],
            p["w1_flat_bf16"], p["b1_2d"],
            p["gn2_gamma_2d"], p["gn2_beta_2d"], p["a_out"],
            p["w2_flat_bf16"], p["b2_2d"]]
    if not identity:
        in_specs += [const_spec((Cin, Cout)), const_spec((1, Cout))]   # wr, br
        args += [p["wr_bf16"], p["br_2d"]]

    grid_spec = pltpu.PrefetchScalarGridSpec(
        num_scalar_prefetch=0,
        grid=(N,),
        in_specs=in_specs,
        out_specs=pl.BlockSpec((1, H, W, Cout), lambda n: (n, 0, 0, 0)),
        scratch_shapes=[
            pltpu.VMEM((PADF, Cin), jnp.float32),    # flat zero-padded image, conv1
            pltpu.VMEM((PADF, Cout), jnp.float32),   # flat zero-padded image, conv2
        ],
    )

    out = pl.pallas_call(
        kernel,
        out_shape=jax.ShapeDtypeStruct((N, H, W, Cout), jnp.float32),
        grid_spec=grid_spec,
        compiler_params=pltpu.CompilerParams(
            dimension_semantics=("parallel",)),      # batch items independent -> v7x dual-TC
    )(*args)
    return out


def residual_block_pallas(x_nchw, p):
    # NCHW adapter for the PyTorch-style interface; for a full network keep
    # activations NHWC end-to-end and call residual_block_pallas_nhwc directly
    # (avoids two HBM round-trips per block).
    x = jnp.transpose(x_nchw, (0, 2, 3, 1))
    out = residual_block_pallas_nhwc(x, p)
    return jnp.transpose(out, (0, 3, 1, 2))


def init_params(key, in_channels, out_channels):
    ks = jax.random.split(key, 7)

    def conv_init(k, cout, cin, kh, kw):
        fan_in = cin * kh * kw
        bound = 1.0 / np.sqrt(fan_in)
        kw_, kb_ = jax.random.split(k)
        w = jax.random.uniform(kw_, (cout, cin, kh, kw), jnp.float32, -bound, bound)
        b = jax.random.uniform(kb_, (cout,), jnp.float32, -bound, bound)
        return w, b

    w1, b1 = conv_init(ks[0], out_channels, in_channels, 3, 3)
    w2, b2 = conv_init(ks[1], out_channels, out_channels, 3, 3)
    gn1_gamma = jax.random.uniform(ks[2], (in_channels,), jnp.float32, 0.5, 1.5)
    gn1_beta = jax.random.uniform(ks[3], (in_channels,), jnp.float32, -0.5, 0.5)
    gn2_gamma = jax.random.uniform(ks[4], (out_channels,), jnp.float32, 0.5, 1.5)
    gn2_beta = jax.random.uniform(ks[5], (out_channels,), jnp.float32, -0.5, 0.5)

    if in_channels == out_channels:
        wr_oihw = None
        br = jnp.zeros((out_channels,), jnp.float32)
        wr_bf16 = None                                   # nn.Identity -> no matmul at all
    else:
        wr_oihw, br = conv_init(ks[6], out_channels, in_channels, 1, 1)
        wr_bf16 = jnp.transpose(wr_oihw[:, :, 0, 0], (1, 0)).astype(jnp.bfloat16)

    w1_hwio = jnp.transpose(w1, (2, 3, 1, 0))            # (3,3,Cin,Cout)
    w2_hwio = jnp.transpose(w2, (2, 3, 1, 0))            # (3,3,Cout,Cout)

    return {
        # PyTorch-layout tensors for the pure-JAX reference
        "w1_oihw": w1, "b1_v": b1, "w2_oihw": w2, "b2_v": b2,
        "gn1_gamma_v": gn1_gamma, "gn1_beta_v": gn1_beta,
        "gn2_gamma_v": gn2_gamma, "gn2_beta_v": gn2_beta,
        "wr_oihw": wr_oihw, "br_v": br,
        # kernel layouts: im2col-flattened bf16 conv weights, f32 GN params/biases
        "w1_flat_bf16": w1_hwio.reshape(9 * in_channels, out_channels).astype(jnp.bfloat16),
        "w2_flat_bf16": w2_hwio.reshape(9 * out_channels, out_channels).astype(jnp.bfloat16),
        "b1_2d": b1.reshape(1, -1), "b2_2d": b2.reshape(1, -1),
        "gn1_gamma_2d": gn1_gamma.reshape(1, -1), "gn1_beta_2d": gn1_beta.reshape(1, -1),
        "gn2_gamma_2d": gn2_gamma.reshape(1, -1), "gn2_beta_2d": gn2_beta.reshape(1, -1),
        "wr_bf16": wr_bf16, "br_2d": br.reshape(1, -1),
        "a_in": _group_agg_matrix(in_channels),
        "a_out": _group_agg_matrix(out_channels),
    }


def residual_block_ref(x, p, in_channels, out_channels):
    """Pure-JAX f32 reference matching the PyTorch module (NCHW)."""
    def gn(v, gamma, beta):
        N, C, H, W = v.shape
        vr = v.reshape(N, GROUPS, (C // GROUPS) * H * W)
        mean = vr.mean(axis=-1, keepdims=True)
        var = vr.var(axis=-1, keepdims=True)
        vn = ((vr - mean) / jnp.sqrt(var + EPS)).reshape(N, C, H, W)
        return vn * gamma[None, :, None, None] + beta[None, :, None, None]

    def silu(v):
        return v * jax.nn.sigmoid(v)

    def conv(v, w, b, pad):
        y = lax.conv_general_dilated(
            v, w, (1, 1), ((pad, pad), (pad, pad)),
            dimension_numbers=("NCHW", "OIHW", "NCHW"))
        return y + b[None, :, None, None]

    h = conv(silu(gn(x, p["gn1_gamma_v"], p["gn1_beta_v"])), p["w1_oihw"], p["b1_v"], 1)
    h = conv(silu(gn(h, p["gn2_gamma_v"], p["gn2_beta_v"])), p["w2_oihw"], p["b2_v"], 1)
    if in_channels == out_channels:
        res = x
    else:
        res = conv(x, p["wr_oihw"], p["br_v"], 0)
    return h + res


if __name__ == "__main__":
    # GroupNorm(32, C) requires C % 32 == 0, so the smallest meaningful channel
    # counts are 32/64. Test both residual variants (1x1 projection & identity).
    N, H, W = 2, 8, 8
    key = jax.random.PRNGKey(0)
    for (cin, cout) in [(32, 64), (32, 32)]:
        key, kx, kp = jax.random.split(key, 3)
        x = jax.random.normal(kx, (N, cin, H, W), jnp.float32)   # PyTorch-style NCHW
        params = init_params(kp, cin, cout)

        out = jax.block_until_ready(residual_block_pallas(x, params))
        ref = jax.block_until_ready(residual_block_ref(x, params, cin, cout))

        assert out.shape == (N, cout, H, W)
        # bf16 MXU operands (f32 accumulate / f32 GroupNorm stats) -> relaxed tolerance.
        np.testing.assert_allclose(np.asarray(out), np.asarray(ref), rtol=3e-2, atol=3e-2)

    print("KERNEL_OK")
</pallas_src>

<mosaic_0001>
module attributes {stable_mosaic.version = 11 : i64} {
  func.func @kernel(%arg0: i32, %arg1: memref<1x8x8x32xf32, #tpu.memory_space<vmem>>, %arg2: memref<1x32xf32, #tpu.memory_space<vmem>>, %arg3: memref<1x32xf32, #tpu.memory_space<vmem>>, %arg4: memref<32x32xf32, #tpu.memory_space<vmem>>, %arg5: memref<288x64xbf16, #tpu.memory_space<vmem>>, %arg6: memref<1x64xf32, #tpu.memory_space<vmem>>, %arg7: memref<1x64xf32, #tpu.memory_space<vmem>>, %arg8: memref<1x64xf32, #tpu.memory_space<vmem>>, %arg9: memref<64x64xf32, #tpu.memory_space<vmem>>, %arg10: memref<576x64xbf16, #tpu.memory_space<vmem>>, %arg11: memref<1x64xf32, #tpu.memory_space<vmem>>, %arg12: memref<32x64xbf16, #tpu.memory_space<vmem>>, %arg13: memref<1x64xf32, #tpu.memory_space<vmem>>, %arg14: memref<1x8x8x64xf32, #tpu.memory_space<vmem>>, %arg15: memref<104x32xf32, #tpu.memory_space<vmem>>, %arg16: memref<104x64xf32, #tpu.memory_space<vmem>>) attributes {dimension_semantics = [#tpu.dimension_semantics<parallel>], iteration_bounds = array<i64: 2>, scalar_prefetch = 0 : i64, scratch_operands = 2 : i64, tpu.core_type = #tpu.core_type<tc>, window_params = [{transform_indices = @transform_0, window_bounds = array<i64: 1, 8, 8, 32>}, {pipeline_mode = #tpu.pipeline_mode<synchronous>, transform_indices = @transform_1, window_bounds = array<i64: 1, 32>}, {pipeline_mode = #tpu.pipeline_mode<synchronous>, transform_indices = @transform_2, window_bounds = array<i64: 1, 32>}, {pipeline_mode = #tpu.pipeline_mode<synchronous>, transform_indices = @transform_3, window_bounds = array<i64: 32, 32>}, {pipeline_mode = #tpu.pipeline_mode<synchronous>, transform_indices = @transform_4, window_bounds = array<i64: 288, 64>}, {pipeline_mode = #tpu.pipeline_mode<synchronous>, transform_indices = @transform_5, window_bounds = array<i64: 1, 64>}, {pipeline_mode = #tpu.pipeline_mode<synchronous>, transform_indices = @transform_6, window_bounds = array<i64: 1, 64>}, {pipeline_mode = #tpu.pipeline_mode<synchronous>, transform_indices = @transform_7, window_bounds = array<i64: 1, 64>}, {pipeline_mode = #tpu.pipeline_mode<synchronous>, transform_indices = @transform_8, window_bounds = array<i64: 64, 64>}, {pipeline_mode = #tpu.pipeline_mode<synchronous>, transform_indices = @transform_9, window_bounds = array<i64: 576, 64>}, {pipeline_mode = #tpu.pipeline_mode<synchronous>, transform_indices = @transform_10, window_bounds = array<i64: 1, 64>}, {pipeline_mode = #tpu.pipeline_mode<synchronous>, transform_indices = @transform_11, window_bounds = array<i64: 32, 64>}, {pipeline_mode = #tpu.pipeline_mode<synchronous>, transform_indices = @transform_12, window_bounds = array<i64: 1, 64>}, {transform_indices = @transform_13, window_bounds = array<i64: 1, 8, 8, 64>}]} {
    %c0 = arith.constant 0 : index
    %c0_0 = arith.constant 0 : index
    %c0_1 = arith.constant 0 : index
    %c0_2 = arith.constant 0 : index
    %0 = vector.load %arg1[%c0, %c0_0, %c0_1, %c0_2] : memref<1x8x8x32xf32, #tpu.memory_space<vmem>>, vector<1x8x8x32xf32>
    %1 = vector.shape_cast %0 : vector<1x8x8x32xf32> to vector<8x8x32xf32>
    %2 = vector.shape_cast %1 : vector<8x8x32xf32> to vector<64x32xf32>
    %cst = arith.constant 1.000000e+00 : f32
    %3 = vector.broadcast %cst : f32 to vector<1x64xf32>
    %cst_3 = arith.constant dense<0.000000e+00> : vector<1x32xf32>
    %4 = tpu.matmul %3, %2, %cst_3 {dimension_numbers = #tpu.dot_dimension_numbers<[1], [0], [0], [1], [0, 0, 1, 1], [], []>} : vector<1x64xf32>, vector<64x32xf32>, vector<1x32xf32> -> vector<1x32xf32>
    %5 = arith.mulf %2, %2 : vector<64x32xf32>
    %cst_4 = arith.constant dense<0.000000e+00> : vector<1x32xf32>
    %6 = tpu.matmul %3, %5, %cst_4 {dimension_numbers = #tpu.dot_dimension_numbers<[1], [0], [0], [1], [0, 0, 1, 1], [], []>} : vector<1x64xf32>, vector<64x32xf32>, vector<1x32xf32> -> vector<1x32xf32>
    %c0_5 = arith.constant 0 : index
    %c0_6 = arith.constant 0 : index
    %7 = vector.load %arg4[%c0_5, %c0_6] : memref<32x32xf32, #tpu.memory_space<vmem>>, vector<32x32xf32>
    %cst_7 = arith.constant dense<0.000000e+00> : vector<1x32xf32>
    %8 = tpu.matmul %4, %7, %cst_7 {dimension_numbers = #tpu.dot_dimension_numbers<[1], [0], [0], [1], [0, 0, 1, 1], [], []>} : vector<1x32xf32>, vector<32x32xf32>, vector<1x32xf32> -> vector<1x32xf32>
    %c0_8 = arith.constant 0 : index
    %c0_9 = arith.constant 0 : index
    %9 = vector.load %arg4[%c0_8, %c0_9] : memref<32x32xf32, #tpu.memory_space<vmem>>, vector<32x32xf32>
    %cst_10 = arith.constant dense<0.000000e+00> : vector<1x32xf32>
    %10 = tpu.matmul %6, %9, %cst_10 {dimension_numbers = #tpu.dot_dimension_numbers<[1], [0], [0], [1], [0, 0, 1, 1], [], []>} : vector<1x32xf32>, vector<32x32xf32>, vector<1x32xf32> -> vector<1x32xf32>
    %cst_11 = arith.constant 1.562500e-02 : f32
    %11 = vector.broadcast %cst_11 : f32 to vector<1x32xf32>
    %12 = arith.mulf %8, %11 : vector<1x32xf32>
    %cst_12 = arith.constant 1.562500e-02 : f32
    %13 = vector.broadcast %cst_12 : f32 to vector<1x32xf32>
    %14 = arith.mulf %10, %13 : vector<1x32xf32>
    %15 = arith.mulf %12, %12 : vector<1x32xf32>
    %16 = arith.subf %14, %15 : vector<1x32xf32>
    %cst_13 = arith.constant 9.99999974E-6 : f32
    %17 = vector.broadcast %cst_13 : f32 to vector<1x32xf32>
    %18 = arith.addf %16, %17 : vector<1x32xf32>
    %19 = math.rsqrt %18 : vector<1x32xf32>
    %20 = vector.broadcast %12 : vector<1x32xf32> to vector<64x32xf32>
    %21 = arith.subf %2, %20 : vector<64x32xf32>
    %c0_14 = arith.constant 0 : index
    %c0_15 = arith.constant 0 : index
    %22 = vector.load %arg2[%c0_14, %c0_15] : memref<1x32xf32, #tpu.memory_space<vmem>>, vector<1x32xf32>
    %23 = arith.mulf %19, %22 : vector<1x32xf32>
    %24 = vector.broadcast %23 : vector<1x32xf32> to vector<64x32xf32>
    %25 = arith.mulf %21, %24 : vector<64x32xf32>
    %c0_16 = arith.constant 0 : index
    %c0_17 = arith.constant 0 : index
    %26 = vector.load %arg3[%c0_16, %c0_17] : memref<1x32xf32, #tpu.memory_space<vmem>>, vector<1x32xf32>
    %27 = vector.broadcast %26 : vector<1x32xf32> to vector<64x32xf32>
    %28 = arith.addf %25, %27 : vector<64x32xf32>
    %29 = arith.negf %28 : vector<64x32xf32>
    %30 = math.exp %29 : vector<64x32xf32>
    %cst_18 = arith.constant 1.000000e+00 : f32
    %31 = vector.broadcast %cst_18 : f32 to vector<64x32xf32>
    %32 = arith.addf %31, %30 : vector<64x32xf32>
    %33 = arith.divf %31, %32 : vector<64x32xf32>
    %34 = arith.mulf %28, %33 : vector<64x32xf32>
    %35 = vector.shape_cast %34 : vector<64x32xf32> to vector<8x8x32xf32>
    %cst_19 = arith.constant 0.000000e+00 : f32
    %36 = vector.broadcast %cst_19 : f32 to vector<8x2x32xf32>
    %37 = tpu.concatenate %35, %36 in 1 : vector<8x8x32xf32>, vector<8x2x32xf32> -> vector<8x10x32xf32>
    %cst_20 = arith.constant 0.000000e+00 : f32
    %38 = vector.broadcast %cst_20 : f32 to vector<11x32xf32>
    %c0_21 = arith.constant 0 : index
    %c0_22 = arith.constant 0 : index
    %39 = vector.load %arg15[%c0_21, %c0_22] : memref<104x32xf32, #tpu.memory_space<vmem>>, vector<11x32xf32>
    tpu.vector_store %arg15[%c0_21, %c0_22], %38 {strides = array<i32>} : memref<104x32xf32, #tpu.memory_space<vmem>>, vector<11x32xf32>,
    %cst_23 = arith.constant 0.000000e+00 : f32
    %40 = vector.broadcast %cst_23 : f32 to vector<13x32xf32>
    %c91 = arith.constant 91 : index
    %c0_24 = arith.constant 0 : index
    %41 = vector.load %arg15[%c91, %c0_24] : memref<104x32xf32, #tpu.memory_space<vmem>>, vector<13x32xf32>
    tpu.vector_store %arg15[%c91, %c0_24], %40 {strides = array<i32>} : memref<104x32xf32, #tpu.memory_space<vmem>>, vector<13x32xf32>,
    %42 = vector.shape_cast %37 : vector<8x10x32xf32> to vector<80x32xf32>
    %c11 = arith.constant 11 : index
    %c0_25 = arith.constant 0 : index
    %43 = vector.load %arg15[%c11, %c0_25] : memref<104x32xf32, #tpu.memory_space<vmem>>, vector<80x32xf32>
    tpu.vector_store %arg15[%c11, %c0_25], %42 {strides = array<i32>} : memref<104x32xf32, #tpu.memory_space<vmem>>, vector<80x32xf32>,
    %c0_26 = arith.constant 0 : index
    %c0_27 = arith.constant 0 : index
    %44 = vector.load %arg15[%c0_26, %c0_27] : memref<104x32xf32, #tpu.memory_space<vmem>>, vector<80x32xf32>
    %c1 = arith.constant 1 : index
    %c0_28 = arith.constant 0 : index
    %45 = vector.load %arg15[%c1, %c0_28] : memref<104x32xf32, #tpu.memory_space<vmem>>, vector<80x32xf32>
    %c2 = arith.constant 2 : index
    %c0_29 = arith.constant 0 : index
    %46 = vector.load %arg15[%c2, %c0_29] : memref<104x32xf32, #tpu.memory_space<vmem>>, vector<80x32xf32>
    %c10 = arith.constant 10 : index
    %c0_30 = arith.constant 0 : index
    %47 = vector.load %arg15[%c10, %c0_30] : memref<104x32xf32, #tpu.memory_space<vmem>>, vector<80x32xf32>
    %c11_31 = arith.constant 11 : index
    %c0_32 = arith.constant 0 : index
    %48 = vector.load %arg15[%c11_31, %c0_32] : memref<104x32xf32, #tpu.memory_space<vmem>>, vector<80x32xf32>
    %c12 = arith.constant 12 : index
    %c0_33 = arith.constant 0 : index
    %49 = vector.load %arg15[%c12, %c0_33] : memref<104x32xf32, #tpu.memory_space<vmem>>, vector<80x32xf32>
    %c20 = arith.constant 20 : index
    %c0_34 = arith.constant 0 : index
    %50 = vector.load %arg15[%c20, %c0_34] : memref<104x32xf32, #tpu.memory_space<vmem>>, vector<80x32xf32>
    %c21 = arith.constant 21 : index
    %c0_35 = arith.constant 0 : index
    %51 = vector.load %arg15[%c21, %c0_35] : memref<104x32xf32, #tpu.memory_space<vmem>>, vector<80x32xf32>
    %c22 = arith.constant 22 : index
    %c0_36 = arith.constant 0 : index
    %52 = vector.load %arg15[%c22, %c0_36] : memref<104x32xf32, #tpu.memory_space<vmem>>, vector<80x32xf32>
    %53 = tpu.concatenate %44, %45, %46, %47, %48, %49, %50, %51, %52 in 1 : vector<80x32xf32>, vector<80x32xf32>, vector<80x32xf32>, vector<80x32xf32>, vector<80x32xf32>, vector<80x32xf32>, vector<80x32xf32>, vector<80x32xf32>, vector<80x32xf32> -> vector<80x288xf32>
    %54 = arith.truncf %53 : vector<80x288xf32> to vector<80x288xbf16>
    %c0_37 = arith.constant 0 : index
    %c0_38 = arith.constant 0 : index
    %55 = vector.load %arg5[%c0_37, %c0_38] : memref<288x64xbf16, #tpu.memory_space<vmem>>, vector<288x64xbf16>
    %cst_39 = arith.constant dense<0.000000e+00> : vector<80x64xf32>
    %56 = tpu.matmul %54, %55, %cst_39 {dimension_numbers = #tpu.dot_dimension_numbers<[1], [0], [0], [1], [0, 0, 1, 1], [], []>} : vector<80x288xbf16>, vector<288x64xbf16>, vector<80x64xf32> -> vector<80x64xf32>
    %c0_40 = arith.constant 0 : index
    %c0_41 = arith.constant 0 : index
    %57 = vector.load %arg6[%c0_40, %c0_41] : memref<1x64xf32, #tpu.memory_space<vmem>>, vector<1x64xf32>
    %58 = vector.broadcast %57 : vector<1x64xf32> to vector<80x64xf32>
    %59 = arith.addf %56, %58 : vector<80x64xf32>
    %60 = vector.shape_cast %59 : vector<80x64xf32> to vector<8x10x64xf32>
    %61 = vector.extract_strided_slice %60 {offsets = [0, 0, 0], sizes = [8, 8, 64], strides = [1, 1, 1]} : vector<8x10x64xf32> to vector<8x8x64xf32>
    %62 = vector.shape_cast %61 : vector<8x8x64xf32> to vector<64x64xf32>
    %cst_42 = arith.constant 1.000000e+00 : f32
    %63 = vector.broadcast %cst_42 : f32 to vector<1x64xf32>
    %cst_43 = arith.constant dense<0.000000e+00> : vector<1x64xf32>
    %64 = tpu.matmul %63, %62, %cst_43 {dimension_numbers = #tpu.dot_dimension_numbers<[1], [0], [0], [1], [0, 0, 1, 1], [], []>} : vector<1x64xf32>, vector<64x64xf32>, vector<1x64xf32> -> vector<1x64xf32>
    %65 = arith.mulf %62, %62 : vector<64x64xf32>
    %cst_44 = arith.constant dense<0.000000e+00> : vector<1x64xf32>
    %66 = tpu.matmul %63, %65, %cst_44 {dimension_numbers = #tpu.dot_dimension_numbers<[1], [0], [0], [1], [0, 0, 1, 1], [], []>} : vector<1x64xf32>, vector<64x64xf32>, vector<1x64xf32> -> vector<1x64xf32>
    %c0_45 = arith.constant 0 : index
    %c0_46 = arith.constant 0 : index
    %67 = vector.load %arg9[%c0_45, %c0_46] : memref<64x64xf32, #tpu.memory_space<vmem>>, vector<64x64xf32>
    %cst_47 = arith.constant dense<0.000000e+00> : vector<1x64xf32>
    %68 = tpu.matmul %64, %67, %cst_47 {dimension_numbers = #tpu.dot_dimension_numbers<[1], [0], [0], [1], [0, 0, 1, 1], [], []>} : vector<1x64xf32>, vector<64x64xf32>, vector<1x64xf32> -> vector<1x64xf32>
    %c0_48 = arith.constant 0 : index
    %c0_49 = arith.constant 0 : index
    %69 = vector.load %arg9[%c0_48, %c0_49] : memref<64x64xf32, #tpu.memory_space<vmem>>, vector<64x64xf32>
    %cst_50 = arith.constant dense<0.000000e+00> : vector<1x64xf32>
    %70 = tpu.matmul %66, %69, %cst_50 {dimension_numbers = #tpu.dot_dimension_numbers<[1], [0], [0], [1], [0, 0, 1, 1], [], []>} : vector<1x64xf32>, vector<64x64xf32>, vector<1x64xf32> -> vector<1x64xf32>
    %cst_51 = arith.constant 7.812500e-03 : f32
    %71 = vector.broadcast %cst_51 : f32 to vector<1x64xf32>
    %72 = arith.mulf %68, %71 : vector<1x64xf32>
    %cst_52 = arith.constant 7.812500e-03 : f32
    %73 = vector.broadcast %cst_52 : f32 to vector<1x64xf32>
    %74 = arith.mulf %70, %73 : vector<1x64xf32>
    %75 = arith.mulf %72, %72 : vector<1x64xf32>
    %76 = arith.subf %74, %75 : vector<1x64xf32>
    %cst_53 = arith.constant 9.99999974E-6 : f32
    %77 = vector.broadcast %cst_53 : f32 to vector<1x64xf32>
    %78 = arith.addf %76, %77 : vector<1x64xf32>
    %79 = math.rsqrt %78 : vector<1x64xf32>
    %80 = vector.broadcast %72 : vector<1x64xf32> to vector<64x64xf32>
    %81 = arith.subf %62, %80 : vector<64x64xf32>
    %c0_54 = arith.constant 0 : index
    %c0_55 = arith.constant 0 : index
    %82 = vector.load %arg7[%c0_54, %c0_55] : memref<1x64xf32, #tpu.memory_space<vmem>>, vector<1x64xf32>
    %83 = arith.mulf %79, %82 : vector<1x64xf32>
    %84 = vector.broadcast %83 : vector<1x64xf32> to vector<64x64xf32>
    %85 = arith.mulf %81, %84 : vector<64x64xf32>
    %c0_56 = arith.constant 0 : index
    %c0_57 = arith.constant 0 : index
    %86 = vector.load %arg8[%c0_56, %c0_57] : memref<1x64xf32, #tpu.memory_space<vmem>>, vector<1x64xf32>
    %87 = vector.broadcast %86 : vector<1x64xf32> to vector<64x64xf32>
    %88 = arith.addf %85, %87 : vector<64x64xf32>
    %89 = arith.negf %88 : vector<64x64xf32>
    %90 = math.exp %89 : vector<64x64xf32>
    %cst_58 = arith.constant 1.000000e+00 : f32
    %91 = vector.broadcast %cst_58 : f32 to vector<64x64xf32>
    %92 = arith.addf %91, %90 : vector<64x64xf32>
    %93 = arith.divf %91, %92 : vector<64x64xf32>
    %94 = arith.mulf %88, %93 : vector<64x64xf32>
    %95 = vector.shape_cast %94 : vector<64x64xf32> to vector<8x8x64xf32>
    %cst_59 = arith.constant 0.000000e+00 : f32
    %96 = vector.broadcast %cst_59 : f32 to vector<8x2x64xf32>
    %97 = tpu.concatenate %95, %96 in 1 : vector<8x8x64xf32>, vector<8x2x64xf32> -> vector<8x10x64xf32>
    %cst_60 = arith.constant 0.000000e+00 : f32
    %98 = vector.broadcast %cst_60 : f32 to vector<11x64xf32>
    %c0_61 = arith.constant 0 : index
    %c0_62 = arith.constant 0 : index
    %99 = vector.load %arg16[%c0_61, %c0_62] : memref<104x64xf32, #tpu.memory_space<vmem>>, vector<11x64xf32>
    tpu.vector_store %arg16[%c0_61, %c0_62], %98 {strides = array<i32>} : memref<104x64xf32, #tpu.memory_space<vmem>>, vector<11x64xf32>,
    %cst_63 = arith.constant 0.000000e+00 : f32
    %100 = vector.broadcast %cst_63 : f32 to vector<13x64xf32>
    %c91_64 = arith.constant 91 : index
    %c0_65 = arith.constant 0 : index
    %101 = vector.load %arg16[%c91_64, %c0_65] : memref<104x64xf32, #tpu.memory_space<vmem>>, vector<13x64xf32>
    tpu.vector_store %arg16[%c91_64, %c0_65], %100 {strides = array<i32>} : memref<104x64xf32, #tpu.memory_space<vmem>>, vector<13x64xf32>,
    %102 = vector.shape_cast %97 : vector<8x10x64xf32> to vector<80x64xf32>
    %c11_66 = arith.constant 11 : index
    %c0_67 = arith.constant 0 : index
    %103 = vector.load %arg16[%c11_66, %c0_67] : memref<104x64xf32, #tpu.memory_space<vmem>>, vector<80x64xf32>
    tpu.vector_store %arg16[%c11_66, %c0_67], %102 {strides = array<i32>} : memref<104x64xf32, #tpu.memory_space<vmem>>, vector<80x64xf32>,
    %c0_68 = arith.constant 0 : index
    %c0_69 = arith.constant 0 : index
    %104 = vector.load %arg16[%c0_68, %c0_69] : memref<104x64xf32, #tpu.memory_space<vmem>>, vector<80x64xf32>
    %c1_70 = arith.constant 1 : index
    %c0_71 = arith.constant 0 : index
    %105 = vector.load %arg16[%c1_70, %c0_71] : memref<104x64xf32, #tpu.memory_space<vmem>>, vector<80x64xf32>
    %c2_72 = arith.constant 2 : index
    %c0_73 = arith.constant 0 : index
    %106 = vector.load %arg16[%c2_72, %c0_73] : memref<104x64xf32, #tpu.memory_space<vmem>>, vector<80x64xf32>
    %c10_74 = arith.constant 10 : index
    %c0_75 = arith.constant 0 : index
    %107 = vector.load %arg16[%c10_74, %c0_75] : memref<104x64xf32, #tpu.memory_space<vmem>>, vector<80x64xf32>
    %c11_76 = arith.constant 11 : index
    %c0_77 = arith.constant 0 : index
    %108 = vector.load %arg16[%c11_76, %c0_77] : memref<104x64xf32, #tpu.memory_space<vmem>>, vector<80x64xf32>
    %c12_78 = arith.constant 12 : index
    %c0_79 = arith.constant 0 : index
    %109 = vector.load %arg16[%c12_78, %c0_79] : memref<104x64xf32, #tpu.memory_space<vmem>>, vector<80x64xf32>
    %c20_80 = arith.constant 20 : index
    %c0_81 = arith.constant 0 : index
    %110 = vector.load %arg16[%c20_80, %c0_81] : memref<104x64xf32, #tpu.memory_space<vmem>>, vector<80x64xf32>
    %c21_82 = arith.constant 21 : index
    %c0_83 = arith.constant 0 : index
    %111 = vector.load %arg16[%c21_82, %c0_83] : memref<104x64xf32, #tpu.memory_space<vmem>>, vector<80x64xf32>
    %c22_84 = arith.constant 22 : index
    %c0_85 = arith.constant 0 : index
    %112 = vector.load %arg16[%c22_84, %c0_85] : memref<104x64xf32, #tpu.memory_space<vmem>>, vector<80x64xf32>
    %113 = tpu.concatenate %104, %105, %106, %107, %108, %109, %110, %111, %112 in 1 : vector<80x64xf32>, vector<80x64xf32>, vector<80x64xf32>, vector<80x64xf32>, vector<80x64xf32>, vector<80x64xf32>, vector<80x64xf32>, vector<80x64xf32>, vector<80x64xf32> -> vector<80x576xf32>
    %114 = arith.truncf %113 : vector<80x576xf32> to vector<80x576xbf16>
    %c0_86 = arith.constant 0 : index
    %c0_87 = arith.constant 0 : index
    %115 = vector.load %arg10[%c0_86, %c0_87] : memref<576x64xbf16, #tpu.memory_space<vmem>>, vector<576x64xbf16>
    %cst_88 = arith.constant dense<0.000000e+00> : vector<80x64xf32>
    %116 = tpu.matmul %114, %115, %cst_88 {dimension_numbers = #tpu.dot_dimension_numbers<[1], [0], [0], [1], [0, 0, 1, 1], [], []>} : vector<80x576xbf16>, vector<576x64xbf16>, vector<80x64xf32> -> vector<80x64xf32>
    %c0_89 = arith.constant 0 : index
    %c0_90 = arith.constant 0 : index
    %117 = vector.load %arg11[%c0_89, %c0_90] : memref<1x64xf32, #tpu.memory_space<vmem>>, vector<1x64xf32>
    %118 = vector.broadcast %117 : vector<1x64xf32> to vector<80x64xf32>
    %119 = arith.addf %116, %118 : vector<80x64xf32>
    %120 = vector.shape_cast %119 : vector<80x64xf32> to vector<8x10x64xf32>
    %121 = vector.extract_strided_slice %120 {offsets = [0, 0, 0], sizes = [8, 8, 64], strides = [1, 1, 1]} : vector<8x10x64xf32> to vector<8x8x64xf32>
    %122 = vector.shape_cast %121 : vector<8x8x64xf32> to vector<64x64xf32>
    %123 = arith.truncf %2 : vector<64x32xf32> to vector<64x32xbf16>
    %c0_91 = arith.constant 0 : index
    %c0_92 = arith.constant 0 : index
    %124 = vector.load %arg12[%c0_91, %c0_92] : memref<32x64xbf16, #tpu.memory_space<vmem>>, vector<32x64xbf16>
    %cst_93 = arith.constant dense<0.000000e+00> : vector<64x64xf32>
    %125 = tpu.matmul %123, %124, %cst_93 {dimension_numbers = #tpu.dot_dimension_numbers<[1], [0], [0], [1], [0, 0, 1, 1], [], []>} : vector<64x32xbf16>, vector<32x64xbf16>, vector<64x64xf32> -> vector<64x64xf32>
    %c0_94 = arith.constant 0 : index
    %c0_95 = arith.constant 0 : index
    %126 = vector.load %arg13[%c0_94, %c0_95] : memref<1x64xf32, #tpu.memory_space<vmem>>, vector<1x64xf32>
    %127 = vector.broadcast %126 : vector<1x64xf32> to vector<64x64xf32>
    %128 = arith.addf %125, %127 : vector<64x64xf32>
    %129 = arith.addf %122, %128 : vector<64x64xf32>
    %130 = vector.shape_cast %129 : vector<64x64xf32> to vector<8x8x64xf32>
    %c0_96 = arith.constant 0 : index
    %c0_97 = arith.constant 0 : index
    %c0_98 = arith.constant 0 : index
    %c0_99 = arith.constant 0 : index
    %131 = vector.load %arg14[%c0_96, %c0_97, %c0_98, %c0_99] : memref<1x8x8x64xf32, #tpu.memory_space<vmem>>, vector<1x8x8x64xf32>
    %132 = vector.shape_cast %131 : vector<1x8x8x64xf32> to vector<8x8x64xf32>
    %133 = vector.shape_cast %130 : vector<8x8x64xf32> to vector<1x8x8x64xf32>
    tpu.vector_store %arg14[%c0_96, %c0_97, %c0_98, %c0_99], %133 {strides = array<i32>} : memref<1x8x8x64xf32, #tpu.memory_space<vmem>>, vector<1x8x8x64xf32>,
    return
  }
  func.func @transform_0(%arg0: i32) -> (i32, i32, i32, i32) {
    %c0_i32 = arith.constant 0 : i32
    %c0_i32_0 = arith.constant 0 : i32
    %c0_i32_1 = arith.constant 0 : i32
    %c0_i32_2 = arith.constant 0 : i32
    return %arg0, %c0_i32, %c0_i32_0, %c0_i32_1 : i32, i32, i32, i32
  }
  func.func @transform_1(%arg0: i32) -> (i32, i32) {
    %c0_i32 = arith.constant 0 : i32
    %c0_i32_0 = arith.constant 0 : i32
    %c0_i32_1 = arith.constant 0 : i32
    return %c0_i32, %c0_i32_0 : i32, i32
  }
  func.func @transform_2(%arg0: i32) -> (i32, i32) {
    %c0_i32 = arith.constant 0 : i32
    %c0_i32_0 = arith.constant 0 : i32
    %c0_i32_1 = arith.constant 0 : i32
    return %c0_i32, %c0_i32_0 : i32, i32
  }
  func.func @transform_3(%arg0: i32) -> (i32, i32) {
    %c0_i32 = arith.constant 0 : i32
    %c0_i32_0 = arith.constant 0 : i32
    %c0_i32_1 = arith.constant 0 : i32
    return %c0_i32, %c0_i32_0 : i32, i32
  }
  func.func @transform_4(%arg0: i32) -> (i32, i32) {
    %c0_i32 = arith.constant 0 : i32
    %c0_i32_0 = arith.constant 0 : i32
    %c0_i32_1 = arith.constant 0 : i32
    return %c0_i32, %c0_i32_0 : i32, i32
  }
  func.func @transform_5(%arg0: i32) -> (i32, i32) {
    %c0_i32 = arith.constant 0 : i32
    %c0_i32_0 = arith.constant 0 : i32
    %c0_i32_1 = arith.constant 0 : i32
    return %c0_i32, %c0_i32_0 : i32, i32
  }
  func.func @transform_6(%arg0: i32) -> (i32, i32) {
    %c0_i32 = arith.constant 0 : i32
    %c0_i32_0 = arith.constant 0 : i32
    %c0_i32_1 = arith.constant 0 : i32
    return %c0_i32, %c0_i32_0 : i32, i32
  }
  func.func @transform_7(%arg0: i32) -> (i32, i32) {
    %c0_i32 = arith.constant 0 : i32
    %c0_i32_0 = arith.constant 0 : i32
    %c0_i32_1 = arith.constant 0 : i32
    return %c0_i32, %c0_i32_0 : i32, i32
  }
  func.func @transform_8(%arg0: i32) -> (i32, i32) {
    %c0_i32 = arith.constant 0 : i32
    %c0_i32_0 = arith.constant 0 : i32
    %c0_i32_1 = arith.constant 0 : i32
    return %c0_i32, %c0_i32_0 : i32, i32
  }
  func.func @transform_9(%arg0: i32) -> (i32, i32) {
    %c0_i32 = arith.constant 0 : i32
    %c0_i32_0 = arith.constant 0 : i32
    %c0_i32_1 = arith.constant 0 : i32
    return %c0_i32, %c0_i32_0 : i32, i32
  }
  func.func @transform_10(%arg0: i32) -> (i32, i32) {
    %c0_i32 = arith.constant 0 : i32
    %c0_i32_0 = arith.constant 0 : i32
    %c0_i32_1 = arith.constant 0 : i32
    return %c0_i32, %c0_i32_0 : i32, i32
  }
  func.func @transform_11(%arg0: i32) -> (i32, i32) {
    %c0_i32 = arith.constant 0 : i32
    %c0_i32_0 = arith.constant 0 : i32
    %c0_i32_1 = arith.constant 0 : i32
    return %c0_i32, %c0_i32_0 : i32, i32
  }
  func.func @transform_12(%arg0: i32) -> (i32, i32) {
    %c0_i32 = arith.constant 0 : i32
    %c0_i32_0 = arith.constant 0 : i32
    %c0_i32_1 = arith.constant 0 : i32
    return %c0_i32, %c0_i32_0 : i32, i32
  }
  func.func @transform_13(%arg0: i32) -> (i32, i32, i32, i32) {
    %c0_i32 = arith.constant 0 : i32
    %c0_i32_0 = arith.constant 0 : i32
    %c0_i32_1 = arith.constant 0 : i32
    %c0_i32_2 = arith.constant 0 : i32
    return %arg0, %c0_i32, %c0_i32_0, %c0_i32_1 : i32, i32, i32, i32
  }
}

</mosaic_0001>

<llo_original>
// kernel: tpu_custom_call.1
$region0: #{tpu_custom_call.1}
  #allocation0 [shape = 'u32[]', space=smem, size = 0x4, offset = 0x4, fixed_abs, tag = 'smem constant byte address 0x4 - core index']
  #allocation1 [shape = 'u32[144,128]{1,0:T(1,128)}', space=vmem, size = 0x12000, scoped, tag = 'internal scratch']
  #allocation2 [shape = 'f32[104,32]{1,0:T(8,128)}', space=vmem, size = 0xd000, scoped, tag = 'scratch operand']
  #allocation3 [shape = 'f32[104,64]{1,0:T(8,128)}', space=vmem, size = 0xd000, scoped, tag = 'scratch operand']
  %s0 = inlined_call_operand.vmem [shape: f32[2,8,8,32], index: 0, kind: input, shape index: {}]
  %s1 = inlined_call_operand.vmem [shape: f32[1,32], index: 1, kind: input, shape index: {}]
  %s2 = inlined_call_operand.vmem [shape: f32[1,32], index: 2, kind: input, shape index: {}]
  %s3 = inlined_call_operand.vmem [shape: f32[32,32], index: 3, kind: input, shape index: {}]
  %s4 = inlined_call_operand.vmem [shape: bf16[288,64], index: 4, kind: input, shape index: {}]
  %s5 = inlined_call_operand.vmem [shape: f32[1,64], index: 5, kind: input, shape index: {}]
  %s6 = inlined_call_operand.vmem [shape: f32[1,64], index: 6, kind: input, shape index: {}]
  %s7 = inlined_call_operand.vmem [shape: f32[1,64], index: 7, kind: input, shape index: {}]
  %s8 = inlined_call_operand.vmem [shape: f32[64,64], index: 8, kind: input, shape index: {}]
  %s9 = inlined_call_operand.vmem [shape: bf16[576,64], index: 9, kind: input, shape index: {}]
  %s10 = inlined_call_operand.vmem [shape: f32[1,64], index: 10, kind: input, shape index: {}]
  %s11 = inlined_call_operand.vmem [shape: bf16[32,64], index: 11, kind: input, shape index: {}]
  %s12 = inlined_call_operand.vmem [shape: f32[1,64], index: 12, kind: input, shape index: {}]
  %s13 = inlined_call_operand.hbm [shape: f32[2,8,8,64], index: 13, kind: output, shape index: {}]
  %s14 = sld [smem:[#allocation0]]
  $region85: #{tpu_custom_call.1} parent=0
    _
  %s16 = ssub.s32 1, %s14
  %s17 = scalar_select 0, %s16, %s14
  $region1: #{tpu_custom_call.1} parent=0
    #allocation4 [shape = 'u8[65536]{0}', space=vmem, size = 0x10000, scoped, tag = 'output window, operand 0']
    #allocation5 [shape = 's32[2]{0}', space=sflag, size = 0x8, scoped, tag = 'scoped memory for tpu_custom_call.1']
    %18 = vsyncpa [#allocation5], 0
    %s19 = scalar_lea.sflag [#allocation5], 1
    %20 = vsyncpa %s19, 0
    loop: start=0, step=1, limit=4
    $region2: #{tpu_custom_call.1} parent=1 // loop_pre_header
      _
    $region3: #{tpu_custom_call.1} parent=1 // loop_header
      %s22 = sphi 0, %s26
      %p23 = scmp.ge.s32.totalorder %s22, 4
      %s32 = sphi 0, %s34
      %s35 = sphi 0, %s32
      %s36 = sphi 0, %s35
      %s52 = sphi 0, %s36
      %s56 = sphi 0, %s56
      %s58 = sphi 0, %s56
      %s59 = sphi 0, %s58
      %s73 = sphi 0, %s59
      %s77 = sphi 0, %s77
      %s79 = sphi 0, %s77
      %s80 = sphi 0, %s79
      %s94 = sphi 0, %s80
      %s98 = sphi 0, %s98
      %s100 = sphi 0, %s98
      %s101 = sphi 0, %s100
      %s115 = sphi 0, %s101
      %s119 = sphi 0, %s119
      %s121 = sphi 0, %s119
      %s122 = sphi 0, %s121
      %s136 = sphi 0, %s122
      %s140 = sphi 0, %s140
      %s142 = sphi 0, %s140
      %s143 = sphi 0, %s142
      %s157 = sphi 0, %s143
      %s161 = sphi 0, %s161
      %s163 = sphi 0, %s161
      %s164 = sphi 0, %s163
      %s178 = sphi 0, %s164
      %s182 = sphi 0, %s182
      %s184 = sphi 0, %s182
      %s185 = sphi 0, %s184
      %s199 = sphi 0, %s185
      %s203 = sphi 0, %s203
      %s205 = sphi 0, %s203
      %s206 = sphi 0, %s205
      %s220 = sphi 0, %s206
      %s224 = sphi 0, %s224
      %s226 = sphi 0, %s224
      %s227 = sphi 0, %s226
      %s241 = sphi 0, %s227
      %s245 = sphi 0, %s245
      %s247 = sphi 0, %s245
      %s248 = sphi 0, %s247
      %s262 = sphi 0, %s248
      %s266 = sphi 0, %s266
      %s268 = sphi 0, %s266
      %s269 = sphi 0, %s268
      %s283 = sphi 0, %s269
      %s287 = sphi 0, %s287
      %s289 = sphi 0, %s287
      %s290 = sphi 0, %s289
      %s304 = sphi 0, %s290
      %s310 = sphi 0, %s312
      %s313 = sphi 0, %s310
      %s314 = sphi 0, %s313
      %s330 = sphi 0, %s314
    $region4: #{tpu_custom_call.1} parent=1 // loop_header_branch
      %25 = sbr.rel (%p23) target = $region8
    $region5: #{tpu_custom_call.1} parent=1 // loop_body
      %s27 = ssub.s32 %s22, 1
      %s28 = ssub.s32 %s22, 2
      %s29 = sadd.s32 %s22, 1
      %s30 = ssub.s32 %s22, %s29
      %p31 = scmp.eq.s32.totalorder %s30, 0
      %s33 = sadd.s32 %s32, 1
      %s34 = scalar_select %p31, %s32, %s33
      %p37 = pneg %p31
      %p38 = scmp.eq.s32.totalorder %s22, 1
      %p39 = por %p37, %p38
      %p40 = scmp.ne.s32.totalorder %s32, %s35
      %p41 = scmp.eq.s32.totalorder %s22, 0
      %p42 = por %p40, %p41
      %p43 = scmp.ne.s32.totalorder %s32, %s35
      %p44 = scmp.eq.s32.totalorder %s27, 1
      %p45 = por %p43, %p44
      %p46 = scmp.ne.s32.totalorder %s35, %s36
      %p47 = scmp.eq.s32.totalorder %s27, 0
      %p48 = por %p46, %p47
      %p49 = scmp.ne.s32.totalorder %s35, %s36
      %p50 = scmp.eq.s32.totalorder %s28, 1
      %p51 = por %p49, %p50
      %p53 = scmp.ne.s32.totalorder %s36, %s52
      %p54 = scmp.eq.s32.totalorder %s28, 0
      %p55 = por %p53, %p54
      %s57 = sadd.s32 %s56, 1
      %p60 = scmp.eq.s32.totalorder %s22, 1
      %p61 = scmp.ne.s32.totalorder %s56, %s58
      %p62 = scmp.eq.s32.totalorder %s22, 0
      %p63 = por %p61, %p62
      %p64 = scmp.ne.s32.totalorder %s56, %s58
      %p65 = scmp.eq.s32.totalorder %s27, 1
      %p66 = por %p64, %p65
      %p67 = scmp.ne.s32.totalorder %s58, %s59
      %p68 = scmp.eq.s32.totalorder %s27, 0
      %p69 = por %p67, %p68
      %p70 = scmp.ne.s32.totalorder %s58, %s59
      %p71 = scmp.eq.s32.totalorder %s28, 1
      %p72 = por %p70, %p71
      %p74 = scmp.ne.s32.totalorder %s59, %s73
      %p75 = scmp.eq.s32.totalorder %s28, 0
      %p76 = por %p74, %p75
      %s78 = sadd.s32 %s77, 1
      %p81 = scmp.eq.s32.totalorder %s22, 1
      %p82 = scmp.ne.s32.totalorder %s77, %s79
      %p83 = scmp.eq.s32.totalorder %s22, 0
      %p84 = por %p82, %p83
      %p85 = scmp.ne.s32.totalorder %s77, %s79
      %p86 = scmp.eq.s32.totalorder %s27, 1
      %p87 = por %p85, %p86
      %p88 = scmp.ne.s32.totalorder %s79, %s80
      %p89 = scmp.eq.s32.totalorder %s27, 0
      %p90 = por %p88, %p89
      %p91 = scmp.ne.s32.totalorder %s79, %s80
      %p92 = scmp.eq.s32.totalorder %s28, 1
      %p93 = por %p91, %p92
      %p95 = scmp.ne.s32.totalorder %s80, %s94
      %p96 = scmp.eq.s32.totalorder %s28, 0
      %p97 = por %p95, %p96
      %s99 = sadd.s32 %s98, 1
      %p102 = scmp.eq.s32.totalorder %s22, 1
      %p103 = scmp.ne.s32.totalorder %s98, %s100
      %p104 = scmp.eq.s32.totalorder %s22, 0
      %p105 = por %p103, %p104
      %p106 = scmp.ne.s32.totalorder %s98, %s100
      %p107 = scmp.eq.s32.totalorder %s27, 1
      %p108 = por %p106, %p107
      %p109 = scmp.ne.s32.totalorder %s100, %s101
      %p110 = scmp.eq.s32.totalorder %s27, 0
      %p111 = por %p109, %p110
      %p112 = scmp.ne.s32.totalorder %s100, %s101
      %p113 = scmp.eq.s32.totalorder %s28, 1
      %p114 = por %p112, %p113
      %p116 = scmp.ne.s32.totalorder %s101, %s115
      %p117 = scmp.eq.s32.totalorder %s28, 0
      %p118 = por %p116, %p117
      %s120 = sadd.s32 %s119, 1
      %p123 = scmp.eq.s32.totalorder %s22, 1
      %p124 = scmp.ne.s32.totalorder %s119, %s121
      %p125 = scmp.eq.s32.totalorder %s22, 0
      %p126 = por %p124, %p125
      %p127 = scmp.ne.s32.totalorder %s119, %s121
      %p128 = scmp.eq.s32.totalorder %s27, 1
      %p129 = por %p127, %p128
      %p130 = scmp.ne.s32.totalorder %s121, %s122
      %p131 = scmp.eq.s32.totalorder %s27, 0
      %p132 = por %p130, %p131
      %p133 = scmp.ne.s32.totalorder %s121, %s122
      %p134 = scmp.eq.s32.totalorder %s28, 1
      %p135 = por %p133, %p134
      %p137 = scmp.ne.s32.totalorder %s122, %s136
      %p138 = scmp.eq.s32.totalorder %s28, 0
      %p139 = por %p137, %p138
      %s141 = sadd.s32 %s140, 1
      %p144 = scmp.eq.s32.totalorder %s22, 1
      %p145 = scmp.ne.s32.totalorder %s140, %s142
      %p146 = scmp.eq.s32.totalorder %s22, 0
      %p147 = por %p145, %p146
      %p148 = scmp.ne.s32.totalorder %s140, %s142
      %p149 = scmp.eq.s32.totalorder %s27, 1
      %p150 = por %p148, %p149
      %p151 = scmp.ne.s32.totalorder %s142, %s143
      %p152 = scmp.eq.s32.totalorder %s27, 0
      %p153 = por %p151, %p152
      %p154 = scmp.ne.s32.totalorder %s142, %s143
      %p155 = scmp.eq.s32.totalorder %s28, 1
      %p156 = por %p154, %p155
      %p158 = scmp.ne.s32.totalorder %s143, %s157
      %p159 = scmp.eq.s32.totalorder %s28, 0
      %p160 = por %p158, %p159
      %s162 = sadd.s32 %s161, 1
      %p165 = scmp.eq.s32.totalorder %s22, 1
      %p166 = scmp.ne.s32.totalorder %s161, %s163
      %p167 = scmp.eq.s32.totalorder %s22, 0
      %p168 = por %p166, %p167
      %p169 = scmp.ne.s32.totalorder %s161, %s163
      %p170 = scmp.eq.s32.totalorder %s27, 1
      %p171 = por %p169, %p170
      %p172 = scmp.ne.s32.totalorder %s163, %s164
      %p173 = scmp.eq.s32.totalorder %s27, 0
      %p174 = por %p172, %p173
      %p175 = scmp.ne.s32.totalorder %s163, %s164
      %p176 = scmp.eq.s32.totalorder %s28, 1
      %p177 = por %p175, %p176
      %p179 = scmp.ne.s32.totalorder %s164, %s178
      %p180 = scmp.eq.s32.totalorder %s28, 0
      %p181 = por %p179, %p180
      %s183 = sadd.s32 %s182, 1
      %p186 = scmp.eq.s32.totalorder %s22, 1
      %p187 = scmp.ne.s32.totalorder %s182, %s184
      %p188 = scmp.eq.s32.totalorder %s22, 0
      %p189 = por %p187, %p188
      %p190 = scmp.ne.s32.totalorder %s182, %s184
      %p191 = scmp.eq.s32.totalorder %s27, 1
      %p192 = por %p190, %p191
      %p193 = scmp.ne.s32.totalorder %s184, %s185
      %p194 = scmp.eq.s32.totalorder %s27, 0
      %p195 = por %p193, %p194
      %p196 = scmp.ne.s32.totalorder %s184, %s185
      %p197 = scmp.eq.s32.totalorder %s28, 1
      %p198 = por %p196, %p197
      %p200 = scmp.ne.s32.totalorder %s185, %s199
      %p201 = scmp.eq.s32.totalorder %s28, 0
      %p202 = por %p200, %p201
      %s204 = sadd.s32 %s203, 1
      %p207 = scmp.eq.s32.totalorder %s22, 1
      %p208 = scmp.ne.s32.totalorder %s203, %s205
      %p209 = scmp.eq.s32.totalorder %s22, 0
      %p210 = por %p208, %p209
      %p211 = scmp.ne.s32.totalorder %s203, %s205
      %p212 = scmp.eq.s32.totalorder %s27, 1
      %p213 = por %p211, %p212
      %p214 = scmp.ne.s32.totalorder %s205, %s206
      %p215 = scmp.eq.s32.totalorder %s27, 0
      %p216 = por %p214, %p215
      %p217 = scmp.ne.s32.totalorder %s205, %s206
      %p218 = scmp.eq.s32.totalorder %s28, 1
      %p219 = por %p217, %p218
      %p221 = scmp.ne.s32.totalorder %s206, %s220
      %p222 = scmp.eq.s32.totalorder %s28, 0
      %p223 = por %p221, %p222
      %s225 = sadd.s32 %s224, 1
      %p228 = scmp.eq.s32.totalorder %s22, 1
      %p229 = scmp.ne.s32.totalorder %s224, %s226
      %p230 = scmp.eq.s32.totalorder %s22, 0
      %p231 = por %p229, %p230
      %p232 = scmp.ne.s32.totalorder %s224, %s226
      %p233 = scmp.eq.s32.totalorder %s27, 1
      %p234 = por %p232, %p233
      %p235 = scmp.ne.s32.totalorder %s226, %s227
      %p236 = scmp.eq.s32.totalorder %s27, 0
      %p237 = por %p235, %p236
      %p238 = scmp.ne.s32.totalorder %s226, %s227
      %p239 = scmp.eq.s32.totalorder %s28, 1
      %p240 = por %p238, %p239
      %p242 = scmp.ne.s32.totalorder %s227, %s241
      %p243 = scmp.eq.s32.totalorder %s28, 0
      %p244 = por %p242, %p243
      %s246 = sadd.s32 %s245, 1
      %p249 = scmp.eq.s32.totalorder %s22, 1
      %p250 = scmp.ne.s32.totalorder %s245, %s247
      %p251 = scmp.eq.s32.totalorder %s22, 0
      %p252 = por %p250, %p251
      %p253 = scmp.ne.s32.totalorder %s245, %s247
      %p254 = scmp.eq.s32.totalorder %s27, 1
      %p255 = por %p253, %p254
      %p256 = scmp.ne.s32.totalorder %s247, %s248
      %p257 = scmp.eq.s32.totalorder %s27, 0
      %p258 = por %p256, %p257
      %p259 = scmp.ne.s32.totalorder %s247, %s248
      %p260 = scmp.eq.s32.totalorder %s28, 1
      %p261 = por %p259, %p260
      %p263 = scmp.ne.s32.totalorder %s248, %s262
      %p264 = scmp.eq.s32.totalorder %s28, 0
      %p265 = por %p263, %p264
      %s267 = sadd.s32 %s266, 1
      %p270 = scmp.eq.s32.totalorder %s22, 1
      %p271 = scmp.ne.s32.totalorder %s266, %s268
      %p272 = scmp.eq.s32.totalorder %s22, 0
      %p273 = por %p271, %p272
      %p274 = scmp.ne.s32.totalorder %s266, %s268
      %p275 = scmp.eq.s32.totalorder %s27, 1
      %p276 = por %p274, %p275
      %p277 = scmp.ne.s32.totalorder %s268, %s269
      %p278 = scmp.eq.s32.totalorder %s27, 0
      %p279 = por %p277, %p278
      %p280 = scmp.ne.s32.totalorder %s268, %s269
      %p281 = scmp.eq.s32.totalorder %s28, 1
      %p282 = por %p280, %p281
      %p284 = scmp.ne.s32.totalorder %s269, %s283
      %p285 = scmp.eq.s32.totalorder %s28, 0
      %p286 = por %p284, %p285
      %s288 = sadd.s32 %s287, 1
      %p291 = scmp.eq.s32.totalorder %s22, 1
      %p292 = scmp.ne.s32.totalorder %s287, %s289
      %p293 = scmp.eq.s32.totalorder %s22, 0
      %p294 = por %p292, %p293
      %p295 = scmp.ne.s32.totalorder %s287, %s289
      %p296 = scmp.eq.s32.totalorder %s27, 1
      %p297 = por %p295, %p296
      %p298 = scmp.ne.s32.totalorder %s289, %s290
      %p299 = scmp.eq.s32.totalorder %s27, 0
      %p300 = por %p298, %p299
      %p301 = scmp.ne.s32.totalorder %s289, %s290
      %p302 = scmp.eq.s32.totalorder %s28, 1
      %p303 = por %p301, %p302
      %p305 = scmp.ne.s32.totalorder %s290, %s304
      %p306 = scmp.eq.s32.totalorder %s28, 0
      %p307 = por %p305, %p306
      %s308 = ssub.s32 %s22, %s29
      %p309 = scmp.eq.s32.totalorder %s308, 0
      %s311 = sadd.s32 %s310, 1
      %s312 = scalar_select %p309, %s310, %s311
      %p315 = pneg %p309
      %p316 = scmp.eq.s32.totalorder %s22, 1
      %p317 = por %p315, %p316
      %p318 = scmp.ne.s32.totalorder %s310, %s313
      %p319 = scmp.eq.s32.totalorder %s22, 0
      %p320 = por %p318, %p319
      %p321 = scmp.ne.s32.totalorder %s310, %s313
      %p322 = scmp.eq.s32.totalorder %s27, 1
      %p323 = por %p321, %p322
      %p324 = scmp.ne.s32.totalorder %s313, %s314
      %p325 = scmp.eq.s32.totalorder %s27, 0
      %p326 = por %p324, %p325
      %p327 = scmp.ne.s32.totalorder %s313, %s314
      %p328 = scmp.eq.s32.totalorder %s28, 1
      %p329 = por %p327, %p328
      %p331 = scmp.ne.s32.totalorder %s314, %s330
      %p332 = scmp.eq.s32.totalorder %s28, 0
      %p333 = por %p331, %p332
      %p334 = scmp.le.s32.totalorder 1, %s22
      %p335 = scmp.lt.s32.totalorder %s22, 3
      %p336 = pnand %p334, %p335
      %p337 = pneg %p336
      // Predicated region
      $region9: #{tpu_custom_call.1} parent=5 // pred_check
        _
      $region10: #{tpu_custom_call.1} parent=5 // pred_check_branch
        %339 = sbr.rel (%p336) target = $region12
      $region11: #{tpu_custom_call.1} parent=5 // pred_region
        %s340 = ssub.s32 %s22, 1
        // Predicated region
        $region13: #{tpu_custom_call.1} parent=11 // pred_check
          %p341 = pneg %p69
        $region14: #{tpu_custom_call.1} parent=11 // pred_check_branch
          %343 = sbr.rel (%p341) target = $region16
        $region15: #{tpu_custom_call.1} parent=11 // pred_region
          _
        $region16: #{tpu_custom_call.1} parent=11 // pred_fallthru
          _
        // Predicated region
        $region17: #{tpu_custom_call.1} parent=11 // pred_check
          %p344 = pneg %p90
        $region18: #{tpu_custom_call.1} parent=11 // pred_check_branch
          %346 = sbr.rel (%p344) target = $region20
        $region19: #{tpu_custom_call.1} parent=11 // pred_region
          _
        $region20: #{tpu_custom_call.1} parent=11 // pred_fallthru
          _
        // Predicated region
        $region21: #{tpu_custom_call.1} parent=11 // pred_check
          %p347 = pneg %p111
        $region22: #{tpu_custom_call.1} parent=11 // pred_check_branch
          %349 = sbr.rel (%p347) target = $region24
        $region23: #{tpu_custom_call.1} parent=11 // pred_region
          _
        $region24: #{tpu_custom_call.1} parent=11 // pred_fallthru
          _
        // Predicated region
        $region25: #{tpu_custom_call.1} parent=11 // pred_check
          %p350 = pneg %p132
        $region26: #{tpu_custom_call.1} parent=11 // pred_check_branch
          %352 = sbr.rel (%p350) target = $region28
        $region27: #{tpu_custom_call.1} parent=11 // pred_region
          _
        $region28: #{tpu_custom_call.1} parent=11 // pred_fallthru
          _
        // Predicated region
        $region29: #{tpu_custom_call.1} parent=11 // pred_check
          %p353 = pneg %p153
        $region30: #{tpu_custom_call.1} parent=11 // pred_check_branch
          %355 = sbr.rel (%p353) target = $region32
        $region31: #{tpu_custom_call.1} parent=11 // pred_region
          _
        $region32: #{tpu_custom_call.1} parent=11 // pred_fallthru
          _
        // Predicated region
        $region33: #{tpu_custom_call.1} parent=11 // pred_check
          %p356 = pneg %p174
        $region34: #{tpu_custom_call.1} parent=11 // pred_check_branch
          %358 = sbr.rel (%p356) target = $region36
        $region35: #{tpu_custom_call.1} parent=11 // pred_region
          _
        $region36: #{tpu_custom_call.1} parent=11 // pred_fallthru
          _
        // Predicated region
        $region37: #{tpu_custom_call.1} parent=11 // pred_check
          %p359 = pneg %p195
        $region38: #{tpu_custom_call.1} parent=11 // pred_check_branch
          %361 = sbr.rel (%p359) target = $region40
        $region39: #{tpu_custom_call.1} parent=11 // pred_region
          _
        $region40: #{tpu_custom_call.1} parent=11 // pred_fallthru
          _
        // Predicated region
        $region41: #{tpu_custom_call.1} parent=11 // pred_check
          %p362 = pneg %p216
        $region42: #{tpu_custom_call.1} parent=11 // pred_check_branch
          %364 = sbr.rel (%p362) target = $region44
        $region43: #{tpu_custom_call.1} parent=11 // pred_region
          _
        $region44: #{tpu_custom_call.1} parent=11 // pred_fallthru
          _
        // Predicated region
        $region45: #{tpu_custom_call.1} parent=11 // pred_check
          %p365 = pneg %p237
        $region46: #{tpu_custom_call.1} parent=11 // pred_check_branch
          %367 = sbr.rel (%p365) target = $region48
        $region47: #{tpu_custom_call.1} parent=11 // pred_region
          _
        $region48: #{tpu_custom_call.1} parent=11 // pred_fallthru
          _
        // Predicated region
        $region49: #{tpu_custom_call.1} parent=11 // pred_check
          %p368 = pneg %p258
        $region50: #{tpu_custom_call.1} parent=11 // pred_check_branch
          %370 = sbr.rel (%p368) target = $region52
        $region51: #{tpu_custom_call.1} parent=11 // pred_region
          _
        $region52: #{tpu_custom_call.1} parent=11 // pred_fallthru
          _
        // Predicated region
        $region53: #{tpu_custom_call.1} parent=11 // pred_check
          %p371 = pneg %p279
        $region54: #{tpu_custom_call.1} parent=11 // pred_check_branch
          %373 = sbr.rel (%p371) target = $region56
        $region55: #{tpu_custom_call.1} parent=11 // pred_region
          _
        $region56: #{tpu_custom_call.1} parent=11 // pred_fallthru
          _
        // Predicated region
        $region57: #{tpu_custom_call.1} parent=11 // pred_check
          %p374 = pneg %p300
        $region58: #{tpu_custom_call.1} parent=11 // pred_check_branch
          %376 = sbr.rel (%p374) target = $region60
        $region59: #{tpu_custom_call.1} parent=11 // pred_region
          _
        $region60: #{tpu_custom_call.1} parent=11 // pred_fallthru
          _
      $region12: #{tpu_custom_call.1} parent=5 // pred_fallthru
        _
      %p377 = scmp.lt.s32.totalorder %s22, 2
      // Predicated region
      $region61: #{tpu_custom_call.1} parent=5 // pred_check
        %p378 = pneg %p377
      $region62: #{tpu_custom_call.1} parent=5 // pred_check_branch
        %380 = sbr.rel (%p378) target = $region64
      $region63: #{tpu_custom_call.1} parent=5 // pred_region
        // Predicated region
        $region65: #{tpu_custom_call.1} parent=63 // pred_check
          %p381 = pneg %p42
        $region66: #{tpu_custom_call.1} parent=63 // pred_check_branch
          %383 = sbr.rel (%p381) target = $region68
        $region67: #{tpu_custom_call.1} parent=63 // pred_region
          %p384 = scmp.lt.s32.totalorder %s22, 1
          %s385 = scalar_select %p384, %s22, 1
          %s386 = smul.addr %s385, 8
          %s387 = smul.addr %s386, 8
          %s388 = scalar_lea.vmem %s0, %s387
        $region68: #{tpu_custom_call.1} parent=63 // pred_fallthru
          _
      $region64: #{tpu_custom_call.1} parent=5 // pred_fallthru
        _
      %p389 = scmp.le.s32.totalorder 1, %s22
      %p390 = scmp.lt.s32.totalorder %s22, 3
      %p391 = pnand %p389, %p390
      %p392 = pneg %p391
      // Predicated region
      $region69: #{tpu_custom_call.1} parent=5 // pred_check
        _
      $region70: #{tpu_custom_call.1} parent=5 // pred_check_branch
        %394 = sbr.rel (%p391) target = $region72
      $region71: #{tpu_custom_call.1} parent=5 // pred_region
        %s395 = ssub.s32 %s22, 1
        %p396 = scmp.lt.s32.totalorder %s27, 1
        %s397 = scalar_select %p396, %s27, 1
        %s398 = smul.addr %s397, 8
        %s399 = smul.addr %s398, 8
        %s400 = scalar_lea.vmem %s0, %s399
        %p401 = pneg %p48
        %p402 = pneg %p45
        %p403 = pneg %p69
        %p404 = pneg %p66
        %p405 = pneg %p90
        %p406 = pneg %p87
        %p407 = pneg %p111
        %p408 = pneg %p108
        %p409 = pneg %p132
        %p410 = pneg %p129
        %p411 = pneg %p153
        %p412 = pneg %p150
        %p413 = pneg %p174
        %p414 = pneg %p171
        %p415 = pneg %p195
        %p416 = pneg %p192
        %p417 = pneg %p216
        %p418 = pneg %p213
        %p419 = pneg %p237
        %p420 = pneg %p234
        %p421 = pneg %p258
        %p422 = pneg %p255
        %p423 = pneg %p279
        %p424 = pneg %p276
        %p425 = pneg %p300
        %p426 = pneg %p297
        %p427 = pneg %p326
        %p428 = pneg %p323
        %s429 = sand.u32 %s313, 1
        %s430 = scalar_lea.sflag [#allocation5], %s429
        %s431 = sand.u32 %s313, 1
        %s432 = smul.addr %s431, 64
        %s433 = scalar_lea.vmem [#allocation4], %s432
        %p434 = scmp.lt.s32.totalorder %s27, 1
        %s435 = scalar_select %p434, %s27, 1
        %s436 = smul.addr %s435, 8
        %s437 = smul.addr %s436, 8
        %s438 = scalar_lea.vmem %s0, %s437
        %v440 = vld [vmem:[%s438] sm:$0xff]
        %v441 = vld [vmem:[%s438 + $0x8] sm:$0xff]
        %v442 = vld [vmem:[%s438 + $0x10] sm:$0xff]
        %v443 = vld [vmem:[%s438 + $0x18] sm:$0xff]
        %v444 = vld [vmem:[%s438 + $0x20] sm:$0xff]
        %v445 = vld [vmem:[%s438 + $0x28] sm:$0xff]
        %v446 = vld [vmem:[%s438 + $0x30] sm:$0xff]
        %v447 = vld [vmem:[%s438 + $0x38] sm:$0xff]
        %vm448 = vcmask 523264
        %v450 = vsel %vm448, 1.0, 0
        %452 = vmatprep.subr.mxu0 0.0
        %453 = vmatpush1.msra.mxu0 %v440
        %454 = vmatprep.subr.mxu0 0.0
        %455 = vmatpush1.msra.mxu0 %v441
        %456 = vmatprep.subr.mxu0 0.0
        %457 = vmatpush1.msra.mxu0 %v442
        %458 = vmatprep.subr.mxu0 0.0
        %459 = vmatpush1.msra.mxu0 %v443
        %460 = vmatprep.subr.mxu0 0.0
        %461 = vmatpush1.msra.mxu0 %v444
        %462 = vmatprep.subr.mxu0 0.0
        %463 = vmatpush1.msra.mxu0 %v445
        %464 = vmatprep.subr.mxu0 0.0
        %465 = vmatpush1.msra.mxu0 %v446
        %466 = vmatprep.subr.mxu0 0.0
        %467 = vmatpush1.msra.mxu0 %v447
        %468 = vmatprep.subr.mxu0 0.0
        %469 = vmatpush1.msra.mxu0 0.0
        %470 = vmatprep.subr.mxu0 0.0
        %471 = vmatpush1.msra.mxu0 0.0
        %472 = vmatprep.subr.mxu0 0.0
        %473 = vmatpush1.msra.mxu0 0.0
        %474 = vmatprep.subr.mxu0 0.0
        %475 = vmatpush1.msra.mxu0 0.0
        %476 = vmatprep.subr.mxu0 0.0
        %477 = vmatpush1.msra.mxu0 0.0
        %478 = vmatprep.subr.mxu0 0.0
        %479 = vmatpush1.msra.mxu0 0.0
        %480 = vmatprep.subr.mxu0 0.0
        %481 = vmatpush1.msra.mxu0 0.0
        %482 = vmatprep.subr.mxu0 0.0
        %483 = vmatpush1.msra.mxu0 0.0
        %484 = vmatprep.subr.mxu0 0.0
        %485 = vmatpush1.msra.mxu0 0.0
        %486 = vmatprep.subr.mxu0 0.0
        %487 = vmatpush1.msra.mxu0 0.0
        %488 = vmatprep.subr.mxu0 0.0
        %489 = vmatpush1.msra.mxu0 0.0
        %490 = vmatprep.subr.mxu0 0.0
        %491 = vmatpush1.msra.mxu0 0.0
        %492 = vmatprep.subr.mxu0 0.0
        %493 = vmatpush1.msra.mxu0 0.0
        %494 = vmatprep.subr.mxu0 0.0
        %495 = vmatpush1.msra.mxu0 0.0
        %496 = vmatprep.subr.mxu0 0.0
        %497 = vmatpush1.msra.mxu0 0.0
        %498 = vmatprep.subr.mxu0 0.0
        %499 = vmatpush1.msra.mxu0 0.0
        %500 = vmatprep.subr.mxu0 0.0
        %501 = vmatpush1.msra.mxu0 0.0
        %502 = vmatprep.subr.mxu0 0.0
        %503 = vmatpush1.msra.mxu0 0.0
        %504 = vmatprep.subr.mxu0 0.0
        %505 = vmatpush1.msra.mxu0 0.0
        %506 = vmatprep.subr.mxu0 0.0
        %507 = vmatpush1.msra.mxu0 0.0
        %508 = vmatprep.subr.mxu0 0.0
        %509 = vmatpush1.msra.mxu0 0.0
        %510 = vmatprep.subr.mxu0 0.0
        %511 = vmatpush1.msra.mxu0 0.0
        %512 = vmatprep.subr.mxu0 0.0
        %513 = vmatpush1.msra.mxu0 0.0
        %514 = vmatprep.subr.mxu0 0.0
        %515 = vmatpush1.msra.mxu0 0.0
        %516 = vmatprep.mubr.f32.mxu0 0.0
        %517 = vmatmul.mubr.f32.gmra.mrb[0].mxu0 %v450
        %v518 = vpop.f32.mrb[0].mxu0
        %v519 = vadd.f32 0.0, %v518
        %v520 = vpop.f32.mrb[0].mxu0
        %521 = vdwg.mxu0
        %v522 = vmul.f32 %v440, %v440
        %v523 = vmul.f32 %v441, %v441
        %v524 = vmul.f32 %v442, %v442
        %v525 = vmul.f32 %v443, %v443
        %v526 = vmul.f32 %v444, %v444
        %v527 = vmul.f32 %v445, %v445
        %v528 = vmul.f32 %v446, %v446
        %v529 = vmul.f32 %v447, %v447
        %530 = vmatprep.subr.mxu0 0.0
        %531 = vmatpush1.msra.mxu0 %v522
        %532 = vmatprep.subr.mxu0 0.0
        %533 = vmatpush1.msra.mxu0 %v523
        %534 = vmatprep.subr.mxu0 0.0
        %535 = vmatpush1.msra.mxu0 %v524
        %536 = vmatprep.subr.mxu0 0.0
        %537 = vmatpush1.msra.mxu0 %v525
        %538 = vmatprep.subr.mxu0 0.0
        %539 = vmatpush1.msra.mxu0 %v526
        %540 = vmatprep.subr.mxu0 0.0
        %541 = vmatpush1.msra.mxu0 %v527
        %542 = vmatprep.subr.mxu0 0.0
        %543 = vmatpush1.msra.mxu0 %v528
        %544 = vmatprep.subr.mxu0 0.0
        %545 = vmatpush1.msra.mxu0 %v529
        %546 = vmatprep.subr.mxu0 0.0
        %547 = vmatpush1.msra.mxu0 0.0
        %548 = vmatprep.subr.mxu0 0.0
        %549 = vmatpush1.msra.mxu0 0.0
        %550 = vmatprep.subr.mxu0 0.0
        %551 = vmatpush1.msra.mxu0 0.0
        %552 = vmatprep.subr.mxu0 0.0
        %553 = vmatpush1.msra.mxu0 0.0
        %554 = vmatprep.subr.mxu0 0.0
        %555 = vmatpush1.msra.mxu0 0.0
        %556 = vmatprep.subr.mxu0 0.0
        %557 = vmatpush1.msra.mxu0 0.0
        %558 = vmatprep.subr.mxu0 0.0
        %559 = vmatpush1.msra.mxu0 0.0
        %560 = vmatprep.subr.mxu0 0.0
        %561 = vmatpush1.msra.mxu0 0.0
        %562 = vmatprep.subr.mxu0 0.0
        %563 = vmatpush1.msra.mxu0 0.0
        %564 = vmatprep.subr.mxu0 0.0
        %565 = vmatpush1.msra.mxu0 0.0
        %566 = vmatprep.subr.mxu0 0.0
        %567 = vmatpush1.msra.mxu0 0.0
        %568 = vmatprep.subr.mxu0 0.0
        %569 = vmatpush1.msra.mxu0 0.0
        %570 = vmatprep.subr.mxu0 0.0
        %571 = vmatpush1.msra.mxu0 0.0
        %572 = vmatprep.subr.mxu0 0.0
        %573 = vmatpush1.msra.mxu0 0.0
        %574 = vmatprep.subr.mxu0 0.0
        %575 = vmatpush1.msra.mxu0 0.0
        %576 = vmatprep.subr.mxu0 0.0
        %577 = vmatpush1.msra.mxu0 0.0
        %578 = vmatprep.subr.mxu0 0.0
        %579 = vmatpush1.msra.mxu0 0.0
        %580 = vmatprep.subr.mxu0 0.0
        %581 = vmatpush1.msra.mxu0 0.0
        %582 = vmatprep.subr.mxu0 0.0
        %583 = vmatpush1.msra.mxu0 0.0
        %584 = vmatprep.subr.mxu0 0.0
        %585 = vmatpush1.msra.mxu0 0.0
        %586 = vmatprep.subr.mxu0 0.0
        %587 = vmatpush1.msra.mxu0 0.0
        %588 = vmatprep.subr.mxu0 0.0
        %589 = vmatpush1.msra.mxu0 0.0
        %590 = vmatprep.subr.mxu0 0.0
        %591 = vmatpush1.msra.mxu0 0.0
        %592 = vmatprep.subr.mxu0 0.0
        %593 = vmatpush1.msra.mxu0 0.0
        %594 = vmatprep.mubr.f32.mxu0 0.0
        %595 = vmatmul.mubr.f32.gmra.mrb[0].mxu0 %v450
        %v596 = vpop.f32.mrb[0].mxu0
        %v597 = vadd.f32 0.0, %v596
        %v598 = vpop.f32.mrb[0].mxu0
        %599 = vdwg.mxu0
        %v600 = vld [vmem:[%s3] sm:$0xff]
        %v601 = vld [vmem:[%s3 + $0x8] sm:$0xff]
        %v602 = vld [vmem:[%s3 + $0x10] sm:$0xff]
        %v603 = vld [vmem:[%s3 + $0x18] sm:$0xff]
        %vm604 = vcmask 261120
        %v606 = vsel %vm604, %v519, 0
        %608 = vmatprep.subr.mxu0 0.0
        %609 = vmatpush1.msra.mxu0 %v600
        %610 = vmatprep.subr.mxu0 0.0
        %611 = vmatpush1.msra.mxu0 %v601
        %612 = vmatprep.subr.mxu0 0.0
        %613 = vmatpush1.msra.mxu0 %v602
        %614 = vmatprep.subr.mxu0 0.0
        %615 = vmatpush1.msra.mxu0 %v603
        %616 = vmatprep.subr.mxu0 0.0
        %617 = vmatpush1.msra.mxu0 0.0
        %618 = vmatprep.subr.mxu0 0.0
        %619 = vmatpush1.msra.mxu0 0.0
        %620 = vmatprep.subr.mxu0 0.0
        %621 = vmatpush1.msra.mxu0 0.0
        %622 = vmatprep.subr.mxu0 0.0
        %623 = vmatpush1.msra.mxu0 0.0
        %624 = vmatprep.subr.mxu0 0.0
        %625 = vmatpush1.msra.mxu0 0.0
        %626 = vmatprep.subr.mxu0 0.0
        %627 = vmatpush1.msra.mxu0 0.0
        %628 = vmatprep.subr.mxu0 0.0
        %629 = vmatpush1.msra.mxu0 0.0
        %630 = vmatprep.subr.mxu0 0.0
        %631 = vmatpush1.msra.mxu0 0.0
        %632 = vmatprep.subr.mxu0 0.0
        %633 = vmatpush1.msra.mxu0 0.0
        %634 = vmatprep.subr.mxu0 0.0
        %635 = vmatpush1.msra.mxu0 0.0
        %636 = vmatprep.subr.mxu0 0.0
        %637 = vmatpush1.msra.mxu0 0.0
        %638 = vmatprep.subr.mxu0 0.0
        %639 = vmatpush1.msra.mxu0 0.0
        %640 = vmatprep.subr.mxu0 0.0
        %641 = vmatpush1.msra.mxu0 0.0
        %642 = vmatprep.subr.mxu0 0.0
        %643 = vmatpush1.msra.mxu0 0.0
        %644 = vmatprep.subr.mxu0 0.0
        %645 = vmatpush1.msra.mxu0 0.0
        %646 = vmatprep.subr.mxu0 0.0
        %647 = vmatpush1.msra.mxu0 0.0
        %648 = vmatprep.subr.mxu0 0.0
        %649 = vmatpush1.msra.mxu0 0.0
        %650 = vmatprep.subr.mxu0 0.0
        %651 = vmatpush1.msra.mxu0 0.0
        %652 = vmatprep.subr.mxu0 0.0
        %653 = vmatpush1.msra.mxu0 0.0
        %654 = vmatprep.subr.mxu0 0.0
        %655 = vmatpush1.msra.mxu0 0.0
        %656 = vmatprep.subr.mxu0 0.0
        %657 = vmatpush1.msra.mxu0 0.0
        %658 = vmatprep.subr.mxu0 0.0
        %659 = vmatpush1.msra.mxu0 0.0
        %660 = vmatprep.subr.mxu0 0.0
        %661 = vmatpush1.msra.mxu0 0.0
        %662 = vmatprep.subr.mxu0 0.0
        %663 = vmatpush1.msra.mxu0 0.0
        %664 = vmatprep.subr.mxu0 0.0
        %665 = vmatpush1.msra.mxu0 0.0
        %666 = vmatprep.subr.mxu0 0.0
        %667 = vmatpush1.msra.mxu0 0.0
        %668 = vmatprep.subr.mxu0 0.0
        %669 = vmatpush1.msra.mxu0 0.0
        %670 = vmatprep.subr.mxu0 0.0
        %671 = vmatpush1.msra.mxu0 0.0
        %672 = vmatprep.mubr.f32.mxu0 0.0
        %673 = vmatmul.mubr.f32.gmra.mrb[0].mxu0 %v606
        %v674 = vpop.f32.mrb[0].mxu0
        %v675 = vadd.f32 0.0, %v674
        %v676 = vpop.f32.mrb[0].mxu0
        %677 = vdwg.mxu0
        %v679 = vsel %vm604, %v597, 0
        %681 = vmatprep.subr.mxu0 0.0
        %682 = vmatpush1.msra.mxu0 %v600
        %683 = vmatprep.subr.mxu0 0.0
        %684 = vmatpush1.msra.mxu0 %v601
        %685 = vmatprep.subr.mxu0 0.0
        %686 = vmatpush1.msra.mxu0 %v602
        %687 = vmatprep.subr.mxu0 0.0
        %688 = vmatpush1.msra.mxu0 %v603
        %689 = vmatprep.subr.mxu0 0.0
        %690 = vmatpush1.msra.mxu0 0.0
        %691 = vmatprep.subr.mxu0 0.0
        %692 = vmatpush1.msra.mxu0 0.0
        %693 = vmatprep.subr.mxu0 0.0
        %694 = vmatpush1.msra.mxu0 0.0
        %695 = vmatprep.subr.mxu0 0.0
        %696 = vmatpush1.msra.mxu0 0.0
        %697 = vmatprep.subr.mxu0 0.0
        %698 = vmatpush1.msra.mxu0 0.0
        %699 = vmatprep.subr.mxu0 0.0
        %700 = vmatpush1.msra.mxu0 0.0
        %701 = vmatprep.subr.mxu0 0.0
        %702 = vmatpush1.msra.mxu0 0.0
        %703 = vmatprep.subr.mxu0 0.0
        %704 = vmatpush1.msra.mxu0 0.0
        %705 = vmatprep.subr.mxu0 0.0
        %706 = vmatpush1.msra.mxu0 0.0
        %707 = vmatprep.subr.mxu0 0.0
        %708 = vmatpush1.msra.mxu0 0.0
        %709 = vmatprep.subr.mxu0 0.0
        %710 = vmatpush1.msra.mxu0 0.0
        %711 = vmatprep.subr.mxu0 0.0
        %712 = vmatpush1.msra.mxu0 0.0
        %713 = vmatprep.subr.mxu0 0.0
        %714 = vmatpush1.msra.mxu0 0.0
        %715 = vmatprep.subr.mxu0 0.0
        %716 = vmatpush1.msra.mxu0 0.0
        %717 = vmatprep.subr.mxu0 0.0
        %718 = vmatpush1.msra.mxu0 0.0
        %719 = vmatprep.subr.mxu0 0.0
        %720 = vmatpush1.msra.mxu0 0.0
        %721 = vmatprep.subr.mxu0 0.0
        %722 = vmatpush1.msra.mxu0 0.0
        %723 = vmatprep.subr.mxu0 0.0
        %724 = vmatpush1.msra.mxu0 0.0
        %725 = vmatprep.subr.mxu0 0.0
        %726 = vmatpush1.msra.mxu0 0.0
        %727 = vmatprep.subr.mxu0 0.0
        %728 = vmatpush1.msra.mxu0 0.0
        %729 = vmatprep.subr.mxu0 0.0
        %730 = vmatpush1.msra.mxu0 0.0
        %731 = vmatprep.subr.mxu0 0.0
        %732 = vmatpush1.msra.mxu0 0.0
        %733 = vmatprep.subr.mxu0 0.0
        %734 = vmatpush1.msra.mxu0 0.0
        %735 = vmatprep.subr.mxu0 0.0
        %736 = vmatpush1.msra.mxu0 0.0
        %737 = vmatprep.subr.mxu0 0.0
        %738 = vmatpush1.msra.mxu0 0.0
        %739 = vmatprep.subr.mxu0 0.0
        %740 = vmatpush1.msra.mxu0 0.0
        %741 = vmatprep.subr.mxu0 0.0
        %742 = vmatpush1.msra.mxu0 0.0
        %743 = vmatprep.subr.mxu0 0.0
        %744 = vmatpush1.msra.mxu0 0.0
        %745 = vmatprep.mubr.f32.mxu0 0.0
        %746 = vmatmul.mubr.f32.gmra.mrb[0].mxu0 %v679
        %v747 = vpop.f32.mrb[0].mxu0
        %v748 = vadd.f32 0.0, %v747
        %v749 = vpop.f32.mrb[0].mxu0
        %750 = vdwg.mxu0
        %v751 = vmul.f32 %v675, 0.015625
        %v752 = vmul.f32 %v748, 0.015625
        %v753 = vmul.f32 %v751, %v751
        %v754 = vsub.f32 %v752, %v753
        %v755 = vadd.f32 %v754, 1e-05
        %v756 = vrsqrt.pop %v755
        %v757 = vlaneseq
        %v758 = vshrl.u32 %v757, 7
        %v759 = vsub.s32 0, %v758
        %v760 = vrot.slane %v751, %v759
        %v761 = vsub.f32 %v440, %v760
        %v762 = vsub.f32 %v441, %v760
        %v763 = vsub.f32 %v442, %v760
        %v764 = vsub.f32 %v443, %v760
        %v765 = vsub.f32 %v444, %v760
        %v766 = vsub.f32 %v445, %v760
        %v767 = vsub.f32 %v446, %v760
        %v768 = vsub.f32 %v447, %v760
        %v769 = vld [vmem:[%s1] sm:$0x1]
        %v770 = vmul.f32 %v756, %v769
        %v771 = vlaneseq
        %v772 = vshrl.u32 %v771, 7
        %v773 = vsub.s32 0, %v772
        %v774 = vrot.slane %v770, %v773
        %v775 = vmul.f32 %v761, %v774
        %v776 = vmul.f32 %v762, %v774
        %v777 = vmul.f32 %v763, %v774
        %v778 = vmul.f32 %v764, %v774
        %v779 = vmul.f32 %v765, %v774
        %v780 = vmul.f32 %v766, %v774
        %v781 = vmul.f32 %v767, %v774
        %v782 = vmul.f32 %v768, %v774
        %v783 = vld [vmem:[%s2] sm:$0x1]
        %v785 = vlaneseq
        %v786 = vshrl.u32 %v785, 7
        %v787 = vsub.s32 0, %v786
        %v788 = vrot.slane %v783, %v787
        %v790 = vadd.f32 %v775, %v788
        %v791 = vadd.f32 %v776, %v788
        %v792 = vadd.f32 %v777, %v788
        %v793 = vadd.f32 %v778, %v788
        %v794 = vadd.f32 %v779, %v788
        %v795 = vadd.f32 %v780, %v788
        %v796 = vadd.f32 %v781, %v788
        %v797 = vadd.f32 %v782, %v788
        %v798 = vxor.u32 %v790, 2147483648
        %v799 = vxor.u32 %v791, 2147483648
        %v800 = vxor.u32 %v792, 2147483648
        %v801 = vxor.u32 %v793, 2147483648
        %v802 = vxor.u32 %v794, 2147483648
        %v803 = vxor.u32 %v795, 2147483648
        %v804 = vxor.u32 %v796, 2147483648
        %v805 = vxor.u32 %v797, 2147483648
        %v806 = vmul.f32 %v798, 1.442695
        %v807 = vpow.pop %v806
        %v808 = vmul.f32 %v799, 1.442695
        %v809 = vpow.pop %v808
        %v810 = vmul.f32 %v800, 1.442695
        %v811 = vpow.pop %v810
        %v812 = vmul.f32 %v801, 1.442695
        %v813 = vpow.pop %v812
        %v814 = vmul.f32 %v802, 1.442695
        %v815 = vpow.pop %v814
        %v816 = vmul.f32 %v803, 1.442695
        %v817 = vpow.pop %v816
        %v818 = vmul.f32 %v804, 1.442695
        %v819 = vpow.pop %v818
        %v820 = vmul.f32 %v805, 1.442695
        %v821 = vpow.pop %v820
        %v822 = vadd.f32 %v807, 1.0
        %v823 = vadd.f32 %v809, 1.0
        %v824 = vadd.f32 %v811, 1.0
        %v825 = vadd.f32 %v813, 1.0
        %v826 = vadd.f32 %v815, 1.0
        %v827 = vadd.f32 %v817, 1.0
        %v828 = vadd.f32 %v819, 1.0
        %v829 = vadd.f32 %v821, 1.0
        %v830 = vrcp.pop %v822
        %v831 = vmul.f32 1.0, %v830
        %v832 = vrcp.pop %v823
        %v833 = vmul.f32 1.0, %v832
        %v834 = vrcp.pop %v824
        %v835 = vmul.f32 1.0, %v834
        %v836 = vrcp.pop %v825
        %v837 = vmul.f32 1.0, %v836
        %v838 = vrcp.pop %v826
        %v839 = vmul.f32 1.0, %v838
        %v840 = vrcp.pop %v827
        %v841 = vmul.f32 1.0, %v840
        %v842 = vrcp.pop %v828
        %v843 = vmul.f32 1.0, %v842
        %v844 = vrcp.pop %v829
        %v845 = vmul.f32 1.0, %v844
        %v846 = vmul.f32 %v790, %v831
        %v847 = vmul.f32 %v791, %v833
        %v848 = vmul.f32 %v792, %v835
        %v849 = vmul.f32 %v793, %v837
        %v850 = vmul.f32 %v794, %v839
        %v851 = vmul.f32 %v795, %v841
        %v852 = vmul.f32 %v796, %v843
        %v853 = vmul.f32 %v797, %v845
        %854 = vst.msk [vmem:[#allocation2] sm:$0xff] %vm604, 0.0
        %vm855 = vcmask 256000
        %856 = vst.msk [vmem:[#allocation2 + $0x8] sm:$0x7] %vm855, 0.0
        %857 = vst.msk [vmem:[#allocation2 + $0x5b] sm:$0xff] %vm604, 0.0
        %vm858 = vcmask 258048
        %859 = vst.msk [vmem:[#allocation2 + $0x63] sm:$0x1f] %vm858, 0.0
        %v869 = vcombine.high %v846, %v846
        %v871 = vunpack.c.l.s4 1983009808
        %v872 = vunpack.c.0.s8 %v871
        %v873 = vlaneseq
        %v874 = vshrl.u32 %v873, 7
        %v875 = vsub.s32 %v872, %v874
        %v876 = vrot.slane %v846, %v875
        %v878 = vunpack.c.l.s4 1983009808
        %v879 = vunpack.c.0.s8 %v878
        %v880 = vlaneseq
        %v881 = vshrl.u32 %v880, 7
        %v882 = vsub.s32 %v879, %v881
        %v883 = vrot.slane %v869, %v882
        %v884 = vcombine.high %v876, %v876
        %v885 = vcombine.high %v883, %v883
        %v887 = vunpack.c.l.s4 1983009808
        %v888 = vunpack.c.0.s8 %v887
        %v889 = vlaneseq
        %v890 = vshrl.u32 %v889, 7
        %v891 = vsub.s32 %v888, %v890
        %v892 = vrot.slane 0.0, %v891
        %v893 = vcombine.high %v847, %v847
        %v895 = vunpack.c.l.s4 1983009808
        %v896 = vunpack.c.0.s8 %v895
        %v897 = vlaneseq
        %v898 = vshrl.u32 %v897, 7
        %v899 = vsub.s32 %v896, %v898
        %v900 = vrot.slane %v847, %v899
        %v902 = vunpack.c.l.s4 1983009808
        %v903 = vunpack.c.0.s8 %v902
        %v904 = vlaneseq
        %v905 = vshrl.u32 %v904, 7
        %v906 = vsub.s32 %v903, %v905
        %v907 = vrot.slane %v893, %v906
        %v908 = vcombine.high %v900, %v900
        %v909 = vcombine.high %v907, %v907
        %v910 = vcombine.high %v848, %v848
        %v912 = vunpack.c.l.s4 1983009808
        %v913 = vunpack.c.0.s8 %v912
        %v914 = vlaneseq
        %v915 = vshrl.u32 %v914, 7
        %v916 = vsub.s32 %v913, %v915
        %v917 = vrot.slane %v848, %v916
        %v919 = vunpack.c.l.s4 1983009808
        %v920 = vunpack.c.0.s8 %v919
        %v921 = vlaneseq
        %v922 = vshrl.u32 %v921, 7
        %v923 = vsub.s32 %v920, %v922
        %v924 = vrot.slane %v910, %v923
        %v925 = vcombine.high %v917, %v917
        %v926 = vcombine.high %v924, %v924
        %v927 = vcombine.high %v849, %v849
        %v929 = vunpack.c.l.s4 1983009808
        %v930 = vunpack.c.0.s8 %v929
        %v931 = vlaneseq
        %v932 = vshrl.u32 %v931, 7
        %v933 = vsub.s32 %v930, %v932
        %v934 = vrot.slane %v849, %v933
        %v936 = vunpack.c.l.s4 1983009808
        %v937 = vunpack.c.0.s8 %v936
        %v938 = vlaneseq
        %v939 = vshrl.u32 %v938, 7
        %v940 = vsub.s32 %v937, %v939
        %v941 = vrot.slane %v927, %v940
        %v942 = vcombine.high %v934, %v934
        %v943 = vcombine.high %v941, %v941
        %v944 = vcombine.high %v850, %v850
        %v946 = vunpack.c.l.s4 1983009808
        %v947 = vunpack.c.0.s8 %v946
        %v948 = vlaneseq
        %v949 = vshrl.u32 %v948, 7
        %v950 = vsub.s32 %v947, %v949
        %v951 = vrot.slane %v850, %v950
        %v953 = vunpack.c.l.s4 1983009808
        %v954 = vunpack.c.0.s8 %v953
        %v955 = vlaneseq
        %v956 = vshrl.u32 %v955, 7
        %v957 = vsub.s32 %v954, %v956
        %v958 = vrot.slane %v944, %v957
        %v959 = vcombine.high %v951, %v951
        %v960 = vcombine.high %v958, %v958
        %v961 = vcombine.high %v851, %v851
        %v963 = vunpack.c.l.s4 1983009808
        %v964 = vunpack.c.0.s8 %v963
        %v965 = vlaneseq
        %v966 = vshrl.u32 %v965, 7
        %v967 = vsub.s32 %v964, %v966
        %v968 = vrot.slane %v851, %v967
        %v970 = vunpack.c.l.s4 1983009808
        %v971 = vunpack.c.0.s8 %v970
        %v972 = vlaneseq
        %v973 = vshrl.u32 %v972, 7
        %v974 = vsub.s32 %v971, %v973
        %v975 = vrot.slane %v961, %v974
        %v976 = vcombine.high %v968, %v968
        %v977 = vcombine.high %v975, %v975
        %v978 = vcombine.high %v852, %v852
        %v980 = vunpack.c.l.s4 1983009808
        %v981 = vunpack.c.0.s8 %v980
        %v982 = vlaneseq
        %v983 = vshrl.u32 %v982, 7
        %v984 = vsub.s32 %v981, %v983
        %v985 = vrot.slane %v852, %v984
        %v987 = vunpack.c.l.s4 1983009808
        %v988 = vunpack.c.0.s8 %v987
        %v989 = vlaneseq
        %v990 = vshrl.u32 %v989, 7
        %v991 = vsub.s32 %v988, %v990
        %v992 = vrot.slane %v978, %v991
        %v993 = vcombine.high %v985, %v985
        %v994 = vcombine.high %v992, %v992
        %v995 = vcombine.high %v853, %v853
        %v997 = vunpack.c.l.s4 1983009808
        %v998 = vunpack.c.0.s8 %v997
        %v999 = vlaneseq
        %v1000 = vshrl.u32 %v999, 7
        %v1001 = vsub.s32 %v998, %v1000
        %v1002 = vrot.slane %v853, %v1001
        %v1004 = vunpack.c.l.s4 1983009808
        %v1005 = vunpack.c.0.s8 %v1004
        %v1006 = vlaneseq
        %v1007 = vshrl.u32 %v1006, 7
        %v1008 = vsub.s32 %v1005, %v1007
        %v1009 = vrot.slane %v995, %v1008
        %v1010 = vcombine.high %v1002, %v1002
        %v1011 = vcombine.high %v1009, %v1009
        %v1012 = vcombine.low %v876, %v884
        %v1013 = vcombine.low %v883, %v885
        %v1015 = vunpack.c.l.s4 1983009808
        %v1016 = vunpack.c.0.s8 %v1015
        %v1017 = vlaneseq
        %v1018 = vshrl.u32 %v1017, 7
        %v1019 = vsub.s32 %v1016, %v1018
        %v1020 = vrot.slane %v1012, %v1019
        %v1022 = vunpack.c.l.s4 1983009808
        %v1023 = vunpack.c.0.s8 %v1022
        %v1024 = vlaneseq
        %v1025 = vshrl.u32 %v1024, 7
        %v1026 = vsub.s32 %v1023, %v1025
        %v1027 = vrot.slane %v1013, %v1026
        %v1028 = vcombine.low %v1020, %v1027
        %v1029 = vcombine.low %v892, %v900
        %v1030 = vcombine.low %v908, %v907
        %v1032 = vunpack.c.l.s4 1983009808
        %v1033 = vunpack.c.0.s8 %v1032
        %v1034 = vlaneseq
        %v1035 = vshrl.u32 %v1034, 7
        %v1036 = vsub.s32 %v1033, %v1035
        %v1037 = vrot.slane %v1029, %v1036
        %v1039 = vunpack.c.l.s4 1983009808
        %v1040 = vunpack.c.0.s8 %v1039
        %v1041 = vlaneseq
        %v1042 = vshrl.u32 %v1041, 7
        %v1043 = vsub.s32 %v1040, %v1042
        %v1044 = vrot.slane %v1030, %v1043
        %v1045 = vcombine.low %v1037, %v1044
        %v1046 = vcombine.low %v909, %v892
        %v1047 = vcombine.low %v917, %v925
        %v1049 = vunpack.c.l.s4 1983009808
        %v1050 = vunpack.c.0.s8 %v1049
        %v1051 = vlaneseq
        %v1052 = vshrl.u32 %v1051, 7
        %v1053 = vsub.s32 %v1050, %v1052
        %v1054 = vrot.slane %v1046, %v1053
        %v1056 = vunpack.c.l.s4 1983009808
        %v1057 = vunpack.c.0.s8 %v1056
        %v1058 = vlaneseq
        %v1059 = vshrl.u32 %v1058, 7
        %v1060 = vsub.s32 %v1057, %v1059
        %v1061 = vrot.slane %v1047, %v1060
        %v1062 = vcombine.low %v1054, %v1061
        %v1063 = vcombine.low %v924, %v926
        %v1064 = vcombine.low %v892, %v934
        %v1066 = vunpack.c.l.s4 1983009808
        %v1067 = vunpack.c.0.s8 %v1066
        %v1068 = vlaneseq
        %v1069 = vshrl.u32 %v1068, 7
        %v1070 = vsub.s32 %v1067, %v1069
        %v1071 = vrot.slane %v1063, %v1070
        %v1073 = vunpack.c.l.s4 1983009808
        %v1074 = vunpack.c.0.s8 %v1073
        %v1075 = vlaneseq
        %v1076 = vshrl.u32 %v1075, 7
        %v1077 = vsub.s32 %v1074, %v1076
        %v1078 = vrot.slane %v1064, %v1077
        %v1079 = vcombine.low %v1071, %v1078
        %v1080 = vcombine.low %v942, %v941
        %v1081 = vcombine.low %v943, %v892
        %v1083 = vunpack.c.l.s4 1983009808
        %v1084 = vunpack.c.0.s8 %v1083
        %v1085 = vlaneseq
        %v1086 = vshrl.u32 %v1085, 7
        %v1087 = vsub.s32 %v1084, %v1086
        %v1088 = vrot.slane %v1080, %v1087
        %v1090 = vunpack.c.l.s4 1983009808
        %v1091 = vunpack.c.0.s8 %v1090
        %v1092 = vlaneseq
        %v1093 = vshrl.u32 %v1092, 7
        %v1094 = vsub.s32 %v1091, %v1093
        %v1095 = vrot.slane %v1081, %v1094
        %v1096 = vcombine.low %v1088, %v1095
        %v1097 = vcombine.low %v951, %v959
        %v1098 = vcombine.low %v958, %v960
        %v1100 = vunpack.c.l.s4 1983009808
        %v1101 = vunpack.c.0.s8 %v1100
        %v1102 = vlaneseq
        %v1103 = vshrl.u32 %v1102, 7
        %v1104 = vsub.s32 %v1101, %v1103
        %v1105 = vrot.slane %v1097, %v1104
        %v1107 = vunpack.c.l.s4 1983009808
        %v1108 = vunpack.c.0.s8 %v1107
        %v1109 = vlaneseq
        %v1110 = vshrl.u32 %v1109, 7
        %v1111 = vsub.s32 %v1108, %v1110
        %v1112 = vrot.slane %v1098, %v1111
        %v1113 = vcombine.low %v1105, %v1112
        %v1114 = vcombine.low %v892, %v968
        %v1115 = vcombine.low %v976, %v975
        %v1117 = vunpack.c.l.s4 1983009808
        %v1118 = vunpack.c.0.s8 %v1117
        %v1119 = vlaneseq
        %v1120 = vshrl.u32 %v1119, 7
        %v1121 = vsub.s32 %v1118, %v1120
        %v1122 = vrot.slane %v1114, %v1121
        %v1124 = vunpack.c.l.s4 1983009808
        %v1125 = vunpack.c.0.s8 %v1124
        %v1126 = vlaneseq
        %v1127 = vshrl.u32 %v1126, 7
        %v1128 = vsub.s32 %v1125, %v1127
        %v1129 = vrot.slane %v1115, %v1128
        %v1130 = vcombine.low %v1122, %v1129
        %v1131 = vcombine.low %v977, %v892
        %v1132 = vcombine.low %v985, %v993
        %v1134 = vunpack.c.l.s4 1983009808
        %v1135 = vunpack.c.0.s8 %v1134
        %v1136 = vlaneseq
        %v1137 = vshrl.u32 %v1136, 7
        %v1138 = vsub.s32 %v1135, %v1137
        %v1139 = vrot.slane %v1131, %v1138
        %v1141 = vunpack.c.l.s4 1983009808
        %v1142 = vunpack.c.0.s8 %v1141
        %v1143 = vlaneseq
        %v1144 = vshrl.u32 %v1143, 7
        %v1145 = vsub.s32 %v1142, %v1144
        %v1146 = vrot.slane %v1132, %v1145
        %v1147 = vcombine.low %v1139, %v1146
        %v1148 = vcombine.low %v992, %v994
        %v1149 = vcombine.low %v892, %v1002
        %v1151 = vunpack.c.l.s4 1983009808
        %v1152 = vunpack.c.0.s8 %v1151
        %v1153 = vlaneseq
        %v1154 = vshrl.u32 %v1153, 7
        %v1155 = vsub.s32 %v1152, %v1154
        %v1156 = vrot.slane %v1148, %v1155
        %v1158 = vunpack.c.l.s4 1983009808
        %v1159 = vunpack.c.0.s8 %v1158
        %v1160 = vlaneseq
        %v1161 = vshrl.u32 %v1160, 7
        %v1162 = vsub.s32 %v1159, %v1161
        %v1163 = vrot.slane %v1149, %v1162
        %v1164 = vcombine.low %v1156, %v1163
        %v1165 = vcombine.low %v1010, %v1009
        %v1166 = vcombine.low %v1011, %v892
        %v1168 = vunpack.c.l.s4 1983009808
        %v1169 = vunpack.c.0.s8 %v1168
        %v1170 = vlaneseq
        %v1171 = vshrl.u32 %v1170, 7
        %v1172 = vsub.s32 %v1169, %v1171
        %v1173 = vrot.slane %v1165, %v1172
        %v1175 = vunpack.c.l.s4 1983009808
        %v1176 = vunpack.c.0.s8 %v1175
        %v1177 = vlaneseq
        %v1178 = vshrl.u32 %v1177, 7
        %v1179 = vsub.s32 %v1176, %v1178
        %v1180 = vrot.slane %v1166, %v1179
        %v1181 = vcombine.low %v1173, %v1180
        %1192 = vst.msk [vmem:[#allocation2 + $0xb] sm:$0xff] %vm604, %v1028
        %1193 = vst.msk [vmem:[#allocation2 + $0x13] sm:$0xff] %vm604, %v1045
        %1194 = vst.msk [vmem:[#allocation2 + $0x1b] sm:$0xff] %vm604, %v1062
        %1195 = vst.msk [vmem:[#allocation2 + $0x23] sm:$0xff] %vm604, %v1079
        %1196 = vst.msk [vmem:[#allocation2 + $0x2b] sm:$0xff] %vm604, %v1096
        %1197 = vst.msk [vmem:[#allocation2 + $0x33] sm:$0xff] %vm604, %v1113
        %1198 = vst.msk [vmem:[#allocation2 + $0x3b] sm:$0xff] %vm604, %v1130
        %1199 = vst.msk [vmem:[#allocation2 + $0x43] sm:$0xff] %vm604, %v1147
        %1200 = vst.msk [vmem:[#allocation2 + $0x4b] sm:$0xff] %vm604, %v1164
        %1201 = vst.msk [vmem:[#allocation2 + $0x53] sm:$0xff] %vm604, %v1181
        %v1202 = vld [vmem:[#allocation2] sm:$0xff]
        %v1203 = vld [vmem:[#allocation2 + $0x8] sm:$0xff]
        %v1204 = vld [vmem:[#allocation2 + $0x10] sm:$0xff]
        %v1205 = vld [vmem:[#allocation2 + $0x18] sm:$0xff]
        %v1206 = vld [vmem:[#allocation2 + $0x20] sm:$0xff]
        %v1207 = vld [vmem:[#allocation2 + $0x28] sm:$0xff]
        %v1208 = vld [vmem:[#allocation2 + $0x30] sm:$0xff]
        %v1209 = vld [vmem:[#allocation2 + $0x38] sm:$0xff]
        %v1210 = vld [vmem:[#allocation2 + $0x40] sm:$0xff]
        %v1211 = vld [vmem:[#allocation2 + $0x48] sm:$0xff]
        %v1212 = vld [vmem:[#allocation2 + $0x1] sm:$0xff]
        %v1213 = vld [vmem:[#allocation2 + $0x9] sm:$0xff]
        %v1214 = vld [vmem:[#allocation2 + $0x11] sm:$0xff]
        %v1215 = vld [vmem:[#allocation2 + $0x19] sm:$0xff]
        %v1216 = vld [vmem:[#allocation2 + $0x21] sm:$0xff]
        %v1217 = vld [vmem:[#allocation2 + $0x29] sm:$0xff]
        %v1218 = vld [vmem:[#allocation2 + $0x31] sm:$0xff]
        %v1219 = vld [vmem:[#allocation2 + $0x39] sm:$0xff]
        %v1220 = vld [vmem:[#allocation2 + $0x41] sm:$0xff]
        %v1221 = vld [vmem:[#allocation2 + $0x49] sm:$0xff]
        %v1222 = vld [vmem:[#allocation2 + $0x2] sm:$0xff]
        %v1223 = vld [vmem:[#allocation2 + $0xa] sm:$0xff]
        %v1224 = vld [vmem:[#allocation2 + $0x12] sm:$0xff]
        %v1225 = vld [vmem:[#allocation2 + $0x1a] sm:$0xff]
        %v1226 = vld [vmem:[#allocation2 + $0x22] sm:$0xff]
        %v1227 = vld [vmem:[#allocation2 + $0x2a] sm:$0xff]
        %v1228 = vld [vmem:[#allocation2 + $0x32] sm:$0xff]
        %v1229 = vld [vmem:[#allocation2 + $0x3a] sm:$0xff]
        %v1230 = vld [vmem:[#allocation2 + $0x42] sm:$0xff]
        %v1231 = vld [vmem:[#allocation2 + $0x4a] sm:$0xff]
        %v1232 = vld [vmem:[#allocation2 + $0x52] sm:$0xff]
        %v1233 = vld [vmem:[#allocation2 + $0xb] sm:$0xff]
        %v1234 = vld [vmem:[#allocation2 + $0x13] sm:$0xff]
        %v1235 = vld [vmem:[#allocation2 + $0x1b] sm:$0xff]
        %v1236 = vld [vmem:[#allocation2 + $0x23] sm:$0xff]
        %v1237 = vld [vmem:[#allocation2 + $0x2b] sm:$0xff]
        %v1238 = vld [vmem:[#allocation2 + $0x33] sm:$0xff]
        %v1239 = vld [vmem:[#allocation2 + $0x3b] sm:$0xff]
        %v1240 = vld [vmem:[#allocation2 + $0x43] sm:$0xff]
        %v1241 = vld [vmem:[#allocation2 + $0x4b] sm:$0xff]
        %v1242 = vld [vmem:[#allocation2 + $0x53] sm:$0xff]
        %v1243 = vld [vmem:[#allocation2 + $0xc] sm:$0xff]
        %v1244 = vld [vmem:[#allocation2 + $0x14] sm:$0xff]
        %v1245 = vld [vmem:[#allocation2 + $0x1c] sm:$0xff]
        %v1246 = vld [vmem:[#allocation2 + $0x24] sm:$0xff]
        %v1247 = vld [vmem:[#allocation2 + $0x2c] sm:$0xff]
        %v1248 = vld [vmem:[#allocation2 + $0x34] sm:$0xff]
        %v1249 = vld [vmem:[#allocation2 + $0x3c] sm:$0xff]
        %v1250 = vld [vmem:[#allocation2 + $0x44] sm:$0xff]
        %v1251 = vld [vmem:[#allocation2 + $0x4c] sm:$0xff]
        %v1252 = vld [vmem:[#allocation2 + $0x54] sm:$0xff]
        %v1253 = vld [vmem:[#allocation2 + $0x5c] sm:$0xff]
        %v1254 = vld [vmem:[#allocation2 + $0x15] sm:$0xff]
        %v1255 = vld [vmem:[#allocation2 + $0x1d] sm:$0xff]
        %v1256 = vld [vmem:[#allocation2 + $0x25] sm:$0xff]
        %v1257 = vld [vmem:[#allocation2 + $0x2d] sm:$0xff]
        %v1258 = vld [vmem:[#allocation2 + $0x35] sm:$0xff]
        %v1259 = vld [vmem:[#allocation2 + $0x3d] sm:$0xff]
        %v1260 = vld [vmem:[#allocation2 + $0x45] sm:$0xff]
        %v1261 = vld [vmem:[#allocation2 + $0x4d] sm:$0xff]
        %v1262 = vld [vmem:[#allocation2 + $0x55] sm:$0xff]
        %v1263 = vld [vmem:[#allocation2 + $0x5d] sm:$0xff]
        %v1264 = vld [vmem:[#allocation2 + $0x16] sm:$0xff]
        %v1265 = vld [vmem:[#allocation2 + $0x1e] sm:$0xff]
        %v1266 = vld [vmem:[#allocation2 + $0x26] sm:$0xff]
        %v1267 = vld [vmem:[#allocation2 + $0x2e] sm:$0xff]
        %v1268 = vld [vmem:[#allocation2 + $0x36] sm:$0xff]
        %v1269 = vld [vmem:[#allocation2 + $0x3e] sm:$0xff]
        %v1270 = vld [vmem:[#allocation2 + $0x46] sm:$0xff]
        %v1271 = vld [vmem:[#allocation2 + $0x4e] sm:$0xff]
        %v1272 = vld [vmem:[#allocation2 + $0x56] sm:$0xff]
        %v1273 = vld [vmem:[#allocation2 + $0x5e] sm:$0xff]
        %1284 = vrot.lane.b32.xlu0 %v1212, 32
        %v1285 = vpop.permute.xlu0 %1284
        %1286 = vrot.lane.b32.xlu0 %v1213, 32
        %v1287 = vpop.permute.xlu0 %1286
        %1288 = vrot.lane.b32.xlu0 %v1214, 32
        %v1289 = vpop.permute.xlu0 %1288
        %1290 = vrot.lane.b32.xlu0 %v1215, 32
        %v1291 = vpop.permute.xlu0 %1290
        %1292 = vrot.lane.b32.xlu0 %v1216, 32
        %v1293 = vpop.permute.xlu0 %1292
        %1294 = vrot.lane.b32.xlu0 %v1217, 32
        %v1295 = vpop.permute.xlu0 %1294
        %1296 = vrot.lane.b32.xlu0 %v1218, 32
        %v1297 = vpop.permute.xlu0 %1296
        %1298 = vrot.lane.b32.xlu0 %v1219, 32
        %v1299 = vpop.permute.xlu0 %1298
        %1300 = vrot.lane.b32.xlu0 %v1220, 32
        %v1301 = vpop.permute.xlu0 %1300
        %1302 = vrot.lane.b32.xlu0 %v1221, 32
        %v1303 = vpop.permute.xlu0 %1302
        %1324 = vrot.lane.b32.xlu0 %v1222, 64
        %v1325 = vpop.permute.xlu0 %1324
        %1326 = vrot.lane.b32.xlu0 %v1223, 64
        %v1327 = vpop.permute.xlu0 %1326
        %1328 = vrot.lane.b32.xlu0 %v1224, 64
        %v1329 = vpop.permute.xlu0 %1328
        %1330 = vrot.lane.b32.xlu0 %v1225, 64
        %v1331 = vpop.permute.xlu0 %1330
        %1332 = vrot.lane.b32.xlu0 %v1226, 64
        %v1333 = vpop.permute.xlu0 %1332
        %1334 = vrot.lane.b32.xlu0 %v1227, 64
        %v1335 = vpop.permute.xlu0 %1334
        %1336 = vrot.lane.b32.xlu0 %v1228, 64
        %v1337 = vpop.permute.xlu0 %1336
        %1338 = vrot.lane.b32.xlu0 %v1229, 64
        %v1339 = vpop.permute.xlu0 %1338
        %1340 = vrot.lane.b32.xlu0 %v1230, 64
        %v1341 = vpop.permute.xlu0 %1340
        %1342 = vrot.lane.b32.xlu0 %v1231, 64
        %v1343 = vpop.permute.xlu0 %1342
        %1355 = vrot.lane.b32.xlu0 %v1223, 96
        %v1356 = vpop.permute.xlu0 %1355
        %1357 = vrot.lane.b32.xlu0 %v1224, 96
        %v1358 = vpop.permute.xlu0 %1357
        %1359 = vrot.lane.b32.xlu0 %v1225, 96
        %v1360 = vpop.permute.xlu0 %1359
        %1361 = vrot.lane.b32.xlu0 %v1226, 96
        %v1362 = vpop.permute.xlu0 %1361
        %1363 = vrot.lane.b32.xlu0 %v1227, 96
        %v1364 = vpop.permute.xlu0 %1363
        %1365 = vrot.lane.b32.xlu0 %v1228, 96
        %v1366 = vpop.permute.xlu0 %1365
        %1367 = vrot.lane.b32.xlu0 %v1229, 96
        %v1368 = vpop.permute.xlu0 %1367
        %1369 = vrot.lane.b32.xlu0 %v1230, 96
        %v1370 = vpop.permute.xlu0 %1369
        %1371 = vrot.lane.b32.xlu0 %v1231, 96
        %v1372 = vpop.permute.xlu0 %1371
        %1373 = vrot.lane.b32.xlu0 %v1232, 96
        %v1374 = vpop.permute.xlu0 %1373
        %1395 = vrot.lane.b32.xlu0 %v1243, 32
        %v1396 = vpop.permute.xlu0 %1395
        %1397 = vrot.lane.b32.xlu0 %v1244, 32
        %v1398 = vpop.permute.xlu0 %1397
        %1399 = vrot.lane.b32.xlu0 %v1245, 32
        %v1400 = vpop.permute.xlu0 %1399
        %1401 = vrot.lane.b32.xlu0 %v1246, 32
        %v1402 = vpop.permute.xlu0 %1401
        %1403 = vrot.lane.b32.xlu0 %v1247, 32
        %v1404 = vpop.permute.xlu0 %1403
        %1405 = vrot.lane.b32.xlu0 %v1248, 32
        %v1406 = vpop.permute.xlu0 %1405
        %1407 = vrot.lane.b32.xlu0 %v1249, 32
        %v1408 = vpop.permute.xlu0 %1407
        %1409 = vrot.lane.b32.xlu0 %v1250, 32
        %v1410 = vpop.permute.xlu0 %1409
        %1411 = vrot.lane.b32.xlu0 %v1251, 32
        %v1412 = vpop.permute.xlu0 %1411
        %1413 = vrot.lane.b32.xlu0 %v1252, 32
        %v1414 = vpop.permute.xlu0 %1413
        %1426 = vrot.lane.b32.xlu0 %v1244, 64
        %v1427 = vpop.permute.xlu0 %1426
        %1428 = vrot.lane.b32.xlu0 %v1245, 64
        %v1429 = vpop.permute.xlu0 %1428
        %1430 = vrot.lane.b32.xlu0 %v1246, 64
        %v1431 = vpop.permute.xlu0 %1430
        %1432 = vrot.lane.b32.xlu0 %v1247, 64
        %v1433 = vpop.permute.xlu0 %1432
        %1434 = vrot.lane.b32.xlu0 %v1248, 64
        %v1435 = vpop.permute.xlu0 %1434
        %1436 = vrot.lane.b32.xlu0 %v1249, 64
        %v1437 = vpop.permute.xlu0 %1436
        %1438 = vrot.lane.b32.xlu0 %v1250, 64
        %v1439 = vpop.permute.xlu0 %1438
        %1440 = vrot.lane.b32.xlu0 %v1251, 64
        %v1441 = vpop.permute.xlu0 %1440
        %1442 = vrot.lane.b32.xlu0 %v1252, 64
        %v1443 = vpop.permute.xlu0 %1442
        %1444 = vrot.lane.b32.xlu0 %v1253, 64
        %v1445 = vpop.permute.xlu0 %1444
        %1466 = vrot.lane.b32.xlu0 %v1254, 96
        %v1467 = vpop.permute.xlu0 %1466
        %1468 = vrot.lane.b32.xlu0 %v1255, 96
        %v1469 = vpop.permute.xlu0 %1468
        %1470 = vrot.lane.b32.xlu0 %v1256, 96
        %v1471 = vpop.permute.xlu0 %1470
        %1472 = vrot.lane.b32.xlu0 %v1257, 96
        %v1473 = vpop.permute.xlu0 %1472
        %1474 = vrot.lane.b32.xlu0 %v1258, 96
        %v1475 = vpop.permute.xlu0 %1474
        %1476 = vrot.lane.b32.xlu0 %v1259, 96
        %v1477 = vpop.permute.xlu0 %1476
        %1478 = vrot.lane.b32.xlu0 %v1260, 96
        %v1479 = vpop.permute.xlu0 %1478
        %1480 = vrot.lane.b32.xlu0 %v1261, 96
        %v1481 = vpop.permute.xlu0 %1480
        %1482 = vrot.lane.b32.xlu0 %v1262, 96
        %v1483 = vpop.permute.xlu0 %1482
        %1484 = vrot.lane.b32.xlu0 %v1263, 96
        %v1485 = vpop.permute.xlu0 %1484
        %v1496 = vsel %vm604, %v1202, %v1285
        %v1497 = vsel %vm604, %v1203, %v1287
        %v1498 = vsel %vm604, %v1204, %v1289
        %v1499 = vsel %vm604, %v1205, %v1291
        %v1500 = vsel %vm604, %v1206, %v1293
        %v1501 = vsel %vm604, %v1207, %v1295
        %v1502 = vsel %vm604, %v1208, %v1297
        %v1503 = vsel %vm604, %v1209, %v1299
        %v1504 = vsel %vm604, %v1210, %v1301
        %v1505 = vsel %vm604, %v1211, %v1303
        %v1506 = vsel %vm448, %v1496, %v1325
        %v1507 = vsel %vm448, %v1497, %v1327
        %v1508 = vsel %vm448, %v1498, %v1329
        %v1509 = vsel %vm448, %v1499, %v1331
        %v1510 = vsel %vm448, %v1500, %v1333
        %v1511 = vsel %vm448, %v1501, %v1335
        %v1512 = vsel %vm448, %v1502, %v1337
        %v1513 = vsel %vm448, %v1503, %v1339
        %v1514 = vsel %vm448, %v1504, %v1341
        %v1515 = vsel %vm448, %v1505, %v1343
        %vm1516 = vcmask 785408
        %v1517 = vsel %vm1516, %v1506, %v1356
        %v1518 = vsel %vm1516, %v1507, %v1358
        %v1519 = vsel %vm1516, %v1508, %v1360
        %v1520 = vsel %vm1516, %v1509, %v1362
        %v1521 = vsel %vm1516, %v1510, %v1364
        %v1522 = vsel %vm1516, %v1511, %v1366
        %v1523 = vsel %vm1516, %v1512, %v1368
        %v1524 = vsel %vm1516, %v1513, %v1370
        %v1525 = vsel %vm1516, %v1514, %v1372
        %v1526 = vsel %vm1516, %v1515, %v1374
        %v1527 = vsel %vm604, %v1233, %v1396
        %v1528 = vsel %vm604, %v1234, %v1398
        %v1529 = vsel %vm604, %v1235, %v1400
        %v1530 = vsel %vm604, %v1236, %v1402
        %v1531 = vsel %vm604, %v1237, %v1404
        %v1532 = vsel %vm604, %v1238, %v1406
        %v1533 = vsel %vm604, %v1239, %v1408
        %v1534 = vsel %vm604, %v1240, %v1410
        %v1535 = vsel %vm604, %v1241, %v1412
        %v1536 = vsel %vm604, %v1242, %v1414
        %v1537 = vsel %vm448, %v1527, %v1427
        %v1538 = vsel %vm448, %v1528, %v1429
        %v1539 = vsel %vm448, %v1529, %v1431
        %v1540 = vsel %vm448, %v1530, %v1433
        %v1541 = vsel %vm448, %v1531, %v1435
        %v1542 = vsel %vm448, %v1532, %v1437
        %v1543 = vsel %vm448, %v1533, %v1439
        %v1544 = vsel %vm448, %v1534, %v1441
        %v1545 = vsel %vm448, %v1535, %v1443
        %v1546 = vsel %vm448, %v1536, %v1445
        %v1547 = vsel %vm1516, %v1537, %v1467
        %v1548 = vsel %vm1516, %v1538, %v1469
        %v1549 = vsel %vm1516, %v1539, %v1471
        %v1550 = vsel %vm1516, %v1540, %v1473
        %v1551 = vsel %vm1516, %v1541, %v1475
        %v1552 = vsel %vm1516, %v1542, %v1477
        %v1553 = vsel %vm1516, %v1543, %v1479
        %v1554 = vsel %vm1516, %v1544, %v1481
        %v1555 = vsel %vm1516, %v1545, %v1483
        %v1556 = vsel %vm1516, %v1546, %v1485
        %v1557 = vpack.c.bf16 %v1518, %v1517
        %v1558 = vpack.c.bf16 %v1548, %v1547
        %v1559 = vpack.c.bf16 %v1265, %v1264
        %v1560 = vpack.c.bf16 %v1520, %v1519
        %v1561 = vpack.c.bf16 %v1550, %v1549
        %v1562 = vpack.c.bf16 %v1267, %v1266
        %v1563 = vpack.c.bf16 %v1522, %v1521
        %v1564 = vpack.c.bf16 %v1552, %v1551
        %v1565 = vpack.c.bf16 %v1269, %v1268
        %v1566 = vpack.c.bf16 %v1524, %v1523
        %v1567 = vpack.c.bf16 %v1554, %v1553
        %v1568 = vpack.c.bf16 %v1271, %v1270
        %v1569 = vpack.c.bf16 %v1526, %v1525
        %v1570 = vpack.c.bf16 %v1556, %v1555
        %v1571 = vpack.c.bf16 %v1273, %v1272
        %v1572 = vld [vmem:[%s4] sm:$0xf]
        %v1573 = vld [vmem:[%s4 + $0x4] sm:$0xf]
        %v1574 = vld [vmem:[%s4 + $0x8] sm:$0xf]
        %v1575 = vld [vmem:[%s4 + $0xc] sm:$0xf]
        %v1576 = vld [vmem:[%s4 + $0x10] sm:$0xf]
        %v1577 = vld [vmem:[%s4 + $0x14] sm:$0xf]
        %v1578 = vld [vmem:[%s4 + $0x18] sm:$0xf]
        %v1579 = vld [vmem:[%s4 + $0x1c] sm:$0xf]
        %v1580 = vld [vmem:[%s4 + $0x20] sm:$0xf]
        %v1581 = vld [vmem:[%s4 + $0x24] sm:$0xf]
        %v1582 = vld [vmem:[%s4 + $0x28] sm:$0xf]
        %v1583 = vld [vmem:[%s4 + $0x2c] sm:$0xf]
        %v1584 = vld [vmem:[%s4 + $0x30] sm:$0xf]
        %v1585 = vld [vmem:[%s4 + $0x34] sm:$0xf]
        %v1586 = vld [vmem:[%s4 + $0x38] sm:$0xf]
        %v1587 = vld [vmem:[%s4 + $0x3c] sm:$0xf]
        %v1588 = vld [vmem:[%s4 + $0x40] sm:$0xf]
        %v1589 = vld [vmem:[%s4 + $0x44] sm:$0xf]
        %v1590 = vld [vmem:[%s4 + $0x48] sm:$0xf]
        %v1591 = vld [vmem:[%s4 + $0x4c] sm:$0xf]
        %v1592 = vld [vmem:[%s4 + $0x50] sm:$0xf]
        %v1593 = vld [vmem:[%s4 + $0x54] sm:$0xf]
        %v1594 = vld [vmem:[%s4 + $0x58] sm:$0xf]
        %v1595 = vld [vmem:[%s4 + $0x5c] sm:$0xf]
        %v1596 = vld [vmem:[%s4 + $0x60] sm:$0xf]
        %v1597 = vld [vmem:[%s4 + $0x64] sm:$0xf]
        %v1598 = vld [vmem:[%s4 + $0x68] sm:$0xf]
        %v1599 = vld [vmem:[%s4 + $0x6c] sm:$0xf]
        %v1600 = vld [vmem:[%s4 + $0x70] sm:$0xf]
        %v1601 = vld [vmem:[%s4 + $0x74] sm:$0xf]
        %v1602 = vld [vmem:[%s4 + $0x78] sm:$0xf]
        %v1603 = vld [vmem:[%s4 + $0x7c] sm:$0xf]
        %v1604 = vld [vmem:[%s4 + $0x80] sm:$0xf]
        %v1605 = vld [vmem:[%s4 + $0x84] sm:$0xf]
        %v1606 = vld [vmem:[%s4 + $0x88] sm:$0xf]
        %v1607 = vld [vmem:[%s4 + $0x8c] sm:$0xf]
        %v1608 = vld [vmem:[%s5] sm:$0x1]
        %v1610 = vlaneseq
        %v1611 = vshrl.u32 %v1610, 7
        %v1612 = vsub.s32 0, %v1611
        %v1613 = vrot.slane %v1608, %v1612
        %v1651 = vunpack.c.l.b16 %v1572
        %v1652 = vunpack.c.l.b16 %v1573
        %v1653 = vunpack.c.l.b16 %v1574
        %v1654 = vunpack.c.l.b16 %v1575
        %v1655 = vunpack.c.l.b16 %v1576
        %v1656 = vunpack.c.l.b16 %v1577
        %v1657 = vunpack.c.l.b16 %v1578
        %v1658 = vunpack.c.l.b16 %v1579
        %v1659 = vunpack.c.l.b16 %v1580
        %v1660 = vunpack.c.l.b16 %v1581
        %v1661 = vunpack.c.l.b16 %v1582
        %v1662 = vunpack.c.l.b16 %v1583
        %v1663 = vunpack.c.l.b16 %v1584
        %v1664 = vunpack.c.l.b16 %v1585
        %v1665 = vunpack.c.l.b16 %v1586
        %v1666 = vunpack.c.l.b16 %v1587
        %v1667 = vunpack.c.l.b16 %v1588
        %v1668 = vunpack.c.l.b16 %v1589
        %v1669 = vunpack.c.l.b16 %v1590
        %v1670 = vunpack.c.l.b16 %v1591
        %v1671 = vunpack.c.l.b16 %v1592
        %v1672 = vunpack.c.l.b16 %v1593
        %v1673 = vunpack.c.l.b16 %v1594
        %v1674 = vunpack.c.l.b16 %v1595
        %v1675 = vunpack.c.l.b16 %v1596
        %v1676 = vunpack.c.l.b16 %v1597
        %v1677 = vunpack.c.l.b16 %v1598
        %v1678 = vunpack.c.l.b16 %v1599
        %v1679 = vunpack.c.l.b16 %v1600
        %v1680 = vunpack.c.l.b16 %v1601
        %v1681 = vunpack.c.l.b16 %v1602
        %v1682 = vunpack.c.l.b16 %v1603
        %v1683 = vunpack.c.l.b16 %v1604
        %v1684 = vunpack.c.l.b16 %v1605
        %v1685 = vunpack.c.l.b16 %v1606
        %v1686 = vunpack.c.l.b16 %v1607
        %v1687 = vpack.c.b16 %v1652, %v1651
        %v1688 = vpack.c.b16 %v1654, %v1653
        %v1689 = vpack.c.b16 %v1656, %v1655
        %v1690 = vpack.c.b16 %v1658, %v1657
        %v1691 = vpack.c.b16 %v1660, %v1659
        %v1692 = vpack.c.b16 %v1662, %v1661
        %v1693 = vpack.c.b16 %v1664, %v1663
        %v1694 = vpack.c.b16 %v1666, %v1665
        %v1695 = vpack.c.b16 %v1668, %v1667
        %v1696 = vpack.c.b16 %v1670, %v1669
        %v1697 = vpack.c.b16 %v1672, %v1671
        %v1698 = vpack.c.b16 %v1674, %v1673
        %v1699 = vpack.c.b16 %v1676, %v1675
        %v1700 = vpack.c.b16 %v1678, %v1677
        %v1701 = vpack.c.b16 %v1680, %v1679
        %v1702 = vpack.c.b16 %v1682, %v1681
        %v1703 = vpack.c.b16 %v1684, %v1683
        %v1704 = vpack.c.b16 %v1686, %v1685
        %v1724 = vsel %vm604, %v1559, 0
        %v1727 = vsel %vm604, %v1562, 0
        %v1730 = vsel %vm604, %v1565, 0
        %v1733 = vsel %vm604, %v1568, 0
        %v1736 = vsel %vm604, %v1571, 0
        %1738 = vmatprep.subr.bf16.mxu0 0
        %1739 = vmatpush1.bf16.msra.mxu0 %v1687
        %1740 = vmatprep.subr.bf16.mxu0 0
        %1741 = vmatpush1.bf16.msra.mxu0 %v1688
        %1742 = vmatprep.subr.bf16.mxu0 0
        %1743 = vmatpush1.bf16.msra.mxu0 %v1689
        %1744 = vmatprep.subr.bf16.mxu0 0
        %1745 = vmatpush1.bf16.msra.mxu0 %v1690
        %1746 = vmatprep.subr.bf16.mxu0 0
        %1747 = vmatpush1.bf16.msra.mxu0 %v1691
        %1748 = vmatprep.subr.bf16.mxu0 0
        %1749 = vmatpush1.bf16.msra.mxu0 %v1692
        %1750 = vmatprep.subr.bf16.mxu0 0
        %1751 = vmatpush1.bf16.msra.mxu0 %v1693
        %1752 = vmatprep.subr.bf16.mxu0 0
        %1753 = vmatpush1.bf16.msra.mxu0 %v1694
        %1754 = vmatprep.subr.bf16.mxu0 0
        %1755 = vmatpush1.bf16.msra.mxu0 %v1695
        %1756 = vmatprep.subr.bf16.mxu0 0
        %1757 = vmatpush1.bf16.msra.mxu0 %v1696
        %1758 = vmatprep.subr.bf16.mxu0 0
        %1759 = vmatpush1.bf16.msra.mxu0 %v1697
        %1760 = vmatprep.subr.bf16.mxu0 0
        %1761 = vmatpush1.bf16.msra.mxu0 %v1698
        %1762 = vmatprep.subr.bf16.mxu0 0
        %1763 = vmatpush1.bf16.msra.mxu0 %v1699
        %1764 = vmatprep.subr.bf16.mxu0 0
        %1765 = vmatpush1.bf16.msra.mxu0 %v1700
        %1766 = vmatprep.subr.bf16.mxu0 0
        %1767 = vmatpush1.bf16.msra.mxu0 %v1701
        %1768 = vmatprep.subr.bf16.mxu0 0
        %1769 = vmatpush1.bf16.msra.mxu0 %v1702
        %1770 = vmatprep.mubr.bf16.mxu0 %v1558
        %1771 = vmatmul.mubr.bf16.gmra.mrb[0].mxu0 %v1557
        %v1772 = vpop.f32.mrb[0].mxu0
        %v1773 = vadd.f32 %v1613, %v1772
        %v1774 = vpop.f32.mrb[0].mxu0
        %v1775 = vpop.f32.mrb[0].mxu0
        %v1776 = vadd.f32 %v1613, %v1775
        %v1777 = vpop.f32.mrb[0].mxu0
        %1778 = vmatprep.mubr.bf16.mxu0 %v1561
        %1779 = vmatmul.mubr.bf16.gmra.mrb[0].mxu0 %v1560
        %v1780 = vpop.f32.mrb[0].mxu0
        %v1781 = vadd.f32 %v1613, %v1780
        %v1782 = vpop.f32.mrb[0].mxu0
        %v1783 = vpop.f32.mrb[0].mxu0
        %v1784 = vadd.f32 %v1613, %v1783
        %v1785 = vpop.f32.mrb[0].mxu0
        %1786 = vmatprep.mubr.bf16.mxu0 %v1564
        %1787 = vmatmul.mubr.bf16.gmra.mrb[0].mxu0 %v1563
        %v1788 = vpop.f32.mrb[0].mxu0
        %v1789 = vadd.f32 %v1613, %v1788
        %v1790 = vpop.f32.mrb[0].mxu0
        %v1791 = vpop.f32.mrb[0].mxu0
        %v1792 = vadd.f32 %v1613, %v1791
        %v1793 = vpop.f32.mrb[0].mxu0
        %1794 = vmatprep.mubr.bf16.mxu0 %v1567
        %1795 = vmatmul.mubr.bf16.gmra.mrb[0].mxu0 %v1566
        %v1796 = vpop.f32.mrb[0].mxu0
        %v1797 = vadd.f32 %v1613, %v1796
        %v1798 = vpop.f32.mrb[0].mxu0
        %v1799 = vpop.f32.mrb[0].mxu0
        %v1800 = vadd.f32 %v1613, %v1799
        %v1801 = vpop.f32.mrb[0].mxu0
        %1802 = vmatprep.mubr.bf16.mxu0 %v1570
        %1803 = vmatmul.mubr.bf16.gmra.mrb[0].mxu0 %v1569
        %v1804 = vpop.f32.mrb[0].mxu0
        %v1805 = vadd.f32 %v1613, %v1804
        %v1806 = vpop.f32.mrb[0].mxu0
        %v1807 = vpop.f32.mrb[0].mxu0
        %v1808 = vadd.f32 %v1613, %v1807
        %v1809 = vpop.f32.mrb[0].mxu0
        %1810 = vdwg.mxu0
        %1811 = vmatprep.subr.bf16.mxu0 0
        %1812 = vmatpush1.bf16.msra.mxu0 %v1703
        %1813 = vmatprep.subr.bf16.mxu0 0
        %1814 = vmatpush1.bf16.msra.mxu0 %v1704
        %1815 = vmatprep.subr.bf16.mxu0 0
        %1816 = vmatpush1.bf16.msra.mxu0 0
        %1817 = vmatprep.subr.bf16.mxu0 0
        %1818 = vmatpush1.bf16.msra.mxu0 0
        %1819 = vmatprep.subr.bf16.mxu0 0
        %1820 = vmatpush1.bf16.msra.mxu0 0
        %1821 = vmatprep.subr.bf16.mxu0 0
        %1822 = vmatpush1.bf16.msra.mxu0 0
        %1823 = vmatprep.subr.bf16.mxu0 0
        %1824 = vmatpush1.bf16.msra.mxu0 0
        %1825 = vmatprep.subr.bf16.mxu0 0
        %1826 = vmatpush1.bf16.msra.mxu0 0
        %1827 = vmatprep.subr.bf16.mxu0 0
        %1828 = vmatpush1.bf16.msra.mxu0 0
        %1829 = vmatprep.subr.bf16.mxu0 0
        %1830 = vmatpush1.bf16.msra.mxu0 0
        %1831 = vmatprep.subr.bf16.mxu0 0
        %1832 = vmatpush1.bf16.msra.mxu0 0
        %1833 = vmatprep.subr.bf16.mxu0 0
        %1834 = vmatpush1.bf16.msra.mxu0 0
        %1835 = vmatprep.subr.bf16.mxu0 0
        %1836 = vmatpush1.bf16.msra.mxu0 0
        %1837 = vmatprep.subr.bf16.mxu0 0
        %1838 = vmatpush1.bf16.msra.mxu0 0
        %1839 = vmatprep.subr.bf16.mxu0 0
        %1840 = vmatpush1.bf16.msra.mxu0 0
        %1841 = vmatprep.subr.bf16.mxu0 0
        %1842 = vmatpush1.bf16.msra.mxu0 0
        %1843 = vmatprep.mubr.bf16.mxu0 0
        %1844 = vmatmul.mubr.bf16.gmra.mrb[0].mxu0 %v1724
        %v1845 = vpop.f32.mrb[0].mxu0
        %v1846 = vadd.f32 %v1773, %v1845
        %v1847 = vpop.f32.mrb[0].mxu0
        %v1848 = vpop.f32.mrb[0].mxu0
        %v1849 = vadd.f32 %v1776, %v1848
        %v1850 = vpop.f32.mrb[0].mxu0
        %1851 = vmatprep.mubr.bf16.mxu0 0
        %1852 = vmatmul.mubr.bf16.gmra.mrb[0].mxu0 %v1727
        %v1853 = vpop.f32.mrb[0].mxu0
        %v1854 = vadd.f32 %v1781, %v1853
        %v1855 = vpop.f32.mrb[0].mxu0
        %v1856 = vpop.f32.mrb[0].mxu0
        %v1857 = vadd.f32 %v1784, %v1856
        %v1858 = vpop.f32.mrb[0].mxu0
        %1859 = vmatprep.mubr.bf16.mxu0 0
        %1860 = vmatmul.mubr.bf16.gmra.mrb[0].mxu0 %v1730
        %v1861 = vpop.f32.mrb[0].mxu0
        %v1862 = vadd.f32 %v1789, %v1861
        %v1863 = vpop.f32.mrb[0].mxu0
        %v1864 = vpop.f32.mrb[0].mxu0
        %v1865 = vadd.f32 %v1792, %v1864
        %v1866 = vpop.f32.mrb[0].mxu0
        %1867 = vmatprep.mubr.bf16.mxu0 0
        %1868 = vmatmul.mubr.bf16.gmra.mrb[0].mxu0 %v1733
        %v1869 = vpop.f32.mrb[0].mxu0
        %v1870 = vadd.f32 %v1797, %v1869
        %v1871 = vpop.f32.mrb[0].mxu0
        %v1872 = vpop.f32.mrb[0].mxu0
        %v1873 = vadd.f32 %v1800, %v1872
        %v1874 = vpop.f32.mrb[0].mxu0
        %1875 = vmatprep.mubr.bf16.mxu0 0
        %1876 = vmatmul.mubr.bf16.gmra.mrb[0].mxu0 %v1736
        %v1877 = vpop.f32.mrb[0].mxu0
        %v1878 = vadd.f32 %v1805, %v1877
        %v1879 = vpop.f32.mrb[0].mxu0
        %v1880 = vpop.f32.mrb[0].mxu0
        %v1881 = vadd.f32 %v1808, %v1880
        %v1882 = vpop.f32.mrb[0].mxu0
        %1883 = vdwg.mxu0
        %v1894 = vcombine.high %v1846, %v1846
        %v1896 = vunpack.c.l.s4 1983009808
        %v1897 = vunpack.c.0.s8 %v1896
        %v1898 = vlaneseq
        %v1899 = vshrl.u32 %v1898, 7
        %v1900 = vsub.s32 %v1897, %v1899
        %v1901 = vrot.slane %v1846, %v1900
        %v1903 = vunpack.c.l.s4 1983009808
        %v1904 = vunpack.c.0.s8 %v1903
        %v1905 = vlaneseq
        %v1906 = vshrl.u32 %v1905, 7
        %v1907 = vsub.s32 %v1904, %v1906
        %v1908 = vrot.slane %v1894, %v1907
        %v1909 = vcombine.high %v1901, %v1901
        %v1910 = vcombine.high %v1908, %v1908
        %v1911 = vcombine.high %v1849, %v1849
        %v1913 = vunpack.c.l.s4 1983009808
        %v1914 = vunpack.c.0.s8 %v1913
        %v1915 = vlaneseq
        %v1916 = vshrl.u32 %v1915, 7
        %v1917 = vsub.s32 %v1914, %v1916
        %v1918 = vrot.slane %v1849, %v1917
        %v1920 = vunpack.c.l.s4 1983009808
        %v1921 = vunpack.c.0.s8 %v1920
        %v1922 = vlaneseq
        %v1923 = vshrl.u32 %v1922, 7
        %v1924 = vsub.s32 %v1921, %v1923
        %v1925 = vrot.slane %v1911, %v1924
        %v1926 = vcombine.high %v1918, %v1918
        %v1927 = vcombine.high %v1925, %v1925
        %v1928 = vcombine.high %v1854, %v1854
        %v1930 = vunpack.c.l.s4 1983009808
        %v1931 = vunpack.c.0.s8 %v1930
        %v1932 = vlaneseq
        %v1933 = vshrl.u32 %v1932, 7
        %v1934 = vsub.s32 %v1931, %v1933
        %v1935 = vrot.slane %v1854, %v1934
        %v1937 = vunpack.c.l.s4 1983009808
        %v1938 = vunpack.c.0.s8 %v1937
        %v1939 = vlaneseq
        %v1940 = vshrl.u32 %v1939, 7
        %v1941 = vsub.s32 %v1938, %v1940
        %v1942 = vrot.slane %v1928, %v1941
        %v1943 = vcombine.high %v1942, %v1942
        %v1944 = vcombine.high %v1857, %v1857
        %v1946 = vunpack.c.l.s4 1983009808
        %v1947 = vunpack.c.0.s8 %v1946
        %v1948 = vlaneseq
        %v1949 = vshrl.u32 %v1948, 7
        %v1950 = vsub.s32 %v1947, %v1949
        %v1951 = vrot.slane %v1857, %v1950
        %v1953 = vunpack.c.l.s4 1983009808
        %v1954 = vunpack.c.0.s8 %v1953
        %v1955 = vlaneseq
        %v1956 = vshrl.u32 %v1955, 7
        %v1957 = vsub.s32 %v1954, %v1956
        %v1958 = vrot.slane %v1944, %v1957
        %v1959 = vcombine.high %v1951, %v1951
        %v1960 = vcombine.high %v1958, %v1958
        %v1961 = vcombine.high %v1862, %v1862
        %v1963 = vunpack.c.l.s4 1983009808
        %v1964 = vunpack.c.0.s8 %v1963
        %v1965 = vlaneseq
        %v1966 = vshrl.u32 %v1965, 7
        %v1967 = vsub.s32 %v1964, %v1966
        %v1968 = vrot.slane %v1862, %v1967
        %v1970 = vunpack.c.l.s4 1983009808
        %v1971 = vunpack.c.0.s8 %v1970
        %v1972 = vlaneseq
        %v1973 = vshrl.u32 %v1972, 7
        %v1974 = vsub.s32 %v1971, %v1973
        %v1975 = vrot.slane %v1961, %v1974
        %v1976 = vcombine.high %v1968, %v1968
        %v1977 = vcombine.high %v1865, %v1865
        %v1979 = vunpack.c.l.s4 1983009808
        %v1980 = vunpack.c.0.s8 %v1979
        %v1981 = vlaneseq
        %v1982 = vshrl.u32 %v1981, 7
        %v1983 = vsub.s32 %v1980, %v1982
        %v1984 = vrot.slane %v1865, %v1983
        %v1986 = vunpack.c.l.s4 1983009808
        %v1987 = vunpack.c.0.s8 %v1986
        %v1988 = vlaneseq
        %v1989 = vshrl.u32 %v1988, 7
        %v1990 = vsub.s32 %v1987, %v1989
        %v1991 = vrot.slane %v1977, %v1990
        %v1992 = vcombine.high %v1984, %v1984
        %v1993 = vcombine.high %v1991, %v1991
        %v1994 = vcombine.high %v1870, %v1870
        %v1996 = vunpack.c.l.s4 1983009808
        %v1997 = vunpack.c.0.s8 %v1996
        %v1998 = vlaneseq
        %v1999 = vshrl.u32 %v1998, 7
        %v2000 = vsub.s32 %v1997, %v1999
        %v2001 = vrot.slane %v1870, %v2000
        %v2003 = vunpack.c.l.s4 1983009808
        %v2004 = vunpack.c.0.s8 %v2003
        %v2005 = vlaneseq
        %v2006 = vshrl.u32 %v2005, 7
        %v2007 = vsub.s32 %v2004, %v2006
        %v2008 = vrot.slane %v1994, %v2007
        %v2009 = vcombine.high %v2001, %v2001
        %v2010 = vcombine.high %v2008, %v2008
        %v2011 = vcombine.high %v1873, %v1873
        %v2013 = vunpack.c.l.s4 1983009808
        %v2014 = vunpack.c.0.s8 %v2013
        %v2015 = vlaneseq
        %v2016 = vshrl.u32 %v2015, 7
        %v2017 = vsub.s32 %v2014, %v2016
        %v2018 = vrot.slane %v1873, %v2017
        %v2020 = vunpack.c.l.s4 1983009808
        %v2021 = vunpack.c.0.s8 %v2020
        %v2022 = vlaneseq
        %v2023 = vshrl.u32 %v2022, 7
        %v2024 = vsub.s32 %v2021, %v2023
        %v2025 = vrot.slane %v2011, %v2024
        %v2026 = vcombine.high %v2025, %v2025
        %v2027 = vcombine.high %v1878, %v1878
        %v2029 = vunpack.c.l.s4 1983009808
        %v2030 = vunpack.c.0.s8 %v2029
        %v2031 = vlaneseq
        %v2032 = vshrl.u32 %v2031, 7
        %v2033 = vsub.s32 %v2030, %v2032
        %v2034 = vrot.slane %v1878, %v2033
        %v2036 = vunpack.c.l.s4 1983009808
        %v2037 = vunpack.c.0.s8 %v2036
        %v2038 = vlaneseq
        %v2039 = vshrl.u32 %v2038, 7
        %v2040 = vsub.s32 %v2037, %v2039
        %v2041 = vrot.slane %v2027, %v2040
        %v2042 = vcombine.high %v2034, %v2034
        %v2043 = vcombine.high %v2041, %v2041
        %v2044 = vcombine.high %v1881, %v1881
        %v2046 = vunpack.c.l.s4 1983009808
        %v2047 = vunpack.c.0.s8 %v2046
        %v2048 = vlaneseq
        %v2049 = vshrl.u32 %v2048, 7
        %v2050 = vsub.s32 %v2047, %v2049
        %v2051 = vrot.slane %v1881, %v2050
        %v2053 = vunpack.c.l.s4 1983009808
        %v2054 = vunpack.c.0.s8 %v2053
        %v2055 = vlaneseq
        %v2056 = vshrl.u32 %v2055, 7
        %v2057 = vsub.s32 %v2054, %v2056
        %v2058 = vrot.slane %v2044, %v2057
        %v2059 = vcombine.high %v2051, %v2051
        %v2092 = vcombine.low %v1901, %v1909
        %v2093 = vcombine.low %v1908, %v1910
        %v2095 = vunpack.c.l.s4 1983009808
        %v2096 = vunpack.c.0.s8 %v2095
        %v2097 = vlaneseq
        %v2098 = vshrl.u32 %v2097, 7
        %v2099 = vsub.s32 %v2096, %v2098
        %v2100 = vrot.slane %v2092, %v2099
        %v2102 = vunpack.c.l.s4 1983009808
        %v2103 = vunpack.c.0.s8 %v2102
        %v2104 = vlaneseq
        %v2105 = vshrl.u32 %v2104, 7
        %v2106 = vsub.s32 %v2103, %v2105
        %v2107 = vrot.slane %v2093, %v2106
        %v2108 = vcombine.low %v2100, %v2107
        %v2109 = vcombine.low %v1926, %v1925
        %v2110 = vcombine.low %v1927, %v1935
        %v2112 = vunpack.c.l.s4 1983009808
        %v2113 = vunpack.c.0.s8 %v2112
        %v2114 = vlaneseq
        %v2115 = vshrl.u32 %v2114, 7
        %v2116 = vsub.s32 %v2113, %v2115
        %v2117 = vrot.slane %v2109, %v2116
        %v2119 = vunpack.c.l.s4 1983009808
        %v2120 = vunpack.c.0.s8 %v2119
        %v2121 = vlaneseq
        %v2122 = vshrl.u32 %v2121, 7
        %v2123 = vsub.s32 %v2120, %v2122
        %v2124 = vrot.slane %v2110, %v2123
        %v2125 = vcombine.low %v2117, %v2124
        %v2126 = vcombine.low %v1942, %v1943
        %v2127 = vcombine.low %v1951, %v1959
        %v2129 = vunpack.c.l.s4 1983009808
        %v2130 = vunpack.c.0.s8 %v2129
        %v2131 = vlaneseq
        %v2132 = vshrl.u32 %v2131, 7
        %v2133 = vsub.s32 %v2130, %v2132
        %v2134 = vrot.slane %v2126, %v2133
        %v2136 = vunpack.c.l.s4 1983009808
        %v2137 = vunpack.c.0.s8 %v2136
        %v2138 = vlaneseq
        %v2139 = vshrl.u32 %v2138, 7
        %v2140 = vsub.s32 %v2137, %v2139
        %v2141 = vrot.slane %v2127, %v2140
        %v2142 = vcombine.low %v2134, %v2141
        %v2143 = vcombine.low %v1960, %v1968
        %v2144 = vcombine.low %v1976, %v1975
        %v2146 = vunpack.c.l.s4 1983009808
        %v2147 = vunpack.c.0.s8 %v2146
        %v2148 = vlaneseq
        %v2149 = vshrl.u32 %v2148, 7
        %v2150 = vsub.s32 %v2147, %v2149
        %v2151 = vrot.slane %v2143, %v2150
        %v2153 = vunpack.c.l.s4 1983009808
        %v2154 = vunpack.c.0.s8 %v2153
        %v2155 = vlaneseq
        %v2156 = vshrl.u32 %v2155, 7
        %v2157 = vsub.s32 %v2154, %v2156
        %v2158 = vrot.slane %v2144, %v2157
        %v2159 = vcombine.low %v2151, %v2158
        %v2160 = vcombine.low %v1984, %v1992
        %v2161 = vcombine.low %v1991, %v1993
        %v2163 = vunpack.c.l.s4 1983009808
        %v2164 = vunpack.c.0.s8 %v2163
        %v2165 = vlaneseq
        %v2166 = vshrl.u32 %v2165, 7
        %v2167 = vsub.s32 %v2164, %v2166
        %v2168 = vrot.slane %v2160, %v2167
        %v2170 = vunpack.c.l.s4 1983009808
        %v2171 = vunpack.c.0.s8 %v2170
        %v2172 = vlaneseq
        %v2173 = vshrl.u32 %v2172, 7
        %v2174 = vsub.s32 %v2171, %v2173
        %v2175 = vrot.slane %v2161, %v2174
        %v2176 = vcombine.low %v2168, %v2175
        %v2177 = vcombine.low %v2009, %v2008
        %v2178 = vcombine.low %v2010, %v2018
        %v2180 = vunpack.c.l.s4 1983009808
        %v2181 = vunpack.c.0.s8 %v2180
        %v2182 = vlaneseq
        %v2183 = vshrl.u32 %v2182, 7
        %v2184 = vsub.s32 %v2181, %v2183
        %v2185 = vrot.slane %v2177, %v2184
        %v2187 = vunpack.c.l.s4 1983009808
        %v2188 = vunpack.c.0.s8 %v2187
        %v2189 = vlaneseq
        %v2190 = vshrl.u32 %v2189, 7
        %v2191 = vsub.s32 %v2188, %v2190
        %v2192 = vrot.slane %v2178, %v2191
        %v2193 = vcombine.low %v2185, %v2192
        %v2194 = vcombine.low %v2025, %v2026
        %v2195 = vcombine.low %v2034, %v2042
        %v2197 = vunpack.c.l.s4 1983009808
        %v2198 = vunpack.c.0.s8 %v2197
        %v2199 = vlaneseq
        %v2200 = vshrl.u32 %v2199, 7
        %v2201 = vsub.s32 %v2198, %v2200
        %v2202 = vrot.slane %v2194, %v2201
        %v2204 = vunpack.c.l.s4 1983009808
        %v2205 = vunpack.c.0.s8 %v2204
        %v2206 = vlaneseq
        %v2207 = vshrl.u32 %v2206, 7
        %v2208 = vsub.s32 %v2205, %v2207
        %v2209 = vrot.slane %v2195, %v2208
        %v2210 = vcombine.low %v2202, %v2209
        %v2211 = vcombine.low %v2043, %v2051
        %v2212 = vcombine.low %v2059, %v2058
        %v2214 = vunpack.c.l.s4 1983009808
        %v2215 = vunpack.c.0.s8 %v2214
        %v2216 = vlaneseq
        %v2217 = vshrl.u32 %v2216, 7
        %v2218 = vsub.s32 %v2215, %v2217
        %v2219 = vrot.slane %v2211, %v2218
        %v2221 = vunpack.c.l.s4 1983009808
        %v2222 = vunpack.c.0.s8 %v2221
        %v2223 = vlaneseq
        %v2224 = vshrl.u32 %v2223, 7
        %v2225 = vsub.s32 %v2222, %v2224
        %v2226 = vrot.slane %v2212, %v2225
        %v2227 = vcombine.low %v2219, %v2226
        %2236 = vmatprep.subr.mxu0 0.0
        %2237 = vmatpush1.msra.mxu0 %v2108
        %2238 = vmatprep.subr.mxu0 0.0
        %2239 = vmatpush1.msra.mxu0 %v2125
        %2240 = vmatprep.subr.mxu0 0.0
        %2241 = vmatpush1.msra.mxu0 %v2142
        %2242 = vmatprep.subr.mxu0 0.0
        %2243 = vmatpush1.msra.mxu0 %v2159
        %2244 = vmatprep.subr.mxu0 0.0
        %2245 = vmatpush1.msra.mxu0 %v2176
        %2246 = vmatprep.subr.mxu0 0.0
        %2247 = vmatpush1.msra.mxu0 %v2193
        %2248 = vmatprep.subr.mxu0 0.0
        %2249 = vmatpush1.msra.mxu0 %v2210
        %2250 = vmatprep.subr.mxu0 0.0
        %2251 = vmatpush1.msra.mxu0 %v2227
        %2252 = vmatprep.subr.mxu0 0.0
        %2253 = vmatpush1.msra.mxu0 0.0
        %2254 = vmatprep.subr.mxu0 0.0
        %2255 = vmatpush1.msra.mxu0 0.0
        %2256 = vmatprep.subr.mxu0 0.0
        %2257 = vmatpush1.msra.mxu0 0.0
        %2258 = vmatprep.subr.mxu0 0.0
        %2259 = vmatpush1.msra.mxu0 0.0
        %2260 = vmatprep.subr.mxu0 0.0
        %2261 = vmatpush1.msra.mxu0 0.0
        %2262 = vmatprep.subr.mxu0 0.0
        %2263 = vmatpush1.msra.mxu0 0.0
        %2264 = vmatprep.subr.mxu0 0.0
        %2265 = vmatpush1.msra.mxu0 0.0
        %2266 = vmatprep.subr.mxu0 0.0
        %2267 = vmatpush1.msra.mxu0 0.0
        %2268 = vmatprep.subr.mxu0 0.0
        %2269 = vmatpush1.msra.mxu0 0.0
        %2270 = vmatprep.subr.mxu0 0.0
        %2271 = vmatpush1.msra.mxu0 0.0
        %2272 = vmatprep.subr.mxu0 0.0
        %2273 = vmatpush1.msra.mxu0 0.0
        %2274 = vmatprep.subr.mxu0 0.0
        %2275 = vmatpush1.msra.mxu0 0.0
        %2276 = vmatprep.subr.mxu0 0.0
        %2277 = vmatpush1.msra.mxu0 0.0
        %2278 = vmatprep.subr.mxu0 0.0
        %2279 = vmatpush1.msra.mxu0 0.0
        %2280 = vmatprep.subr.mxu0 0.0
        %2281 = vmatpush1.msra.mxu0 0.0
        %2282 = vmatprep.subr.mxu0 0.0
        %2283 = vmatpush1.msra.mxu0 0.0
        %2284 = vmatprep.subr.mxu0 0.0
        %2285 = vmatpush1.msra.mxu0 0.0
        %2286 = vmatprep.subr.mxu0 0.0
        %2287 = vmatpush1.msra.mxu0 0.0
        %2288 = vmatprep.subr.mxu0 0.0
        %2289 = vmatpush1.msra.mxu0 0.0
        %2290 = vmatprep.subr.mxu0 0.0
        %2291 = vmatpush1.msra.mxu0 0.0
        %2292 = vmatprep.subr.mxu0 0.0
        %2293 = vmatpush1.msra.mxu0 0.0
        %2294 = vmatprep.subr.mxu0 0.0
        %2295 = vmatpush1.msra.mxu0 0.0
        %2296 = vmatprep.subr.mxu0 0.0
        %2297 = vmatpush1.msra.mxu0 0.0
        %2298 = vmatprep.subr.mxu0 0.0
        %2299 = vmatpush1.msra.mxu0 0.0
        %2300 = vmatprep.mubr.f32.mxu0 0.0
        %2301 = vmatmul.mubr.f32.gmra.mrb[0].mxu0 %v450
        %v2302 = vpop.f32.mrb[0].mxu0
        %v2303 = vadd.f32 0.0, %v2302
        %v2304 = vpop.f32.mrb[0].mxu0
        %2305 = vdwg.mxu0
        %v2306 = vmul.f32 %v1901, %v1901
        %v2307 = vmul.f32 %v1909, %v1909
        %v2308 = vmul.f32 %v1908, %v1908
        %v2309 = vmul.f32 %v1910, %v1910
        %v2310 = vmul.f32 %v1926, %v1926
        %v2311 = vmul.f32 %v1925, %v1925
        %v2312 = vmul.f32 %v1927, %v1927
        %v2313 = vmul.f32 %v1935, %v1935
        %v2314 = vmul.f32 %v1942, %v1942
        %v2315 = vmul.f32 %v1943, %v1943
        %v2316 = vmul.f32 %v1951, %v1951
        %v2317 = vmul.f32 %v1959, %v1959
        %v2318 = vmul.f32 %v1960, %v1960
        %v2319 = vmul.f32 %v1968, %v1968
        %v2320 = vmul.f32 %v1976, %v1976
        %v2321 = vmul.f32 %v1975, %v1975
        %v2322 = vmul.f32 %v1984, %v1984
        %v2323 = vmul.f32 %v1992, %v1992
        %v2324 = vmul.f32 %v1991, %v1991
        %v2325 = vmul.f32 %v1993, %v1993
        %v2326 = vmul.f32 %v2009, %v2009
        %v2327 = vmul.f32 %v2008, %v2008
        %v2328 = vmul.f32 %v2010, %v2010
        %v2329 = vmul.f32 %v2018, %v2018
        %v2330 = vmul.f32 %v2025, %v2025
        %v2331 = vmul.f32 %v2026, %v2026
        %v2332 = vmul.f32 %v2034, %v2034
        %v2333 = vmul.f32 %v2042, %v2042
        %v2334 = vmul.f32 %v2043, %v2043
        %v2335 = vmul.f32 %v2051, %v2051
        %v2336 = vmul.f32 %v2059, %v2059
        %v2337 = vmul.f32 %v2058, %v2058
        %v2370 = vcombine.low %v2306, %v2307
        %v2371 = vcombine.low %v2308, %v2309
        %v2373 = vunpack.c.l.s4 1983009808
        %v2374 = vunpack.c.0.s8 %v2373
        %v2375 = vlaneseq
        %v2376 = vshrl.u32 %v2375, 7
        %v2377 = vsub.s32 %v2374, %v2376
        %v2378 = vrot.slane %v2370, %v2377
        %v2380 = vunpack.c.l.s4 1983009808
        %v2381 = vunpack.c.0.s8 %v2380
        %v2382 = vlaneseq
        %v2383 = vshrl.u32 %v2382, 7
        %v2384 = vsub.s32 %v2381, %v2383
        %v2385 = vrot.slane %v2371, %v2384
        %v2386 = vcombine.low %v2378, %v2385
        %v2387 = vcombine.low %v2310, %v2311
        %v2388 = vcombine.low %v2312, %v2313
        %v2390 = vunpack.c.l.s4 1983009808
        %v2391 = vunpack.c.0.s8 %v2390
        %v2392 = vlaneseq
        %v2393 = vshrl.u32 %v2392, 7
        %v2394 = vsub.s32 %v2391, %v2393
        %v2395 = vrot.slane %v2387, %v2394
        %v2397 = vunpack.c.l.s4 1983009808
        %v2398 = vunpack.c.0.s8 %v2397
        %v2399 = vlaneseq
        %v2400 = vshrl.u32 %v2399, 7
        %v2401 = vsub.s32 %v2398, %v2400
        %v2402 = vrot.slane %v2388, %v2401
        %v2403 = vcombine.low %v2395, %v2402
        %v2404 = vcombine.low %v2314, %v2315
        %v2405 = vcombine.low %v2316, %v2317
        %v2407 = vunpack.c.l.s4 1983009808
        %v2408 = vunpack.c.0.s8 %v2407
        %v2409 = vlaneseq
        %v2410 = vshrl.u32 %v2409, 7
        %v2411 = vsub.s32 %v2408, %v2410
        %v2412 = vrot.slane %v2404, %v2411
        %v2414 = vunpack.c.l.s4 1983009808
        %v2415 = vunpack.c.0.s8 %v2414
        %v2416 = vlaneseq
        %v2417 = vshrl.u32 %v2416, 7
        %v2418 = vsub.s32 %v2415, %v2417
        %v2419 = vrot.slane %v2405, %v2418
        %v2420 = vcombine.low %v2412, %v2419
        %v2421 = vcombine.low %v2318, %v2319
        %v2422 = vcombine.low %v2320, %v2321
        %v2424 = vunpack.c.l.s4 1983009808
        %v2425 = vunpack.c.0.s8 %v2424
        %v2426 = vlaneseq
        %v2427 = vshrl.u32 %v2426, 7
        %v2428 = vsub.s32 %v2425, %v2427
        %v2429 = vrot.slane %v2421, %v2428
        %v2431 = vunpack.c.l.s4 1983009808
        %v2432 = vunpack.c.0.s8 %v2431
        %v2433 = vlaneseq
        %v2434 = vshrl.u32 %v2433, 7
        %v2435 = vsub.s32 %v2432, %v2434
        %v2436 = vrot.slane %v2422, %v2435
        %v2437 = vcombine.low %v2429, %v2436
        %v2438 = vcombine.low %v2322, %v2323
        %v2439 = vcombine.low %v2324, %v2325
        %v2441 = vunpack.c.l.s4 1983009808
        %v2442 = vunpack.c.0.s8 %v2441
        %v2443 = vlaneseq
        %v2444 = vshrl.u32 %v2443, 7
        %v2445 = vsub.s32 %v2442, %v2444
        %v2446 = vrot.slane %v2438, %v2445
        %v2448 = vunpack.c.l.s4 1983009808
        %v2449 = vunpack.c.0.s8 %v2448
        %v2450 = vlaneseq
        %v2451 = vshrl.u32 %v2450, 7
        %v2452 = vsub.s32 %v2449, %v2451
        %v2453 = vrot.slane %v2439, %v2452
        %v2454 = vcombine.low %v2446, %v2453
        %v2455 = vcombine.low %v2326, %v2327
        %v2456 = vcombine.low %v2328, %v2329
        %v2458 = vunpack.c.l.s4 1983009808
        %v2459 = vunpack.c.0.s8 %v2458
        %v2460 = vlaneseq
        %v2461 = vshrl.u32 %v2460, 7
        %v2462 = vsub.s32 %v2459, %v2461
        %v2463 = vrot.slane %v2455, %v2462
        %v2465 = vunpack.c.l.s4 1983009808
        %v2466 = vunpack.c.0.s8 %v2465
        %v2467 = vlaneseq
        %v2468 = vshrl.u32 %v2467, 7
        %v2469 = vsub.s32 %v2466, %v2468
        %v2470 = vrot.slane %v2456, %v2469
        %v2471 = vcombine.low %v2463, %v2470
        %v2472 = vcombine.low %v2330, %v2331
        %v2473 = vcombine.low %v2332, %v2333
        %v2475 = vunpack.c.l.s4 1983009808
        %v2476 = vunpack.c.0.s8 %v2475
        %v2477 = vlaneseq
        %v2478 = vshrl.u32 %v2477, 7
        %v2479 = vsub.s32 %v2476, %v2478
        %v2480 = vrot.slane %v2472, %v2479
        %v2482 = vunpack.c.l.s4 1983009808
        %v2483 = vunpack.c.0.s8 %v2482
        %v2484 = vlaneseq
        %v2485 = vshrl.u32 %v2484, 7
        %v2486 = vsub.s32 %v2483, %v2485
        %v2487 = vrot.slane %v2473, %v2486
        %v2488 = vcombine.low %v2480, %v2487
        %v2489 = vcombine.low %v2334, %v2335
        %v2490 = vcombine.low %v2336, %v2337
        %v2492 = vunpack.c.l.s4 1983009808
        %v2493 = vunpack.c.0.s8 %v2492
        %v2494 = vlaneseq
        %v2495 = vshrl.u32 %v2494, 7
        %v2496 = vsub.s32 %v2493, %v2495
        %v2497 = vrot.slane %v2489, %v2496
        %v2499 = vunpack.c.l.s4 1983009808
        %v2500 = vunpack.c.0.s8 %v2499
        %v2501 = vlaneseq
        %v2502 = vshrl.u32 %v2501, 7
        %v2503 = vsub.s32 %v2500, %v2502
        %v2504 = vrot.slane %v2490, %v2503
        %v2505 = vcombine.low %v2497, %v2504
        %2514 = vmatprep.subr.mxu0 0.0
        %2515 = vmatpush1.msra.mxu0 %v2386
        %2516 = vmatprep.subr.mxu0 0.0
        %2517 = vmatpush1.msra.mxu0 %v2403
        %2518 = vmatprep.subr.mxu0 0.0
        %2519 = vmatpush1.msra.mxu0 %v2420
        %2520 = vmatprep.subr.mxu0 0.0
        %2521 = vmatpush1.msra.mxu0 %v2437
        %2522 = vmatprep.subr.mxu0 0.0
        %2523 = vmatpush1.msra.mxu0 %v2454
        %2524 = vmatprep.subr.mxu0 0.0
        %2525 = vmatpush1.msra.mxu0 %v2471
        %2526 = vmatprep.subr.mxu0 0.0
        %2527 = vmatpush1.msra.mxu0 %v2488
        %2528 = vmatprep.subr.mxu0 0.0
        %2529 = vmatpush1.msra.mxu0 %v2505
        %2530 = vmatprep.subr.mxu0 0.0
        %2531 = vmatpush1.msra.mxu0 0.0
        %2532 = vmatprep.subr.mxu0 0.0
        %2533 = vmatpush1.msra.mxu0 0.0
        %2534 = vmatprep.subr.mxu0 0.0
        %2535 = vmatpush1.msra.mxu0 0.0
        %2536 = vmatprep.subr.mxu0 0.0
        %2537 = vmatpush1.msra.mxu0 0.0
        %2538 = vmatprep.subr.mxu0 0.0
        %2539 = vmatpush1.msra.mxu0 0.0
        %2540 = vmatprep.subr.mxu0 0.0
        %2541 = vmatpush1.msra.mxu0 0.0
        %2542 = vmatprep.subr.mxu0 0.0
        %2543 = vmatpush1.msra.mxu0 0.0
        %2544 = vmatprep.subr.mxu0 0.0
        %2545 = vmatpush1.msra.mxu0 0.0
        %2546 = vmatprep.subr.mxu0 0.0
        %2547 = vmatpush1.msra.mxu0 0.0
        %2548 = vmatprep.subr.mxu0 0.0
        %2549 = vmatpush1.msra.mxu0 0.0
        %2550 = vmatprep.subr.mxu0 0.0
        %2551 = vmatpush1.msra.mxu0 0.0
        %2552 = vmatprep.subr.mxu0 0.0
        %2553 = vmatpush1.msra.mxu0 0.0
        %2554 = vmatprep.subr.mxu0 0.0
        %2555 = vmatpush1.msra.mxu0 0.0
        %2556 = vmatprep.subr.mxu0 0.0
        %2557 = vmatpush1.msra.mxu0 0.0
        %2558 = vmatprep.subr.mxu0 0.0
        %2559 = vmatpush1.msra.mxu0 0.0
        %2560 = vmatprep.subr.mxu0 0.0
        %2561 = vmatpush1.msra.mxu0 0.0
        %2562 = vmatprep.subr.mxu0 0.0
        %2563 = vmatpush1.msra.mxu0 0.0
        %2564 = vmatprep.subr.mxu0 0.0
        %2565 = vmatpush1.msra.mxu0 0.0
        %2566 = vmatprep.subr.mxu0 0.0
        %2567 = vmatpush1.msra.mxu0 0.0
        %2568 = vmatprep.subr.mxu0 0.0
        %2569 = vmatpush1.msra.mxu0 0.0
        %2570 = vmatprep.subr.mxu0 0.0
        %2571 = vmatpush1.msra.mxu0 0.0
        %2572 = vmatprep.subr.mxu0 0.0
        %2573 = vmatpush1.msra.mxu0 0.0
        %2574 = vmatprep.subr.mxu0 0.0
        %2575 = vmatpush1.msra.mxu0 0.0
        %2576 = vmatprep.subr.mxu0 0.0
        %2577 = vmatpush1.msra.mxu0 0.0
        %2578 = vmatprep.mubr.f32.mxu0 0.0
        %2579 = vmatmul.mubr.f32.gmra.mrb[0].mxu0 %v450
        %v2580 = vpop.f32.mrb[0].mxu0
        %v2581 = vadd.f32 0.0, %v2580
        %v2582 = vpop.f32.mrb[0].mxu0
        %2583 = vdwg.mxu0
        %v2584 = vld [vmem:[%s8] sm:$0xff]
        %v2585 = vld [vmem:[%s8 + $0x8] sm:$0xff]
        %v2586 = vld [vmem:[%s8 + $0x10] sm:$0xff]
        %v2587 = vld [vmem:[%s8 + $0x18] sm:$0xff]
        %v2588 = vld [vmem:[%s8 + $0x20] sm:$0xff]
        %v2589 = vld [vmem:[%s8 + $0x28] sm:$0xff]
        %v2590 = vld [vmem:[%s8 + $0x30] sm:$0xff]
        %v2591 = vld [vmem:[%s8 + $0x38] sm:$0xff]
        %v2593 = vsel %vm448, %v2303, 0
        %2595 = vmatprep.subr.mxu0 0.0
        %2596 = vmatpush1.msra.mxu0 %v2584
        %2597 = vmatprep.subr.mxu0 0.0
        %2598 = vmatpush1.msra.mxu0 %v2585
        %2599 = vmatprep.subr.mxu0 0.0
        %2600 = vmatpush1.msra.mxu0 %v2586
        %2601 = vmatprep.subr.mxu0 0.0
        %2602 = vmatpush1.msra.mxu0 %v2587
        %2603 = vmatprep.subr.mxu0 0.0
        %2604 = vmatpush1.msra.mxu0 %v2588
        %2605 = vmatprep.subr.mxu0 0.0
        %2606 = vmatpush1.msra.mxu0 %v2589
        %2607 = vmatprep.subr.mxu0 0.0
        %2608 = vmatpush1.msra.mxu0 %v2590
        %2609 = vmatprep.subr.mxu0 0.0
        %2610 = vmatpush1.msra.mxu0 %v2591
        %2611 = vmatprep.subr.mxu0 0.0
        %2612 = vmatpush1.msra.mxu0 0.0
        %2613 = vmatprep.subr.mxu0 0.0
        %2614 = vmatpush1.msra.mxu0 0.0
        %2615 = vmatprep.subr.mxu0 0.0
        %2616 = vmatpush1.msra.mxu0 0.0
        %2617 = vmatprep.subr.mxu0 0.0
        %2618 = vmatpush1.msra.mxu0 0.0
        %2619 = vmatprep.subr.mxu0 0.0
        %2620 = vmatpush1.msra.mxu0 0.0
        %2621 = vmatprep.subr.mxu0 0.0
        %2622 = vmatpush1.msra.mxu0 0.0
        %2623 = vmatprep.subr.mxu0 0.0
        %2624 = vmatpush1.msra.mxu0 0.0
        %2625 = vmatprep.subr.mxu0 0.0
        %2626 = vmatpush1.msra.mxu0 0.0
        %2627 = vmatprep.subr.mxu0 0.0
        %2628 = vmatpush1.msra.mxu0 0.0
        %2629 = vmatprep.subr.mxu0 0.0
        %2630 = vmatpush1.msra.mxu0 0.0
        %2631 = vmatprep.subr.mxu0 0.0
        %2632 = vmatpush1.msra.mxu0 0.0
        %2633 = vmatprep.subr.mxu0 0.0
        %2634 = vmatpush1.msra.mxu0 0.0
        %2635 = vmatprep.subr.mxu0 0.0
        %2636 = vmatpush1.msra.mxu0 0.0
        %2637 = vmatprep.subr.mxu0 0.0
        %2638 = vmatpush1.msra.mxu0 0.0
        %2639 = vmatprep.subr.mxu0 0.0
        %2640 = vmatpush1.msra.mxu0 0.0
        %2641 = vmatprep.subr.mxu0 0.0
        %2642 = vmatpush1.msra.mxu0 0.0
        %2643 = vmatprep.subr.mxu0 0.0
        %2644 = vmatpush1.msra.mxu0 0.0
        %2645 = vmatprep.subr.mxu0 0.0
        %2646 = vmatpush1.msra.mxu0 0.0
        %2647 = vmatprep.subr.mxu0 0.0
        %2648 = vmatpush1.msra.mxu0 0.0
        %2649 = vmatprep.subr.mxu0 0.0
        %2650 = vmatpush1.msra.mxu0 0.0
        %2651 = vmatprep.subr.mxu0 0.0
        %2652 = vmatpush1.msra.mxu0 0.0
        %2653 = vmatprep.subr.mxu0 0.0
        %2654 = vmatpush1.msra.mxu0 0.0
        %2655 = vmatprep.subr.mxu0 0.0
        %2656 = vmatpush1.msra.mxu0 0.0
        %2657 = vmatprep.subr.mxu0 0.0
        %2658 = vmatpush1.msra.mxu0 0.0
        %2659 = vmatprep.mubr.f32.mxu0 0.0
        %2660 = vmatmul.mubr.f32.gmra.mrb[0].mxu0 %v2593
        %v2661 = vpop.f32.mrb[0].mxu0
        %v2662 = vadd.f32 0.0, %v2661
        %v2663 = vpop.f32.mrb[0].mxu0
        %2664 = vdwg.mxu0
        %v2666 = vsel %vm448, %v2581, 0
        %2668 = vmatprep.subr.mxu0 0.0
        %2669 = vmatpush1.msra.mxu0 %v2584
        %2670 = vmatprep.subr.mxu0 0.0
        %2671 = vmatpush1.msra.mxu0 %v2585
        %2672 = vmatprep.subr.mxu0 0.0
        %2673 = vmatpush1.msra.mxu0 %v2586
        %2674 = vmatprep.subr.mxu0 0.0
        %2675 = vmatpush1.msra.mxu0 %v2587
        %2676 = vmatprep.subr.mxu0 0.0
        %2677 = vmatpush1.msra.mxu0 %v2588
        %2678 = vmatprep.subr.mxu0 0.0
        %2679 = vmatpush1.msra.mxu0 %v2589
        %2680 = vmatprep.subr.mxu0 0.0
        %2681 = vmatpush1.msra.mxu0 %v2590
        %2682 = vmatprep.subr.mxu0 0.0
        %2683 = vmatpush1.msra.mxu0 %v2591
        %2684 = vmatprep.subr.mxu0 0.0
        %2685 = vmatpush1.msra.mxu0 0.0
        %2686 = vmatprep.subr.mxu0 0.0
        %2687 = vmatpush1.msra.mxu0 0.0
        %2688 = vmatprep.subr.mxu0 0.0
        %2689 = vmatpush1.msra.mxu0 0.0
        %2690 = vmatprep.subr.mxu0 0.0
        %2691 = vmatpush1.msra.mxu0 0.0
        %2692 = vmatprep.subr.mxu0 0.0
        %2693 = vmatpush1.msra.mxu0 0.0
        %2694 = vmatprep.subr.mxu0 0.0
        %2695 = vmatpush1.msra.mxu0 0.0
        %2696 = vmatprep.subr.mxu0 0.0
        %2697 = vmatpush1.msra.mxu0 0.0
        %2698 = vmatprep.subr.mxu0 0.0
        %2699 = vmatpush1.msra.mxu0 0.0
        %2700 = vmatprep.subr.mxu0 0.0
        %2701 = vmatpush1.msra.mxu0 0.0
        %2702 = vmatprep.subr.mxu0 0.0
        %2703 = vmatpush1.msra.mxu0 0.0
        %2704 = vmatprep.subr.mxu0 0.0
        %2705 = vmatpush1.msra.mxu0 0.0
        %2706 = vmatprep.subr.mxu0 0.0
        %2707 = vmatpush1.msra.mxu0 0.0
        %2708 = vmatprep.subr.mxu0 0.0
        %2709 = vmatpush1.msra.mxu0 0.0
        %2710 = vmatprep.subr.mxu0 0.0
        %2711 = vmatpush1.msra.mxu0 0.0
        %2712 = vmatprep.subr.mxu0 0.0
        %2713 = vmatpush1.msra.mxu0 0.0
        %2714 = vmatprep.subr.mxu0 0.0
        %2715 = vmatpush1.msra.mxu0 0.0
        %2716 = vmatprep.subr.mxu0 0.0
        %2717 = vmatpush1.msra.mxu0 0.0
        %2718 = vmatprep.subr.mxu0 0.0
        %2719 = vmatpush1.msra.mxu0 0.0
        %2720 = vmatprep.subr.mxu0 0.0
        %2721 = vmatpush1.msra.mxu0 0.0
        %2722 = vmatprep.subr.mxu0 0.0
        %2723 = vmatpush1.msra.mxu0 0.0
        %2724 = vmatprep.subr.mxu0 0.0
        %2725 = vmatpush1.msra.mxu0 0.0
        %2726 = vmatprep.subr.mxu0 0.0
        %2727 = vmatpush1.msra.mxu0 0.0
        %2728 = vmatprep.subr.mxu0 0.0
        %2729 = vmatpush1.msra.mxu0 0.0
        %2730 = vmatprep.subr.mxu0 0.0
        %2731 = vmatpush1.msra.mxu0 0.0
        %2732 = vmatprep.mubr.f32.mxu0 0.0
        %2733 = vmatmul.mubr.f32.gmra.mrb[0].mxu0 %v2666
        %v2734 = vpop.f32.mrb[0].mxu0
        %v2735 = vadd.f32 0.0, %v2734
        %v2736 = vpop.f32.mrb[0].mxu0
        %2737 = vdwg.mxu0
        %v2738 = vmul.f32 %v2662, 0.0078125
        %v2739 = vmul.f32 %v2735, 0.0078125
        %v2740 = vmul.f32 %v2738, %v2738
        %v2741 = vsub.f32 %v2739, %v2740
        %v2742 = vadd.f32 %v2741, 1e-05
        %v2743 = vrsqrt.pop %v2742
        %v2744 = vlaneseq
        %v2745 = vshrl.u32 %v2744, 7
        %v2746 = vsub.s32 0, %v2745
        %v2747 = vrot.slane %v2738, %v2746
        %v2749 = vcombine.high %v2747, %v2747
        %v2751 = vunpack.c.l.s4 1983009808
        %v2752 = vunpack.c.0.s8 %v2751
        %v2753 = vlaneseq
        %v2754 = vshrl.u32 %v2753, 7
        %v2755 = vsub.s32 %v2752, %v2754
        %v2756 = vrot.slane %v2747, %v2755
        %v2758 = vunpack.c.l.s4 1983009808
        %v2759 = vunpack.c.0.s8 %v2758
        %v2760 = vlaneseq
        %v2761 = vshrl.u32 %v2760, 7
        %v2762 = vsub.s32 %v2759, %v2761
        %v2763 = vrot.slane %v2749, %v2762
        %v2764 = vcombine.high %v2756, %v2756
        %v2765 = vcombine.high %v2763, %v2763
        %v2770 = vsub.f32 %v1901, %v2756
        %v2771 = vsub.f32 %v1909, %v2764
        %v2772 = vsub.f32 %v1908, %v2763
        %v2773 = vsub.f32 %v1910, %v2765
        %v2774 = vsub.f32 %v1926, %v2756
        %v2775 = vsub.f32 %v1925, %v2764
        %v2776 = vsub.f32 %v1927, %v2763
        %v2777 = vsub.f32 %v1935, %v2765
        %v2778 = vsub.f32 %v1942, %v2756
        %v2779 = vsub.f32 %v1943, %v2764
        %v2780 = vsub.f32 %v1951, %v2763
        %v2781 = vsub.f32 %v1959, %v2765
        %v2782 = vsub.f32 %v1960, %v2756
        %v2783 = vsub.f32 %v1968, %v2764
        %v2784 = vsub.f32 %v1976, %v2763
        %v2785 = vsub.f32 %v1975, %v2765
        %v2786 = vsub.f32 %v1984, %v2756
        %v2787 = vsub.f32 %v1992, %v2764
        %v2788 = vsub.f32 %v1991, %v2763
        %v2789 = vsub.f32 %v1993, %v2765
        %v2790 = vsub.f32 %v2009, %v2756
        %v2791 = vsub.f32 %v2008, %v2764
        %v2792 = vsub.f32 %v2010, %v2763
        %v2793 = vsub.f32 %v2018, %v2765
        %v2794 = vsub.f32 %v2025, %v2756
        %v2795 = vsub.f32 %v2026, %v2764
        %v2796 = vsub.f32 %v2034, %v2763
        %v2797 = vsub.f32 %v2042, %v2765
        %v2798 = vsub.f32 %v2043, %v2756
        %v2799 = vsub.f32 %v2051, %v2764
        %v2800 = vsub.f32 %v2059, %v2763
        %v2801 = vsub.f32 %v2058, %v2765
        %v2802 = vld [vmem:[%s6] sm:$0x1]
        %v2803 = vmul.f32 %v2743, %v2802
        %v2804 = vlaneseq
        %v2805 = vshrl.u32 %v2804, 7
        %v2806 = vsub.s32 0, %v2805
        %v2807 = vrot.slane %v2803, %v2806
        %v2809 = vcombine.high %v2807, %v2807
        %v2811 = vunpack.c.l.s4 1983009808
        %v2812 = vunpack.c.0.s8 %v2811
        %v2813 = vlaneseq
        %v2814 = vshrl.u32 %v2813, 7
        %v2815 = vsub.s32 %v2812, %v2814
        %v2816 = vrot.slane %v2807, %v2815
        %v2818 = vunpack.c.l.s4 1983009808
        %v2819 = vunpack.c.0.s8 %v2818
        %v2820 = vlaneseq
        %v2821 = vshrl.u32 %v2820, 7
        %v2822 = vsub.s32 %v2819, %v2821
        %v2823 = vrot.slane %v2809, %v2822
        %v2824 = vcombine.high %v2816, %v2816
        %v2825 = vcombine.high %v2823, %v2823
        %v2830 = vmul.f32 %v2770, %v2816
        %v2831 = vmul.f32 %v2771, %v2824
        %v2832 = vmul.f32 %v2772, %v2823
        %v2833 = vmul.f32 %v2773, %v2825
        %v2834 = vmul.f32 %v2774, %v2816
        %v2835 = vmul.f32 %v2775, %v2824
        %v2836 = vmul.f32 %v2776, %v2823
        %v2837 = vmul.f32 %v2777, %v2825
        %v2838 = vmul.f32 %v2778, %v2816
        %v2839 = vmul.f32 %v2779, %v2824
        %v2840 = vmul.f32 %v2780, %v2823
        %v2841 = vmul.f32 %v2781, %v2825
        %v2842 = vmul.f32 %v2782, %v2816
        %v2843 = vmul.f32 %v2783, %v2824
        %v2844 = vmul.f32 %v2784, %v2823
        %v2845 = vmul.f32 %v2785, %v2825
        %v2846 = vmul.f32 %v2786, %v2816
        %v2847 = vmul.f32 %v2787, %v2824
        %v2848 = vmul.f32 %v2788, %v2823
        %v2849 = vmul.f32 %v2789, %v2825
        %v2850 = vmul.f32 %v2790, %v2816
        %v2851 = vmul.f32 %v2791, %v2824
        %v2852 = vmul.f32 %v2792, %v2823
        %v2853 = vmul.f32 %v2793, %v2825
        %v2854 = vmul.f32 %v2794, %v2816
        %v2855 = vmul.f32 %v2795, %v2824
        %v2856 = vmul.f32 %v2796, %v2823
        %v2857 = vmul.f32 %v2797, %v2825
        %v2858 = vmul.f32 %v2798, %v2816
        %v2859 = vmul.f32 %v2799, %v2824
        %v2860 = vmul.f32 %v2800, %v2823
        %v2861 = vmul.f32 %v2801, %v2825
        %v2862 = vld [vmem:[%s7] sm:$0x1]
        %v2864 = vlaneseq
        %v2865 = vshrl.u32 %v2864, 7
        %v2866 = vsub.s32 0, %v2865
        %v2867 = vrot.slane %v2862, %v2866
        %v2868 = vcombine.high %v2867, %v2867
        %v2870 = vunpack.c.l.s4 1983009808
        %v2871 = vunpack.c.0.s8 %v2870
        %v2872 = vlaneseq
        %v2873 = vshrl.u32 %v2872, 7
        %v2874 = vsub.s32 %v2871, %v2873
        %v2875 = vrot.slane %v2867, %v2874
        %v2877 = vunpack.c.l.s4 1983009808
        %v2878 = vunpack.c.0.s8 %v2877
        %v2879 = vlaneseq
        %v2880 = vshrl.u32 %v2879, 7
        %v2881 = vsub.s32 %v2878, %v2880
        %v2882 = vrot.slane %v2868, %v2881
        %v2883 = vcombine.high %v2875, %v2875
        %v2884 = vcombine.high %v2882, %v2882
        %v2889 = vadd.f32 %v2830, %v2875
        %v2890 = vadd.f32 %v2831, %v2883
        %v2891 = vadd.f32 %v2832, %v2882
        %v2892 = vadd.f32 %v2833, %v2884
        %v2893 = vadd.f32 %v2834, %v2875
        %v2894 = vadd.f32 %v2835, %v2883
        %v2895 = vadd.f32 %v2836, %v2882
        %v2896 = vadd.f32 %v2837, %v2884
        %v2897 = vadd.f32 %v2838, %v2875
        %v2898 = vadd.f32 %v2839, %v2883
        %v2899 = vadd.f32 %v2840, %v2882
        %v2900 = vadd.f32 %v2841, %v2884
        %v2901 = vadd.f32 %v2842, %v2875
        %v2902 = vadd.f32 %v2843, %v2883
        %v2903 = vadd.f32 %v2844, %v2882
        %v2904 = vadd.f32 %v2845, %v2884
        %v2905 = vadd.f32 %v2846, %v2875
        %v2906 = vadd.f32 %v2847, %v2883
        %v2907 = vadd.f32 %v2848, %v2882
        %v2908 = vadd.f32 %v2849, %v2884
        %v2909 = vadd.f32 %v2850, %v2875
        %v2910 = vadd.f32 %v2851, %v2883
        %v2911 = vadd.f32 %v2852, %v2882
        %v2912 = vadd.f32 %v2853, %v2884
        %v2913 = vadd.f32 %v2854, %v2875
        %v2914 = vadd.f32 %v2855, %v2883
        %v2915 = vadd.f32 %v2856, %v2882
        %v2916 = vadd.f32 %v2857, %v2884
        %v2917 = vadd.f32 %v2858, %v2875
        %v2918 = vadd.f32 %v2859, %v2883
        %v2919 = vadd.f32 %v2860, %v2882
        %v2920 = vadd.f32 %v2861, %v2884
        %v2921 = vxor.u32 %v2889, 2147483648
        %v2922 = vxor.u32 %v2890, 2147483648
        %v2923 = vxor.u32 %v2891, 2147483648
        %v2924 = vxor.u32 %v2892, 2147483648
        %v2925 = vxor.u32 %v2893, 2147483648
        %v2926 = vxor.u32 %v2894, 2147483648
        %v2927 = vxor.u32 %v2895, 2147483648
        %v2928 = vxor.u32 %v2896, 2147483648
        %v2929 = vxor.u32 %v2897, 2147483648
        %v2930 = vxor.u32 %v2898, 2147483648
        %v2931 = vxor.u32 %v2899, 2147483648
        %v2932 = vxor.u32 %v2900, 2147483648
        %v2933 = vxor.u32 %v2901, 2147483648
        %v2934 = vxor.u32 %v2902, 2147483648
        %v2935 = vxor.u32 %v2903, 2147483648
        %v2936 = vxor.u32 %v2904, 2147483648
        %v2937 = vxor.u32 %v2905, 2147483648
        %v2938 = vxor.u32 %v2906, 2147483648
        %v2939 = vxor.u32 %v2907, 2147483648
        %v2940 = vxor.u32 %v2908, 2147483648
        %v2941 = vxor.u32 %v2909, 2147483648
        %v2942 = vxor.u32 %v2910, 2147483648
        %v2943 = vxor.u32 %v2911, 2147483648
        %v2944 = vxor.u32 %v2912, 2147483648
        %v2945 = vxor.u32 %v2913, 2147483648
        %v2946 = vxor.u32 %v2914, 2147483648
        %v2947 = vxor.u32 %v2915, 2147483648
        %v2948 = vxor.u32 %v2916, 2147483648
        %v2949 = vxor.u32 %v2917, 2147483648
        %v2950 = vxor.u32 %v2918, 2147483648
        %v2951 = vxor.u32 %v2919, 2147483648
        %v2952 = vxor.u32 %v2920, 2147483648
        %v2953 = vmul.f32 %v2921, 1.442695
        %v2954 = vpow.pop %v2953
        %v2955 = vmul.f32 %v2922, 1.442695
        %v2956 = vpow.pop %v2955
        %v2957 = vmul.f32 %v2923, 1.442695
        %v2958 = vpow.pop %v2957
        %v2959 = vmul.f32 %v2924, 1.442695
        %v2960 = vpow.pop %v2959
        %v2961 = vmul.f32 %v2925, 1.442695
        %v2962 = vpow.pop %v2961
        %v2963 = vmul.f32 %v2926, 1.442695
        %v2964 = vpow.pop %v2963
        %v2965 = vmul.f32 %v2927, 1.442695
        %v2966 = vpow.pop %v2965
        %v2967 = vmul.f32 %v2928, 1.442695
        %v2968 = vpow.pop %v2967
        %v2969 = vmul.f32 %v2929, 1.442695
        %v2970 = vpow.pop %v2969
        %v2971 = vmul.f32 %v2930, 1.442695
        %v2972 = vpow.pop %v2971
        %v2973 = vmul.f32 %v2931, 1.442695
        %v2974 = vpow.pop %v2973
        %v2975 = vmul.f32 %v2932, 1.442695
        %v2976 = vpow.pop %v2975
        %v2977 = vmul.f32 %v2933, 1.442695
        %v2978 = vpow.pop %v2977
        %v2979 = vmul.f32 %v2934, 1.442695
        %v2980 = vpow.pop %v2979
        %v2981 = vmul.f32 %v2935, 1.442695
        %v2982 = vpow.pop %v2981
        %v2983 = vmul.f32 %v2936, 1.442695
        %v2984 = vpow.pop %v2983
        %v2985 = vmul.f32 %v2937, 1.442695
        %v2986 = vpow.pop %v2985
        %v2987 = vmul.f32 %v2938, 1.442695
        %v2988 = vpow.pop %v2987
        %v2989 = vmul.f32 %v2939, 1.442695
        %v2990 = vpow.pop %v2989
        %v2991 = vmul.f32 %v2940, 1.442695
        %v2992 = vpow.pop %v2991
        %v2993 = vmul.f32 %v2941, 1.442695
        %v2994 = vpow.pop %v2993
        %v2995 = vmul.f32 %v2942, 1.442695
        %v2996 = vpow.pop %v2995
        %v2997 = vmul.f32 %v2943, 1.442695
        %v2998 = vpow.pop %v2997
        %v2999 = vmul.f32 %v2944, 1.442695
        %v3000 = vpow.pop %v2999
        %v3001 = vmul.f32 %v2945, 1.442695
        %v3002 = vpow.pop %v3001
        %v3003 = vmul.f32 %v2946, 1.442695
        %v3004 = vpow.pop %v3003
        %v3005 = vmul.f32 %v2947, 1.442695
        %v3006 = vpow.pop %v3005
        %v3007 = vmul.f32 %v2948, 1.442695
        %v3008 = vpow.pop %v3007
        %v3009 = vmul.f32 %v2949, 1.442695
        %v3010 = vpow.pop %v3009
        %v3011 = vmul.f32 %v2950, 1.442695
        %v3012 = vpow.pop %v3011
        %v3013 = vmul.f32 %v2951, 1.442695
        %v3014 = vpow.pop %v3013
        %v3015 = vmul.f32 %v2952, 1.442695
        %v3016 = vpow.pop %v3015
        %v3017 = vadd.f32 %v2954, 1.0
        %v3018 = vadd.f32 %v2956, 1.0
        %v3019 = vadd.f32 %v2958, 1.0
        %v3020 = vadd.f32 %v2960, 1.0
        %v3021 = vadd.f32 %v2962, 1.0
        %v3022 = vadd.f32 %v2964, 1.0
        %v3023 = vadd.f32 %v2966, 1.0
        %v3024 = vadd.f32 %v2968, 1.0
        %v3025 = vadd.f32 %v2970, 1.0
        %v3026 = vadd.f32 %v2972, 1.0
        %v3027 = vadd.f32 %v2974, 1.0
        %v3028 = vadd.f32 %v2976, 1.0
        %v3029 = vadd.f32 %v2978, 1.0
        %v3030 = vadd.f32 %v2980, 1.0
        %v3031 = vadd.f32 %v2982, 1.0
        %v3032 = vadd.f32 %v2984, 1.0
        %v3033 = vadd.f32 %v2986, 1.0
        %v3034 = vadd.f32 %v2988, 1.0
        %v3035 = vadd.f32 %v2990, 1.0
        %v3036 = vadd.f32 %v2992, 1.0
        %v3037 = vadd.f32 %v2994, 1.0
        %v3038 = vadd.f32 %v2996, 1.0
        %v3039 = vadd.f32 %v2998, 1.0
        %v3040 = vadd.f32 %v3000, 1.0
        %v3041 = vadd.f32 %v3002, 1.0
        %v3042 = vadd.f32 %v3004, 1.0
        %v3043 = vadd.f32 %v3006, 1.0
        %v3044 = vadd.f32 %v3008, 1.0
        %v3045 = vadd.f32 %v3010, 1.0
        %v3046 = vadd.f32 %v3012, 1.0
        %v3047 = vadd.f32 %v3014, 1.0
        %v3048 = vadd.f32 %v3016, 1.0
        %v3049 = vrcp.pop %v3017
        %v3050 = vmul.f32 1.0, %v3049
        %v3051 = vrcp.pop %v3018
        %v3052 = vmul.f32 1.0, %v3051
        %v3053 = vrcp.pop %v3019
        %v3054 = vmul.f32 1.0, %v3053
        %v3055 = vrcp.pop %v3020
        %v3056 = vmul.f32 1.0, %v3055
        %v3057 = vrcp.pop %v3021
        %v3058 = vmul.f32 1.0, %v3057
        %v3059 = vrcp.pop %v3022
        %v3060 = vmul.f32 1.0, %v3059
        %v3061 = vrcp.pop %v3023
        %v3062 = vmul.f32 1.0, %v3061
        %v3063 = vrcp.pop %v3024
        %v3064 = vmul.f32 1.0, %v3063
        %v3065 = vrcp.pop %v3025
        %v3066 = vmul.f32 1.0, %v3065
        %v3067 = vrcp.pop %v3026
        %v3068 = vmul.f32 1.0, %v3067
        %v3069 = vrcp.pop %v3027
        %v3070 = vmul.f32 1.0, %v3069
        %v3071 = vrcp.pop %v3028
        %v3072 = vmul.f32 1.0, %v3071
        %v3073 = vrcp.pop %v3029
        %v3074 = vmul.f32 1.0, %v3073
        %v3075 = vrcp.pop %v3030
        %v3076 = vmul.f32 1.0, %v3075
        %v3077 = vrcp.pop %v3031
        %v3078 = vmul.f32 1.0, %v3077
        %v3079 = vrcp.pop %v3032
        %v3080 = vmul.f32 1.0, %v3079
        %v3081 = vrcp.pop %v3033
        %v3082 = vmul.f32 1.0, %v3081
        %v3083 = vrcp.pop %v3034
        %v3084 = vmul.f32 1.0, %v3083
        %v3085 = vrcp.pop %v3035
        %v3086 = vmul.f32 1.0, %v3085
        %v3087 = vrcp.pop %v3036
        %v3088 = vmul.f32 1.0, %v3087
        %v3089 = vrcp.pop %v3037
        %v3090 = vmul.f32 1.0, %v3089
        %v3091 = vrcp.pop %v3038
        %v3092 = vmul.f32 1.0, %v3091
        %v3093 = vrcp.pop %v3039
        %v3094 = vmul.f32 1.0, %v3093
        %v3095 = vrcp.pop %v3040
        %v3096 = vmul.f32 1.0, %v3095
        %v3097 = vrcp.pop %v3041
        %v3098 = vmul.f32 1.0, %v3097
        %v3099 = vrcp.pop %v3042
        %v3100 = vmul.f32 1.0, %v3099
        %v3101 = vrcp.pop %v3043
        %v3102 = vmul.f32 1.0, %v3101
        %v3103 = vrcp.pop %v3044
        %v3104 = vmul.f32 1.0, %v3103
        %v3105 = vrcp.pop %v3045
        %v3106 = vmul.f32 1.0, %v3105
        %v3107 = vrcp.pop %v3046
        %v3108 = vmul.f32 1.0, %v3107
        %v3109 = vrcp.pop %v3047
        %v3110 = vmul.f32 1.0, %v3109
        %v3111 = vrcp.pop %v3048
        %v3112 = vmul.f32 1.0, %v3111
        %v3113 = vmul.f32 %v2889, %v3050
        %v3114 = vmul.f32 %v2890, %v3052
        %v3115 = vmul.f32 %v2891, %v3054
        %v3116 = vmul.f32 %v2892, %v3056
        %v3117 = vmul.f32 %v2893, %v3058
        %v3118 = vmul.f32 %v2894, %v3060
        %v3119 = vmul.f32 %v2895, %v3062
        %v3120 = vmul.f32 %v2896, %v3064
        %v3121 = vmul.f32 %v2897, %v3066
        %v3122 = vmul.f32 %v2898, %v3068
        %v3123 = vmul.f32 %v2899, %v3070
        %v3124 = vmul.f32 %v2900, %v3072
        %v3125 = vmul.f32 %v2901, %v3074
        %v3126 = vmul.f32 %v2902, %v3076
        %v3127 = vmul.f32 %v2903, %v3078
        %v3128 = vmul.f32 %v2904, %v3080
        %v3129 = vmul.f32 %v2905, %v3082
        %v3130 = vmul.f32 %v2906, %v3084
        %v3131 = vmul.f32 %v2907, %v3086
        %v3132 = vmul.f32 %v2908, %v3088
        %v3133 = vmul.f32 %v2909, %v3090
        %v3134 = vmul.f32 %v2910, %v3092
        %v3135 = vmul.f32 %v2911, %v3094
        %v3136 = vmul.f32 %v2912, %v3096
        %v3137 = vmul.f32 %v2913, %v3098
        %v3138 = vmul.f32 %v2914, %v3100
        %v3139 = vmul.f32 %v2915, %v3102
        %v3140 = vmul.f32 %v2916, %v3104
        %v3141 = vmul.f32 %v2917, %v3106
        %v3142 = vmul.f32 %v2918, %v3108
        %v3143 = vmul.f32 %v2919, %v3110
        %v3144 = vmul.f32 %v2920, %v3112
        %v3177 = vcombine.low %v3113, %v3114
        %v3178 = vcombine.low %v3115, %v3116
        %v3180 = vunpack.c.l.s4 1983009808
        %v3181 = vunpack.c.0.s8 %v3180
        %v3182 = vlaneseq
        %v3183 = vshrl.u32 %v3182, 7
        %v3184 = vsub.s32 %v3181, %v3183
        %v3185 = vrot.slane %v3177, %v3184
        %v3187 = vunpack.c.l.s4 1983009808
        %v3188 = vunpack.c.0.s8 %v3187
        %v3189 = vlaneseq
        %v3190 = vshrl.u32 %v3189, 7
        %v3191 = vsub.s32 %v3188, %v3190
        %v3192 = vrot.slane %v3178, %v3191
        %v3193 = vcombine.low %v3185, %v3192
        %v3194 = vcombine.low %v3117, %v3118
        %v3195 = vcombine.low %v3119, %v3120
        %v3197 = vunpack.c.l.s4 1983009808
        %v3198 = vunpack.c.0.s8 %v3197
        %v3199 = vlaneseq
        %v3200 = vshrl.u32 %v3199, 7
        %v3201 = vsub.s32 %v3198, %v3200
        %v3202 = vrot.slane %v3194, %v3201
        %v3204 = vunpack.c.l.s4 1983009808
        %v3205 = vunpack.c.0.s8 %v3204
        %v3206 = vlaneseq
        %v3207 = vshrl.u32 %v3206, 7
        %v3208 = vsub.s32 %v3205, %v3207
        %v3209 = vrot.slane %v3195, %v3208
        %v3210 = vcombine.low %v3202, %v3209
        %v3211 = vcombine.low %v3121, %v3122
        %v3212 = vcombine.low %v3123, %v3124
        %v3214 = vunpack.c.l.s4 1983009808
        %v3215 = vunpack.c.0.s8 %v3214
        %v3216 = vlaneseq
        %v3217 = vshrl.u32 %v3216, 7
        %v3218 = vsub.s32 %v3215, %v3217
        %v3219 = vrot.slane %v3211, %v3218
        %v3221 = vunpack.c.l.s4 1983009808
        %v3222 = vunpack.c.0.s8 %v3221
        %v3223 = vlaneseq
        %v3224 = vshrl.u32 %v3223, 7
        %v3225 = vsub.s32 %v3222, %v3224
        %v3226 = vrot.slane %v3212, %v3225
        %v3227 = vcombine.low %v3219, %v3226
        %v3228 = vcombine.low %v3125, %v3126
        %v3229 = vcombine.low %v3127, %v3128
        %v3231 = vunpack.c.l.s4 1983009808
        %v3232 = vunpack.c.0.s8 %v3231
        %v3233 = vlaneseq
        %v3234 = vshrl.u32 %v3233, 7
        %v3235 = vsub.s32 %v3232, %v3234
        %v3236 = vrot.slane %v3228, %v3235
        %v3238 = vunpack.c.l.s4 1983009808
        %v3239 = vunpack.c.0.s8 %v3238
        %v3240 = vlaneseq
        %v3241 = vshrl.u32 %v3240, 7
        %v3242 = vsub.s32 %v3239, %v3241
        %v3243 = vrot.slane %v3229, %v3242
        %v3244 = vcombine.low %v3236, %v3243
        %v3245 = vcombine.low %v3129, %v3130
        %v3246 = vcombine.low %v3131, %v3132
        %v3248 = vunpack.c.l.s4 1983009808
        %v3249 = vunpack.c.0.s8 %v3248
        %v3250 = vlaneseq
        %v3251 = vshrl.u32 %v3250, 7
        %v3252 = vsub.s32 %v3249, %v3251
        %v3253 = vrot.slane %v3245, %v3252
        %v3255 = vunpack.c.l.s4 1983009808
        %v3256 = vunpack.c.0.s8 %v3255
        %v3257 = vlaneseq
        %v3258 = vshrl.u32 %v3257, 7
        %v3259 = vsub.s32 %v3256, %v3258
        %v3260 = vrot.slane %v3246, %v3259
        %v3261 = vcombine.low %v3253, %v3260
        %v3262 = vcombine.low %v3133, %v3134
        %v3263 = vcombine.low %v3135, %v3136
        %v3265 = vunpack.c.l.s4 1983009808
        %v3266 = vunpack.c.0.s8 %v3265
        %v3267 = vlaneseq
        %v3268 = vshrl.u32 %v3267, 7
        %v3269 = vsub.s32 %v3266, %v3268
        %v3270 = vrot.slane %v3262, %v3269
        %v3272 = vunpack.c.l.s4 1983009808
        %v3273 = vunpack.c.0.s8 %v3272
        %v3274 = vlaneseq
        %v3275 = vshrl.u32 %v3274, 7
        %v3276 = vsub.s32 %v3273, %v3275
        %v3277 = vrot.slane %v3263, %v3276
        %v3278 = vcombine.low %v3270, %v3277
        %v3279 = vcombine.low %v3137, %v3138
        %v3280 = vcombine.low %v3139, %v3140
        %v3282 = vunpack.c.l.s4 1983009808
        %v3283 = vunpack.c.0.s8 %v3282
        %v3284 = vlaneseq
        %v3285 = vshrl.u32 %v3284, 7
        %v3286 = vsub.s32 %v3283, %v3285
        %v3287 = vrot.slane %v3279, %v3286
        %v3289 = vunpack.c.l.s4 1983009808
        %v3290 = vunpack.c.0.s8 %v3289
        %v3291 = vlaneseq
        %v3292 = vshrl.u32 %v3291, 7
        %v3293 = vsub.s32 %v3290, %v3292
        %v3294 = vrot.slane %v3280, %v3293
        %v3295 = vcombine.low %v3287, %v3294
        %v3296 = vcombine.low %v3141, %v3142
        %v3297 = vcombine.low %v3143, %v3144
        %v3299 = vunpack.c.l.s4 1983009808
        %v3300 = vunpack.c.0.s8 %v3299
        %v3301 = vlaneseq
        %v3302 = vshrl.u32 %v3301, 7
        %v3303 = vsub.s32 %v3300, %v3302
        %v3304 = vrot.slane %v3296, %v3303
        %v3306 = vunpack.c.l.s4 1983009808
        %v3307 = vunpack.c.0.s8 %v3306
        %v3308 = vlaneseq
        %v3309 = vshrl.u32 %v3308, 7
        %v3310 = vsub.s32 %v3307, %v3309
        %v3311 = vrot.slane %v3297, %v3310
        %v3312 = vcombine.low %v3304, %v3311
        %3313 = vst.msk [vmem:[#allocation3] sm:$0xff] %vm448, 0.0
        %vm3314 = vcmask 518144
        %3315 = vst.msk [vmem:[#allocation3 + $0x8] sm:$0x7] %vm3314, 0.0
        %3316 = vst.msk [vmem:[#allocation3 + $0x5b] sm:$0xff] %vm448, 0.0
        %vm3317 = vcmask 520192
        %3318 = vst.msk [vmem:[#allocation3 + $0x63] sm:$0x1f] %vm3317, 0.0
        %v3319 = vcombine.high %v3193, %v3193
        %v3321 = vunpack.c.l.s4 1983009808
        %v3322 = vunpack.c.0.s8 %v3321
        %v3323 = vlaneseq
        %v3324 = vshrl.u32 %v3323, 7
        %v3325 = vsub.s32 %v3322, %v3324
        %v3326 = vrot.slane %v3193, %v3325
        %v3328 = vunpack.c.l.s4 1983009808
        %v3329 = vunpack.c.0.s8 %v3328
        %v3330 = vlaneseq
        %v3331 = vshrl.u32 %v3330, 7
        %v3332 = vsub.s32 %v3329, %v3331
        %v3333 = vrot.slane %v3319, %v3332
        %v3334 = vcombine.high %v3326, %v3326
        %v3335 = vcombine.high %v3333, %v3333
        %v3336 = vcombine.high %v3210, %v3210
        %v3338 = vunpack.c.l.s4 1983009808
        %v3339 = vunpack.c.0.s8 %v3338
        %v3340 = vlaneseq
        %v3341 = vshrl.u32 %v3340, 7
        %v3342 = vsub.s32 %v3339, %v3341
        %v3343 = vrot.slane %v3210, %v3342
        %v3345 = vunpack.c.l.s4 1983009808
        %v3346 = vunpack.c.0.s8 %v3345
        %v3347 = vlaneseq
        %v3348 = vshrl.u32 %v3347, 7
        %v3349 = vsub.s32 %v3346, %v3348
        %v3350 = vrot.slane %v3336, %v3349
        %v3351 = vcombine.high %v3343, %v3343
        %v3352 = vcombine.high %v3350, %v3350
        %v3353 = vcombine.high %v3227, %v3227
        %v3355 = vunpack.c.l.s4 1983009808
        %v3356 = vunpack.c.0.s8 %v3355
        %v3357 = vlaneseq
        %v3358 = vshrl.u32 %v3357, 7
        %v3359 = vsub.s32 %v3356, %v3358
        %v3360 = vrot.slane %v3227, %v3359
        %v3362 = vunpack.c.l.s4 1983009808
        %v3363 = vunpack.c.0.s8 %v3362
        %v3364 = vlaneseq
        %v3365 = vshrl.u32 %v3364, 7
        %v3366 = vsub.s32 %v3363, %v3365
        %v3367 = vrot.slane %v3353, %v3366
        %v3368 = vcombine.high %v3360, %v3360
        %v3369 = vcombine.high %v3367, %v3367
        %v3370 = vcombine.high %v3244, %v3244
        %v3372 = vunpack.c.l.s4 1983009808
        %v3373 = vunpack.c.0.s8 %v3372
        %v3374 = vlaneseq
        %v3375 = vshrl.u32 %v3374, 7
        %v3376 = vsub.s32 %v3373, %v3375
        %v3377 = vrot.slane %v3244, %v3376
        %v3379 = vunpack.c.l.s4 1983009808
        %v3380 = vunpack.c.0.s8 %v3379
        %v3381 = vlaneseq
        %v3382 = vshrl.u32 %v3381, 7
        %v3383 = vsub.s32 %v3380, %v3382
        %v3384 = vrot.slane %v3370, %v3383
        %v3385 = vcombine.high %v3377, %v3377
        %v3386 = vcombine.high %v3384, %v3384
        %v3387 = vcombine.high %v3261, %v3261
        %v3389 = vunpack.c.l.s4 1983009808
        %v3390 = vunpack.c.0.s8 %v3389
        %v3391 = vlaneseq
        %v3392 = vshrl.u32 %v3391, 7
        %v3393 = vsub.s32 %v3390, %v3392
        %v3394 = vrot.slane %v3261, %v3393
        %v3396 = vunpack.c.l.s4 1983009808
        %v3397 = vunpack.c.0.s8 %v3396
        %v3398 = vlaneseq
        %v3399 = vshrl.u32 %v3398, 7
        %v3400 = vsub.s32 %v3397, %v3399
        %v3401 = vrot.slane %v3387, %v3400
        %v3402 = vcombine.high %v3394, %v3394
        %v3403 = vcombine.high %v3401, %v3401
        %v3404 = vcombine.high %v3278, %v3278
        %v3406 = vunpack.c.l.s4 1983009808
        %v3407 = vunpack.c.0.s8 %v3406
        %v3408 = vlaneseq
        %v3409 = vshrl.u32 %v3408, 7
        %v3410 = vsub.s32 %v3407, %v3409
        %v3411 = vrot.slane %v3278, %v3410
        %v3413 = vunpack.c.l.s4 1983009808
        %v3414 = vunpack.c.0.s8 %v3413
        %v3415 = vlaneseq
        %v3416 = vshrl.u32 %v3415, 7
        %v3417 = vsub.s32 %v3414, %v3416
        %v3418 = vrot.slane %v3404, %v3417
        %v3419 = vcombine.high %v3411, %v3411
        %v3420 = vcombine.high %v3418, %v3418
        %v3421 = vcombine.high %v3295, %v3295
        %v3423 = vunpack.c.l.s4 1983009808
        %v3424 = vunpack.c.0.s8 %v3423
        %v3425 = vlaneseq
        %v3426 = vshrl.u32 %v3425, 7
        %v3427 = vsub.s32 %v3424, %v3426
        %v3428 = vrot.slane %v3295, %v3427
        %v3430 = vunpack.c.l.s4 1983009808
        %v3431 = vunpack.c.0.s8 %v3430
        %v3432 = vlaneseq
        %v3433 = vshrl.u32 %v3432, 7
        %v3434 = vsub.s32 %v3431, %v3433
        %v3435 = vrot.slane %v3421, %v3434
        %v3436 = vcombine.high %v3428, %v3428
        %v3437 = vcombine.high %v3435, %v3435
        %v3438 = vcombine.high %v3312, %v3312
        %v3440 = vunpack.c.l.s4 1983009808
        %v3441 = vunpack.c.0.s8 %v3440
        %v3442 = vlaneseq
        %v3443 = vshrl.u32 %v3442, 7
        %v3444 = vsub.s32 %v3441, %v3443
        %v3445 = vrot.slane %v3312, %v3444
        %v3447 = vunpack.c.l.s4 1983009808
        %v3448 = vunpack.c.0.s8 %v3447
        %v3449 = vlaneseq
        %v3450 = vshrl.u32 %v3449, 7
        %v3451 = vsub.s32 %v3448, %v3450
        %v3452 = vrot.slane %v3438, %v3451
        %v3453 = vcombine.high %v3445, %v3445
        %v3454 = vcombine.high %v3452, %v3452
        %v3455 = vcombine.low %v3326, %v3334
        %v3456 = vcombine.low %v3333, %v3335
        %v3458 = vunpack.c.l.s4 1983009808
        %v3459 = vunpack.c.0.s8 %v3458
        %v3460 = vlaneseq
        %v3461 = vshrl.u32 %v3460, 7
        %v3462 = vsub.s32 %v3459, %v3461
        %v3463 = vrot.slane %v3455, %v3462
        %v3465 = vunpack.c.l.s4 1983009808
        %v3466 = vunpack.c.0.s8 %v3465
        %v3467 = vlaneseq
        %v3468 = vshrl.u32 %v3467, 7
        %v3469 = vsub.s32 %v3466, %v3468
        %v3470 = vrot.slane %v3456, %v3469
        %v3471 = vcombine.low %v3463, %v3470
        %v3472 = vcombine.low %v892, %v3343
        %v3473 = vcombine.low %v3351, %v3350
        %v3475 = vunpack.c.l.s4 1983009808
        %v3476 = vunpack.c.0.s8 %v3475
        %v3477 = vlaneseq
        %v3478 = vshrl.u32 %v3477, 7
        %v3479 = vsub.s32 %v3476, %v3478
        %v3480 = vrot.slane %v3472, %v3479
        %v3482 = vunpack.c.l.s4 1983009808
        %v3483 = vunpack.c.0.s8 %v3482
        %v3484 = vlaneseq
        %v3485 = vshrl.u32 %v3484, 7
        %v3486 = vsub.s32 %v3483, %v3485
        %v3487 = vrot.slane %v3473, %v3486
        %v3488 = vcombine.low %v3480, %v3487
        %v3489 = vcombine.low %v3352, %v892
        %v3490 = vcombine.low %v3360, %v3368
        %v3492 = vunpack.c.l.s4 1983009808
        %v3493 = vunpack.c.0.s8 %v3492
        %v3494 = vlaneseq
        %v3495 = vshrl.u32 %v3494, 7
        %v3496 = vsub.s32 %v3493, %v3495
        %v3497 = vrot.slane %v3489, %v3496
        %v3499 = vunpack.c.l.s4 1983009808
        %v3500 = vunpack.c.0.s8 %v3499
        %v3501 = vlaneseq
        %v3502 = vshrl.u32 %v3501, 7
        %v3503 = vsub.s32 %v3500, %v3502
        %v3504 = vrot.slane %v3490, %v3503
        %v3505 = vcombine.low %v3497, %v3504
        %v3506 = vcombine.low %v3367, %v3369
        %v3507 = vcombine.low %v892, %v3377
        %v3509 = vunpack.c.l.s4 1983009808
        %v3510 = vunpack.c.0.s8 %v3509
        %v3511 = vlaneseq
        %v3512 = vshrl.u32 %v3511, 7
        %v3513 = vsub.s32 %v3510, %v3512
        %v3514 = vrot.slane %v3506, %v3513
        %v3516 = vunpack.c.l.s4 1983009808
        %v3517 = vunpack.c.0.s8 %v3516
        %v3518 = vlaneseq
        %v3519 = vshrl.u32 %v3518, 7
        %v3520 = vsub.s32 %v3517, %v3519
        %v3521 = vrot.slane %v3507, %v3520
        %v3522 = vcombine.low %v3514, %v3521
        %v3523 = vcombine.low %v3385, %v3384
        %v3524 = vcombine.low %v3386, %v892
        %v3526 = vunpack.c.l.s4 1983009808
        %v3527 = vunpack.c.0.s8 %v3526
        %v3528 = vlaneseq
        %v3529 = vshrl.u32 %v3528, 7
        %v3530 = vsub.s32 %v3527, %v3529
        %v3531 = vrot.slane %v3523, %v3530
        %v3533 = vunpack.c.l.s4 1983009808
        %v3534 = vunpack.c.0.s8 %v3533
        %v3535 = vlaneseq
        %v3536 = vshrl.u32 %v3535, 7
        %v3537 = vsub.s32 %v3534, %v3536
        %v3538 = vrot.slane %v3524, %v3537
        %v3539 = vcombine.low %v3531, %v3538
        %v3540 = vcombine.low %v3394, %v3402
        %v3541 = vcombine.low %v3401, %v3403
        %v3543 = vunpack.c.l.s4 1983009808
        %v3544 = vunpack.c.0.s8 %v3543
        %v3545 = vlaneseq
        %v3546 = vshrl.u32 %v3545, 7
        %v3547 = vsub.s32 %v3544, %v3546
        %v3548 = vrot.slane %v3540, %v3547
        %v3550 = vunpack.c.l.s4 1983009808
        %v3551 = vunpack.c.0.s8 %v3550
        %v3552 = vlaneseq
        %v3553 = vshrl.u32 %v3552, 7
        %v3554 = vsub.s32 %v3551, %v3553
        %v3555 = vrot.slane %v3541, %v3554
        %v3556 = vcombine.low %v3548, %v3555
        %v3557 = vcombine.low %v892, %v3411
        %v3558 = vcombine.low %v3419, %v3418
        %v3560 = vunpack.c.l.s4 1983009808
        %v3561 = vunpack.c.0.s8 %v3560
        %v3562 = vlaneseq
        %v3563 = vshrl.u32 %v3562, 7
        %v3564 = vsub.s32 %v3561, %v3563
        %v3565 = vrot.slane %v3557, %v3564
        %v3567 = vunpack.c.l.s4 1983009808
        %v3568 = vunpack.c.0.s8 %v3567
        %v3569 = vlaneseq
        %v3570 = vshrl.u32 %v3569, 7
        %v3571 = vsub.s32 %v3568, %v3570
        %v3572 = vrot.slane %v3558, %v3571
        %v3573 = vcombine.low %v3565, %v3572
        %v3574 = vcombine.low %v3420, %v892
        %v3575 = vcombine.low %v3428, %v3436
        %v3577 = vunpack.c.l.s4 1983009808
        %v3578 = vunpack.c.0.s8 %v3577
        %v3579 = vlaneseq
        %v3580 = vshrl.u32 %v3579, 7
        %v3581 = vsub.s32 %v3578, %v3580
        %v3582 = vrot.slane %v3574, %v3581
        %v3584 = vunpack.c.l.s4 1983009808
        %v3585 = vunpack.c.0.s8 %v3584
        %v3586 = vlaneseq
        %v3587 = vshrl.u32 %v3586, 7
        %v3588 = vsub.s32 %v3585, %v3587
        %v3589 = vrot.slane %v3575, %v3588
        %v3590 = vcombine.low %v3582, %v3589
        %v3591 = vcombine.low %v3435, %v3437
        %v3592 = vcombine.low %v892, %v3445
        %v3594 = vunpack.c.l.s4 1983009808
        %v3595 = vunpack.c.0.s8 %v3594
        %v3596 = vlaneseq
        %v3597 = vshrl.u32 %v3596, 7
        %v3598 = vsub.s32 %v3595, %v3597
        %v3599 = vrot.slane %v3591, %v3598
        %v3601 = vunpack.c.l.s4 1983009808
        %v3602 = vunpack.c.0.s8 %v3601
        %v3603 = vlaneseq
        %v3604 = vshrl.u32 %v3603, 7
        %v3605 = vsub.s32 %v3602, %v3604
        %v3606 = vrot.slane %v3592, %v3605
        %v3607 = vcombine.low %v3599, %v3606
        %v3608 = vcombine.low %v3453, %v3452
        %v3609 = vcombine.low %v3454, %v892
        %v3611 = vunpack.c.l.s4 1983009808
        %v3612 = vunpack.c.0.s8 %v3611
        %v3613 = vlaneseq
        %v3614 = vshrl.u32 %v3613, 7
        %v3615 = vsub.s32 %v3612, %v3614
        %v3616 = vrot.slane %v3608, %v3615
        %v3618 = vunpack.c.l.s4 1983009808
        %v3619 = vunpack.c.0.s8 %v3618
        %v3620 = vlaneseq
        %v3621 = vshrl.u32 %v3620, 7
        %v3622 = vsub.s32 %v3619, %v3621
        %v3623 = vrot.slane %v3609, %v3622
        %v3624 = vcombine.low %v3616, %v3623
        %3635 = vst.msk [vmem:[#allocation3 + $0xb] sm:$0xff] %vm448, %v3471
        %3636 = vst.msk [vmem:[#allocation3 + $0x13] sm:$0xff] %vm448, %v3488
        %3637 = vst.msk [vmem:[#allocation3 + $0x1b] sm:$0xff] %vm448, %v3505
        %3638 = vst.msk [vmem:[#allocation3 + $0x23] sm:$0xff] %vm448, %v3522
        %3639 = vst.msk [vmem:[#allocation3 + $0x2b] sm:$0xff] %vm448, %v3539
        %3640 = vst.msk [vmem:[#allocation3 + $0x33] sm:$0xff] %vm448, %v3556
        %3641 = vst.msk [vmem:[#allocation3 + $0x3b] sm:$0xff] %vm448, %v3573
        %3642 = vst.msk [vmem:[#allocation3 + $0x43] sm:$0xff] %vm448, %v3590
        %3643 = vst.msk [vmem:[#allocation3 + $0x4b] sm:$0xff] %vm448, %v3607
        %3644 = vst.msk [vmem:[#allocation3 + $0x53] sm:$0xff] %vm448, %v3624
        %v3645 = vld [vmem:[#allocation3] sm:$0xff]
        %v3646 = vld [vmem:[#allocation3 + $0x8] sm:$0xff]
        %v3647 = vld [vmem:[#allocation3 + $0x10] sm:$0xff]
        %v3648 = vld [vmem:[#allocation3 + $0x18] sm:$0xff]
        %v3649 = vld [vmem:[#allocation3 + $0x20] sm:$0xff]
        %v3650 = vld [vmem:[#allocation3 + $0x28] sm:$0xff]
        %v3651 = vld [vmem:[#allocation3 + $0x30] sm:$0xff]
        %v3652 = vld [vmem:[#allocation3 + $0x38] sm:$0xff]
        %v3653 = vld [vmem:[#allocation3 + $0x40] sm:$0xff]
        %v3654 = vld [vmem:[#allocation3 + $0x48] sm:$0xff]
        %v3655 = vld [vmem:[#allocation3 + $0x1] sm:$0xff]
        %v3656 = vld [vmem:[#allocation3 + $0x9] sm:$0xff]
        %v3657 = vld [vmem:[#allocation3 + $0x11] sm:$0xff]
        %v3658 = vld [vmem:[#allocation3 + $0x19] sm:$0xff]
        %v3659 = vld [vmem:[#allocation3 + $0x21] sm:$0xff]
        %v3660 = vld [vmem:[#allocation3 + $0x29] sm:$0xff]
        %v3661 = vld [vmem:[#allocation3 + $0x31] sm:$0xff]
        %v3662 = vld [vmem:[#allocation3 + $0x39] sm:$0xff]
        %v3663 = vld [vmem:[#allocation3 + $0x41] sm:$0xff]
        %v3664 = vld [vmem:[#allocation3 + $0x49] sm:$0xff]
        %v3665 = vld [vmem:[#allocation3 + $0x2] sm:$0xff]
        %v3666 = vld [vmem:[#allocation3 + $0xa] sm:$0xff]
        %v3667 = vld [vmem:[#allocation3 + $0x12] sm:$0xff]
        %v3668 = vld [vmem:[#allocation3 + $0x1a] sm:$0xff]
        %v3669 = vld [vmem:[#allocation3 + $0x22] sm:$0xff]
        %v3670 = vld [vmem:[#allocation3 + $0x2a] sm:$0xff]
        %v3671 = vld [vmem:[#allocation3 + $0x32] sm:$0xff]
        %v3672 = vld [vmem:[#allocation3 + $0x3a] sm:$0xff]
        %v3673 = vld [vmem:[#allocation3 + $0x42] sm:$0xff]
        %v3674 = vld [vmem:[#allocation3 + $0x4a] sm:$0xff]
        %v3675 = vld [vmem:[#allocation3 + $0x52] sm:$0xff]
        %v3676 = vld [vmem:[#allocation3 + $0xb] sm:$0xff]
        %v3677 = vld [vmem:[#allocation3 + $0x13] sm:$0xff]
        %v3678 = vld [vmem:[#allocation3 + $0x1b] sm:$0xff]
        %v3679 = vld [vmem:[#allocation3 + $0x23] sm:$0xff]
        %v3680 = vld [vmem:[#allocation3 + $0x2b] sm:$0xff]
        %v3681 = vld [vmem:[#allocation3 + $0x33] sm:$0xff]
        %v3682 = vld [vmem:[#allocation3 + $0x3b] sm:$0xff]
        %v3683 = vld [vmem:[#allocation3 + $0x43] sm:$0xff]
        %v3684 = vld [vmem:[#allocation3 + $0x4b] sm:$0xff]
        %v3685 = vld [vmem:[#allocation3 + $0x53] sm:$0xff]
        %v3686 = vld [vmem:[#allocation3 + $0xc] sm:$0xff]
        %v3687 = vld [vmem:[#allocation3 + $0x14] sm:$0xff]
        %v3688 = vld [vmem:[#allocation3 + $0x1c] sm:$0xff]
        %v3689 = vld [vmem:[#allocation3 + $0x24] sm:$0xff]
        %v3690 = vld [vmem:[#allocation3 + $0x2c] sm:$0xff]
        %v3691 = vld [vmem:[#allocation3 + $0x34] sm:$0xff]
        %v3692 = vld [vmem:[#allocation3 + $0x3c] sm:$0xff]
        %v3693 = vld [vmem:[#allocation3 + $0x44] sm:$0xff]
        %v3694 = vld [vmem:[#allocation3 + $0x4c] sm:$0xff]
        %v3695 = vld [vmem:[#allocation3 + $0x54] sm:$0xff]
        %v3696 = vld [vmem:[#allocation3 + $0x5c] sm:$0xff]
        %v3697 = vld [vmem:[#allocation3 + $0x15] sm:$0xff]
        %v3698 = vld [vmem:[#allocation3 + $0x1d] sm:$0xff]
        %v3699 = vld [vmem:[#allocation3 + $0x25] sm:$0xff]
        %v3700 = vld [vmem:[#allocation3 + $0x2d] sm:$0xff]
        %v3701 = vld [vmem:[#allocation3 + $0x35] sm:$0xff]
        %v3702 = vld [vmem:[#allocation3 + $0x3d] sm:$0xff]
        %v3703 = vld [vmem:[#allocation3 + $0x45] sm:$0xff]
        %v3704 = vld [vmem:[#allocation3 + $0x4d] sm:$0xff]
        %v3705 = vld [vmem:[#allocation3 + $0x55] sm:$0xff]
        %v3706 = vld [vmem:[#allocation3 + $0x5d] sm:$0xff]
        %v3707 = vld [vmem:[#allocation3 + $0x16] sm:$0xff]
        %v3708 = vld [vmem:[#allocation3 + $0x1e] sm:$0xff]
        %v3709 = vld [vmem:[#allocation3 + $0x26] sm:$0xff]
        %v3710 = vld [vmem:[#allocation3 + $0x2e] sm:$0xff]
        %v3711 = vld [vmem:[#allocation3 + $0x36] sm:$0xff]
        %v3712 = vld [vmem:[#allocation3 + $0x3e] sm:$0xff]
        %v3713 = vld [vmem:[#allocation3 + $0x46] sm:$0xff]
        %v3714 = vld [vmem:[#allocation3 + $0x4e] sm:$0xff]
        %v3715 = vld [vmem:[#allocation3 + $0x56] sm:$0xff]
        %v3716 = vld [vmem:[#allocation3 + $0x5e] sm:$0xff]
        %3727 = vrot.lane.b32.xlu0 %v3655, 64
        %v3728 = vpop.permute.xlu0 %3727
        %3729 = vrot.lane.b32.xlu0 %v3656, 64
        %v3730 = vpop.permute.xlu0 %3729
        %3731 = vrot.lane.b32.xlu0 %v3657, 64
        %v3732 = vpop.permute.xlu0 %3731
        %3733 = vrot.lane.b32.xlu0 %v3658, 64
        %v3734 = vpop.permute.xlu0 %3733
        %3735 = vrot.lane.b32.xlu0 %v3659, 64
        %v3736 = vpop.permute.xlu0 %3735
        %3737 = vrot.lane.b32.xlu0 %v3660, 64
        %v3738 = vpop.permute.xlu0 %3737
        %3739 = vrot.lane.b32.xlu0 %v3661, 64
        %v3740 = vpop.permute.xlu0 %3739
        %3741 = vrot.lane.b32.xlu0 %v3662, 64
        %v3742 = vpop.permute.xlu0 %3741
        %3743 = vrot.lane.b32.xlu0 %v3663, 64
        %v3744 = vpop.permute.xlu0 %3743
        %3745 = vrot.lane.b32.xlu0 %v3664, 64
        %v3746 = vpop.permute.xlu0 %3745
        %3767 = vrot.lane.b32.xlu0 %v3666, 64
        %v3768 = vpop.permute.xlu0 %3767
        %3769 = vrot.lane.b32.xlu0 %v3667, 64
        %v3770 = vpop.permute.xlu0 %3769
        %3771 = vrot.lane.b32.xlu0 %v3668, 64
        %v3772 = vpop.permute.xlu0 %3771
        %3773 = vrot.lane.b32.xlu0 %v3669, 64
        %v3774 = vpop.permute.xlu0 %3773
        %3775 = vrot.lane.b32.xlu0 %v3670, 64
        %v3776 = vpop.permute.xlu0 %3775
        %3777 = vrot.lane.b32.xlu0 %v3671, 64
        %v3778 = vpop.permute.xlu0 %3777
        %3779 = vrot.lane.b32.xlu0 %v3672, 64
        %v3780 = vpop.permute.xlu0 %3779
        %3781 = vrot.lane.b32.xlu0 %v3673, 64
        %v3782 = vpop.permute.xlu0 %3781
        %3783 = vrot.lane.b32.xlu0 %v3674, 64
        %v3784 = vpop.permute.xlu0 %3783
        %3785 = vrot.lane.b32.xlu0 %v3675, 64
        %v3786 = vpop.permute.xlu0 %3785
        %3807 = vrot.lane.b32.xlu0 %v3686, 64
        %v3808 = vpop.permute.xlu0 %3807
        %3809 = vrot.lane.b32.xlu0 %v3687, 64
        %v3810 = vpop.permute.xlu0 %3809
        %3811 = vrot.lane.b32.xlu0 %v3688, 64
        %v3812 = vpop.permute.xlu0 %3811
        %3813 = vrot.lane.b32.xlu0 %v3689, 64
        %v3814 = vpop.permute.xlu0 %3813
        %3815 = vrot.lane.b32.xlu0 %v3690, 64
        %v3816 = vpop.permute.xlu0 %3815
        %3817 = vrot.lane.b32.xlu0 %v3691, 64
        %v3818 = vpop.permute.xlu0 %3817
        %3819 = vrot.lane.b32.xlu0 %v3692, 64
        %v3820 = vpop.permute.xlu0 %3819
        %3821 = vrot.lane.b32.xlu0 %v3693, 64
        %v3822 = vpop.permute.xlu0 %3821
        %3823 = vrot.lane.b32.xlu0 %v3694, 64
        %v3824 = vpop.permute.xlu0 %3823
        %3825 = vrot.lane.b32.xlu0 %v3695, 64
        %v3826 = vpop.permute.xlu0 %3825
        %3847 = vrot.lane.b32.xlu0 %v3697, 64
        %v3848 = vpop.permute.xlu0 %3847
        %3849 = vrot.lane.b32.xlu0 %v3698, 64
        %v3850 = vpop.permute.xlu0 %3849
        %3851 = vrot.lane.b32.xlu0 %v3699, 64
        %v3852 = vpop.permute.xlu0 %3851
        %3853 = vrot.lane.b32.xlu0 %v3700, 64
        %v3854 = vpop.permute.xlu0 %3853
        %3855 = vrot.lane.b32.xlu0 %v3701, 64
        %v3856 = vpop.permute.xlu0 %3855
        %3857 = vrot.lane.b32.xlu0 %v3702, 64
        %v3858 = vpop.permute.xlu0 %3857
        %3859 = vrot.lane.b32.xlu0 %v3703, 64
        %v3860 = vpop.permute.xlu0 %3859
        %3861 = vrot.lane.b32.xlu0 %v3704, 64
        %v3862 = vpop.permute.xlu0 %3861
        %3863 = vrot.lane.b32.xlu0 %v3705, 64
        %v3864 = vpop.permute.xlu0 %3863
        %3865 = vrot.lane.b32.xlu0 %v3706, 64
        %v3866 = vpop.permute.xlu0 %3865
        %v3877 = vsel %vm448, %v3645, %v3728
        %v3878 = vsel %vm448, %v3646, %v3730
        %v3879 = vsel %vm448, %v3647, %v3732
        %v3880 = vsel %vm448, %v3648, %v3734
        %v3881 = vsel %vm448, %v3649, %v3736
        %v3882 = vsel %vm448, %v3650, %v3738
        %v3883 = vsel %vm448, %v3651, %v3740
        %v3884 = vsel %vm448, %v3652, %v3742
        %v3885 = vsel %vm448, %v3653, %v3744
        %v3886 = vsel %vm448, %v3654, %v3746
        %v3887 = vsel %vm448, %v3665, %v3768
        %v3888 = vsel %vm448, %v3666, %v3770
        %v3889 = vsel %vm448, %v3667, %v3772
        %v3890 = vsel %vm448, %v3668, %v3774
        %v3891 = vsel %vm448, %v3669, %v3776
        %v3892 = vsel %vm448, %v3670, %v3778
        %v3893 = vsel %vm448, %v3671, %v3780
        %v3894 = vsel %vm448, %v3672, %v3782
        %v3895 = vsel %vm448, %v3673, %v3784
        %v3896 = vsel %vm448, %v3674, %v3786
        %v3897 = vsel %vm448, %v3676, %v3808
        %v3898 = vsel %vm448, %v3677, %v3810
        %v3899 = vsel %vm448, %v3678, %v3812
        %v3900 = vsel %vm448, %v3679, %v3814
        %v3901 = vsel %vm448, %v3680, %v3816
        %v3902 = vsel %vm448, %v3681, %v3818
        %v3903 = vsel %vm448, %v3682, %v3820
        %v3904 = vsel %vm448, %v3683, %v3822
        %v3905 = vsel %vm448, %v3684, %v3824
        %v3906 = vsel %vm448, %v3685, %v3826
        %v3907 = vsel %vm448, %v3687, %v3848
        %v3908 = vsel %vm448, %v3688, %v3850
        %v3909 = vsel %vm448, %v3689, %v3852
        %v3910 = vsel %vm448, %v3690, %v3854
        %v3911 = vsel %vm448, %v3691, %v3856
        %v3912 = vsel %vm448, %v3692, %v3858
        %v3913 = vsel %vm448, %v3693, %v3860
        %v3914 = vsel %vm448, %v3694, %v3862
        %v3915 = vsel %vm448, %v3695, %v3864
        %v3916 = vsel %vm448, %v3696, %v3866
        %v3917 = vpack.c.bf16 %v3878, %v3877
        %v3918 = vpack.c.bf16 %v3888, %v3887
        %v3919 = vpack.c.bf16 %v3898, %v3897
        %v3920 = vpack.c.bf16 %v3908, %v3907
        %v3921 = vpack.c.bf16 %v3708, %v3707
        %v3922 = vpack.c.bf16 %v3880, %v3879
        %v3923 = vpack.c.bf16 %v3890, %v3889
        %v3924 = vpack.c.bf16 %v3900, %v3899
        %v3925 = vpack.c.bf16 %v3910, %v3909
        %v3926 = vpack.c.bf16 %v3710, %v3709
        %v3927 = vpack.c.bf16 %v3882, %v3881
        %v3928 = vpack.c.bf16 %v3892, %v3891
        %v3929 = vpack.c.bf16 %v3902, %v3901
        %v3930 = vpack.c.bf16 %v3912, %v3911
        %v3931 = vpack.c.bf16 %v3712, %v3711
        %v3932 = vpack.c.bf16 %v3884, %v3883
        %v3933 = vpack.c.bf16 %v3894, %v3893
        %v3934 = vpack.c.bf16 %v3904, %v3903
        %v3935 = vpack.c.bf16 %v3914, %v3913
        %v3936 = vpack.c.bf16 %v3714, %v3713
        %v3937 = vpack.c.bf16 %v3886, %v3885
        %v3938 = vpack.c.bf16 %v3896, %v3895
        %v3939 = vpack.c.bf16 %v3906, %v3905
        %v3940 = vpack.c.bf16 %v3916, %v3915
        %v3941 = vpack.c.bf16 %v3716, %v3715
        %v3942 = vld [vmem:[%s9] sm:$0xf]
        %v3943 = vld [vmem:[%s9 + $0x4] sm:$0xf]
        %v3944 = vld [vmem:[%s9 + $0x8] sm:$0xf]
        %v3945 = vld [vmem:[%s9 + $0xc] sm:$0xf]
        %v3946 = vld [vmem:[%s9 + $0x10] sm:$0xf]
        %v3947 = vld [vmem:[%s9 + $0x14] sm:$0xf]
        %v3948 = vld [vmem:[%s9 + $0x18] sm:$0xf]
        %v3949 = vld [vmem:[%s9 + $0x1c] sm:$0xf]
        %v3950 = vld [vmem:[%s9 + $0x20] sm:$0xf]
        %v3951 = vld [vmem:[%s9 + $0x24] sm:$0xf]
        %v3952 = vld [vmem:[%s9 + $0x28] sm:$0xf]
        %v3953 = vld [vmem:[%s9 + $0x2c] sm:$0xf]
        %v3954 = vld [vmem:[%s9 + $0x30] sm:$0xf]
        %v3955 = vld [vmem:[%s9 + $0x34] sm:$0xf]
        %v3956 = vld [vmem:[%s9 + $0x38] sm:$0xf]
        %v3957 = vld [vmem:[%s9 + $0x3c] sm:$0xf]
        %v3958 = vld [vmem:[%s9 + $0x40] sm:$0xf]
        %v3959 = vld [vmem:[%s9 + $0x44] sm:$0xf]
        %v3960 = vld [vmem:[%s9 + $0x48] sm:$0xf]
        %v3961 = vld [vmem:[%s9 + $0x4c] sm:$0xf]
        %v3962 = vld [vmem:[%s9 + $0x50] sm:$0xf]
        %v3963 = vld [vmem:[%s9 + $0x54] sm:$0xf]
        %v3964 = vld [vmem:[%s9 + $0x58] sm:$0xf]
        %v3965 = vld [vmem:[%s9 + $0x5c] sm:$0xf]
        %v3966 = vld [vmem:[%s9 + $0x60] sm:$0xf]
        %v3967 = vld [vmem:[%s9 + $0x64] sm:$0xf]
        %v3968 = vld [vmem:[%s9 + $0x68] sm:$0xf]
        %v3969 = vld [vmem:[%s9 + $0x6c] sm:$0xf]
        %v3970 = vld [vmem:[%s9 + $0x70] sm:$0xf]
        %v3971 = vld [vmem:[%s9 + $0x74] sm:$0xf]
        %v3972 = vld [vmem:[%s9 + $0x78] sm:$0xf]
        %v3973 = vld [vmem:[%s9 + $0x7c] sm:$0xf]
        %v3974 = vld [vmem:[%s9 + $0x80] sm:$0xf]
        %v3975 = vld [vmem:[%s9 + $0x84] sm:$0xf]
        %v3976 = vld [vmem:[%s9 + $0x88] sm:$0xf]
        %v3977 = vld [vmem:[%s9 + $0x8c] sm:$0xf]
        %v3978 = vld [vmem:[%s9 + $0x90] sm:$0xf]
        %v3979 = vld [vmem:[%s9 + $0x94] sm:$0xf]
        %v3980 = vld [vmem:[%s9 + $0x98] sm:$0xf]
        %v3981 = vld [vmem:[%s9 + $0x9c] sm:$0xf]
        %v3982 = vld [vmem:[%s9 + $0xa0] sm:$0xf]
        %v3983 = vld [vmem:[%s9 + $0xa4] sm:$0xf]
        %v3984 = vld [vmem:[%s9 + $0xa8] sm:$0xf]
        %v3985 = vld [vmem:[%s9 + $0xac] sm:$0xf]
        %v3986 = vld [vmem:[%s9 + $0xb0] sm:$0xf]
        %v3987 = vld [vmem:[%s9 + $0xb4] sm:$0xf]
        %v3988 = vld [vmem:[%s9 + $0xb8] sm:$0xf]
        %v3989 = vld [vmem:[%s9 + $0xbc] sm:$0xf]
        %v3990 = vld [vmem:[%s9 + $0xc0] sm:$0xf]
        %v3991 = vld [vmem:[%s9 + $0xc4] sm:$0xf]
        %v3992 = vld [vmem:[%s9 + $0xc8] sm:$0xf]
        %v3993 = vld [vmem:[%s9 + $0xcc] sm:$0xf]
        %v3994 = vld [vmem:[%s9 + $0xd0] sm:$0xf]
        %v3995 = vld [vmem:[%s9 + $0xd4] sm:$0xf]
        %v3996 = vld [vmem:[%s9 + $0xd8] sm:$0xf]
        %v3997 = vld [vmem:[%s9 + $0xdc] sm:$0xf]
        %v3998 = vld [vmem:[%s9 + $0xe0] sm:$0xf]
        %v3999 = vld [vmem:[%s9 + $0xe4] sm:$0xf]
        %v4000 = vld [vmem:[%s9 + $0xe8] sm:$0xf]
        %v4001 = vld [vmem:[%s9 + $0xec] sm:$0xf]
        %v4002 = vld [vmem:[%s9 + $0xf0] sm:$0xf]
        %v4003 = vld [vmem:[%s9 + $0xf4] sm:$0xf]
        %v4004 = vld [vmem:[%s9 + $0xf8] sm:$0xf]
        %v4005 = vld [vmem:[%s9 + $0xfc] sm:$0xf]
        %v4006 = vld [vmem:[%s9 + $0x100] sm:$0xf]
        %v4007 = vld [vmem:[%s9 + $0x104] sm:$0xf]
        %v4008 = vld [vmem:[%s9 + $0x108] sm:$0xf]
        %v4009 = vld [vmem:[%s9 + $0x10c] sm:$0xf]
        %v4010 = vld [vmem:[%s9 + $0x110] sm:$0xf]
        %v4011 = vld [vmem:[%s9 + $0x114] sm:$0xf]
        %v4012 = vld [vmem:[%s9 + $0x118] sm:$0xf]
        %v4013 = vld [vmem:[%s9 + $0x11c] sm:$0xf]
        %v4014 = vld [vmem:[%s10] sm:$0x1]
        %v4016 = vlaneseq
        %v4017 = vshrl.u32 %v4016, 7
        %v4018 = vsub.s32 0, %v4017
        %v4019 = vrot.slane %v4014, %v4018
        %v4093 = vunpack.c.l.b16 %v3942
        %v4094 = vunpack.c.l.b16 %v3943
        %v4095 = vunpack.c.l.b16 %v3944
        %v4096 = vunpack.c.l.b16 %v3945
        %v4097 = vunpack.c.l.b16 %v3946
        %v4098 = vunpack.c.l.b16 %v3947
        %v4099 = vunpack.c.l.b16 %v3948
        %v4100 = vunpack.c.l.b16 %v3949
        %v4101 = vunpack.c.l.b16 %v3950
        %v4102 = vunpack.c.l.b16 %v3951
        %v4103 = vunpack.c.l.b16 %v3952
        %v4104 = vunpack.c.l.b16 %v3953
        %v4105 = vunpack.c.l.b16 %v3954
        %v4106 = vunpack.c.l.b16 %v3955
        %v4107 = vunpack.c.l.b16 %v3956
        %v4108 = vunpack.c.l.b16 %v3957
        %v4109 = vunpack.c.l.b16 %v3958
        %v4110 = vunpack.c.l.b16 %v3959
        %v4111 = vunpack.c.l.b16 %v3960
        %v4112 = vunpack.c.l.b16 %v3961
        %v4113 = vunpack.c.l.b16 %v3962
        %v4114 = vunpack.c.l.b16 %v3963
        %v4115 = vunpack.c.l.b16 %v3964
        %v4116 = vunpack.c.l.b16 %v3965
        %v4117 = vunpack.c.l.b16 %v3966
        %v4118 = vunpack.c.l.b16 %v3967
        %v4119 = vunpack.c.l.b16 %v3968
        %v4120 = vunpack.c.l.b16 %v3969
        %v4121 = vunpack.c.l.b16 %v3970
        %v4122 = vunpack.c.l.b16 %v3971
        %v4123 = vunpack.c.l.b16 %v3972
        %v4124 = vunpack.c.l.b16 %v3973
        %v4125 = vunpack.c.l.b16 %v3974
        %v4126 = vunpack.c.l.b16 %v3975
        %v4127 = vunpack.c.l.b16 %v3976
        %v4128 = vunpack.c.l.b16 %v3977
        %v4129 = vunpack.c.l.b16 %v3978
        %v4130 = vunpack.c.l.b16 %v3979
        %v4131 = vunpack.c.l.b16 %v3980
        %v4132 = vunpack.c.l.b16 %v3981
        %v4133 = vunpack.c.l.b16 %v3982
        %v4134 = vunpack.c.l.b16 %v3983
        %v4135 = vunpack.c.l.b16 %v3984
        %v4136 = vunpack.c.l.b16 %v3985
        %v4137 = vunpack.c.l.b16 %v3986
        %v4138 = vunpack.c.l.b16 %v3987
        %v4139 = vunpack.c.l.b16 %v3988
        %v4140 = vunpack.c.l.b16 %v3989
        %v4141 = vunpack.c.l.b16 %v3990
        %v4142 = vunpack.c.l.b16 %v3991
        %v4143 = vunpack.c.l.b16 %v3992
        %v4144 = vunpack.c.l.b16 %v3993
        %v4145 = vunpack.c.l.b16 %v3994
        %v4146 = vunpack.c.l.b16 %v3995
        %v4147 = vunpack.c.l.b16 %v3996
        %v4148 = vunpack.c.l.b16 %v3997
        %v4149 = vunpack.c.l.b16 %v3998
        %v4150 = vunpack.c.l.b16 %v3999
        %v4151 = vunpack.c.l.b16 %v4000
        %v4152 = vunpack.c.l.b16 %v4001
        %v4153 = vunpack.c.l.b16 %v4002
        %v4154 = vunpack.c.l.b16 %v4003
        %v4155 = vunpack.c.l.b16 %v4004
        %v4156 = vunpack.c.l.b16 %v4005
        %v4157 = vunpack.c.l.b16 %v4006
        %v4158 = vunpack.c.l.b16 %v4007
        %v4159 = vunpack.c.l.b16 %v4008
        %v4160 = vunpack.c.l.b16 %v4009
        %v4161 = vunpack.c.l.b16 %v4010
        %v4162 = vunpack.c.l.b16 %v4011
        %v4163 = vunpack.c.l.b16 %v4012
        %v4164 = vunpack.c.l.b16 %v4013
        %v4165 = vpack.c.b16 %v4094, %v4093
        %v4166 = vpack.c.b16 %v4096, %v4095
        %v4167 = vpack.c.b16 %v4098, %v4097
        %v4168 = vpack.c.b16 %v4100, %v4099
        %v4169 = vpack.c.b16 %v4102, %v4101
        %v4170 = vpack.c.b16 %v4104, %v4103
        %v4171 = vpack.c.b16 %v4106, %v4105
        %v4172 = vpack.c.b16 %v4108, %v4107
        %v4173 = vpack.c.b16 %v4110, %v4109
        %v4174 = vpack.c.b16 %v4112, %v4111
        %v4175 = vpack.c.b16 %v4114, %v4113
        %v4176 = vpack.c.b16 %v4116, %v4115
        %v4177 = vpack.c.b16 %v4118, %v4117
        %v4178 = vpack.c.b16 %v4120, %v4119
        %v4179 = vpack.c.b16 %v4122, %v4121
        %v4180 = vpack.c.b16 %v4124, %v4123
        %v4181 = vpack.c.b16 %v4126, %v4125
        %v4182 = vpack.c.b16 %v4128, %v4127
        %v4183 = vpack.c.b16 %v4130, %v4129
        %v4184 = vpack.c.b16 %v4132, %v4131
        %v4185 = vpack.c.b16 %v4134, %v4133
        %v4186 = vpack.c.b16 %v4136, %v4135
        %v4187 = vpack.c.b16 %v4138, %v4137
        %v4188 = vpack.c.b16 %v4140, %v4139
        %v4189 = vpack.c.b16 %v4142, %v4141
        %v4190 = vpack.c.b16 %v4144, %v4143
        %v4191 = vpack.c.b16 %v4146, %v4145
        %v4192 = vpack.c.b16 %v4148, %v4147
        %v4193 = vpack.c.b16 %v4150, %v4149
        %v4194 = vpack.c.b16 %v4152, %v4151
        %v4195 = vpack.c.b16 %v4154, %v4153
        %v4196 = vpack.c.b16 %v4156, %v4155
        %v4197 = vpack.c.b16 %v4158, %v4157
        %v4198 = vpack.c.b16 %v4160, %v4159
        %v4199 = vpack.c.b16 %v4162, %v4161
        %v4200 = vpack.c.b16 %v4164, %v4163
        %v4238 = vsel %vm448, %v3921, 0
        %v4241 = vsel %vm448, %v3926, 0
        %v4244 = vsel %vm448, %v3931, 0
        %v4247 = vsel %vm448, %v3936, 0
        %v4250 = vsel %vm448, %v3941, 0
        %4252 = vmatprep.subr.bf16.mxu0 0
        %4253 = vmatpush1.bf16.msra.mxu0 %v4165
        %4254 = vmatprep.subr.bf16.mxu0 0
        %4255 = vmatpush1.bf16.msra.mxu0 %v4166
        %4256 = vmatprep.subr.bf16.mxu0 0
        %4257 = vmatpush1.bf16.msra.mxu0 %v4167
        %4258 = vmatprep.subr.bf16.mxu0 0
        %4259 = vmatpush1.bf16.msra.mxu0 %v4168
        %4260 = vmatprep.subr.bf16.mxu0 0
        %4261 = vmatpush1.bf16.msra.mxu0 %v4169
        %4262 = vmatprep.subr.bf16.mxu0 0
        %4263 = vmatpush1.bf16.msra.mxu0 %v4170
        %4264 = vmatprep.subr.bf16.mxu0 0
        %4265 = vmatpush1.bf16.msra.mxu0 %v4171
        %4266 = vmatprep.subr.bf16.mxu0 0
        %4267 = vmatpush1.bf16.msra.mxu0 %v4172
        %4268 = vmatprep.subr.bf16.mxu0 0
        %4269 = vmatpush1.bf16.msra.mxu0 %v4173
        %4270 = vmatprep.subr.bf16.mxu0 0
        %4271 = vmatpush1.bf16.msra.mxu0 %v4174
        %4272 = vmatprep.subr.bf16.mxu0 0
        %4273 = vmatpush1.bf16.msra.mxu0 %v4175
        %4274 = vmatprep.subr.bf16.mxu0 0
        %4275 = vmatpush1.bf16.msra.mxu0 %v4176
        %4276 = vmatprep.subr.bf16.mxu0 0
        %4277 = vmatpush1.bf16.msra.mxu0 %v4177
        %4278 = vmatprep.subr.bf16.mxu0 0
        %4279 = vmatpush1.bf16.msra.mxu0 %v4178
        %4280 = vmatprep.subr.bf16.mxu0 0
        %4281 = vmatpush1.bf16.msra.mxu0 %v4179
        %4282 = vmatprep.subr.bf16.mxu0 0
        %4283 = vmatpush1.bf16.msra.mxu0 %v4180
        %4284 = vmatprep.mubr.bf16.mxu0 %v3918
        %4285 = vmatmul.mubr.bf16.gmra.mrb[0].mxu0 %v3917
        %v4286 = vpop.f32.mrb[0].mxu0
        %v4287 = vadd.f32 %v4019, %v4286
        %v4288 = vpop.f32.mrb[0].mxu0
        %v4289 = vpop.f32.mrb[0].mxu0
        %v4290 = vadd.f32 %v4019, %v4289
        %v4291 = vpop.f32.mrb[0].mxu0
        %4292 = vmatprep.mubr.bf16.mxu0 %v3923
        %4293 = vmatmul.mubr.bf16.gmra.mrb[0].mxu0 %v3922
        %v4294 = vpop.f32.mrb[0].mxu0
        %v4295 = vadd.f32 %v4019, %v4294
        %v4296 = vpop.f32.mrb[0].mxu0
        %v4297 = vpop.f32.mrb[0].mxu0
        %v4298 = vadd.f32 %v4019, %v4297
        %v4299 = vpop.f32.mrb[0].mxu0
        %4300 = vmatprep.mubr.bf16.mxu0 %v3928
        %4301 = vmatmul.mubr.bf16.gmra.mrb[0].mxu0 %v3927
        %v4302 = vpop.f32.mrb[0].mxu0
        %v4303 = vadd.f32 %v4019, %v4302
        %v4304 = vpop.f32.mrb[0].mxu0
        %v4305 = vpop.f32.mrb[0].mxu0
        %v4306 = vadd.f32 %v4019, %v4305
        %v4307 = vpop.f32.mrb[0].mxu0
        %4308 = vmatprep.mubr.bf16.mxu0 %v3933
        %4309 = vmatmul.mubr.bf16.gmra.mrb[0].mxu0 %v3932
        %v4310 = vpop.f32.mrb[0].mxu0
        %v4311 = vadd.f32 %v4019, %v4310
        %v4312 = vpop.f32.mrb[0].mxu0
        %v4313 = vpop.f32.mrb[0].mxu0
        %v4314 = vadd.f32 %v4019, %v4313
        %v4315 = vpop.f32.mrb[0].mxu0
        %4316 = vmatprep.mubr.bf16.mxu0 %v3938
        %4317 = vmatmul.mubr.bf16.gmra.mrb[0].mxu0 %v3937
        %v4318 = vpop.f32.mrb[0].mxu0
        %v4319 = vadd.f32 %v4019, %v4318
        %v4320 = vpop.f32.mrb[0].mxu0
        %v4321 = vpop.f32.mrb[0].mxu0
        %v4322 = vadd.f32 %v4019, %v4321
        %v4323 = vpop.f32.mrb[0].mxu0
        %4324 = vdwg.mxu0
        %4325 = vmatprep.subr.bf16.mxu0 0
        %4326 = vmatpush1.bf16.msra.mxu0 %v4181
        %4327 = vmatprep.subr.bf16.mxu0 0
        %4328 = vmatpush1.bf16.msra.mxu0 %v4182
        %4329 = vmatprep.subr.bf16.mxu0 0
        %4330 = vmatpush1.bf16.msra.mxu0 %v4183
        %4331 = vmatprep.subr.bf16.mxu0 0
        %4332 = vmatpush1.bf16.msra.mxu0 %v4184
        %4333 = vmatprep.subr.bf16.mxu0 0
        %4334 = vmatpush1.bf16.msra.mxu0 %v4185
        %4335 = vmatprep.subr.bf16.mxu0 0
        %4336 = vmatpush1.bf16.msra.mxu0 %v4186
        %4337 = vmatprep.subr.bf16.mxu0 0
        %4338 = vmatpush1.bf16.msra.mxu0 %v4187
        %4339 = vmatprep.subr.bf16.mxu0 0
        %4340 = vmatpush1.bf16.msra.mxu0 %v4188
        %4341 = vmatprep.subr.bf16.mxu0 0
        %4342 = vmatpush1.bf16.msra.mxu0 %v4189
        %4343 = vmatprep.subr.bf16.mxu0 0
        %4344 = vmatpush1.bf16.msra.mxu0 %v4190
        %4345 = vmatprep.subr.bf16.mxu0 0
        %4346 = vmatpush1.bf16.msra.mxu0 %v4191
        %4347 = vmatprep.subr.bf16.mxu0 0
        %4348 = vmatpush1.bf16.msra.mxu0 %v4192
        %4349 = vmatprep.subr.bf16.mxu0 0
        %4350 = vmatpush1.bf16.msra.mxu0 %v4193
        %4351 = vmatprep.subr.bf16.mxu0 0
        %4352 = vmatpush1.bf16.msra.mxu0 %v4194
        %4353 = vmatprep.subr.bf16.mxu0 0
        %4354 = vmatpush1.bf16.msra.mxu0 %v4195
        %4355 = vmatprep.subr.bf16.mxu0 0
        %4356 = vmatpush1.bf16.msra.mxu0 %v4196
        %4357 = vmatprep.mubr.bf16.mxu0 %v3920
        %4358 = vmatmul.mubr.bf16.gmra.mrb[0].mxu0 %v3919
        %v4359 = vpop.f32.mrb[0].mxu0
        %v4360 = vadd.f32 %v4287, %v4359
        %v4361 = vpop.f32.mrb[0].mxu0
        %v4362 = vpop.f32.mrb[0].mxu0
        %v4363 = vadd.f32 %v4290, %v4362
        %v4364 = vpop.f32.mrb[0].mxu0
        %4365 = vmatprep.mubr.bf16.mxu0 %v3925
        %4366 = vmatmul.mubr.bf16.gmra.mrb[0].mxu0 %v3924
        %v4367 = vpop.f32.mrb[0].mxu0
        %v4368 = vadd.f32 %v4295, %v4367
        %v4369 = vpop.f32.mrb[0].mxu0
        %v4370 = vpop.f32.mrb[0].mxu0
        %v4371 = vadd.f32 %v4298, %v4370
        %v4372 = vpop.f32.mrb[0].mxu0
        %4373 = vmatprep.mubr.bf16.mxu0 %v3930
        %4374 = vmatmul.mubr.bf16.gmra.mrb[0].mxu0 %v3929
        %v4375 = vpop.f32.mrb[0].mxu0
        %v4376 = vadd.f32 %v4303, %v4375
        %v4377 = vpop.f32.mrb[0].mxu0
        %v4378 = vpop.f32.mrb[0].mxu0
        %v4379 = vadd.f32 %v4306, %v4378
        %v4380 = vpop.f32.mrb[0].mxu0
        %4381 = vmatprep.mubr.bf16.mxu0 %v3935
        %4382 = vmatmul.mubr.bf16.gmra.mrb[0].mxu0 %v3934
        %v4383 = vpop.f32.mrb[0].mxu0
        %v4384 = vadd.f32 %v4311, %v4383
        %v4385 = vpop.f32.mrb[0].mxu0
        %v4386 = vpop.f32.mrb[0].mxu0
        %v4387 = vadd.f32 %v4314, %v4386
        %v4388 = vpop.f32.mrb[0].mxu0
        %4389 = vmatprep.mubr.bf16.mxu0 %v3940
        %4390 = vmatmul.mubr.bf16.gmra.mrb[0].mxu0 %v3939
        %v4391 = vpop.f32.mrb[0].mxu0
        %v4392 = vadd.f32 %v4319, %v4391
        %v4393 = vpop.f32.mrb[0].mxu0
        %v4394 = vpop.f32.mrb[0].mxu0
        %v4395 = vadd.f32 %v4322, %v4394
        %v4396 = vpop.f32.mrb[0].mxu0
        %4397 = vdwg.mxu0
        %4398 = vmatprep.subr.bf16.mxu0 0
        %4399 = vmatpush1.bf16.msra.mxu0 %v4197
        %4400 = vmatprep.subr.bf16.mxu0 0
        %4401 = vmatpush1.bf16.msra.mxu0 %v4198
        %4402 = vmatprep.subr.bf16.mxu0 0
        %4403 = vmatpush1.bf16.msra.mxu0 %v4199
        %4404 = vmatprep.subr.bf16.mxu0 0
        %4405 = vmatpush1.bf16.msra.mxu0 %v4200
        %4406 = vmatprep.subr.bf16.mxu0 0
        %4407 = vmatpush1.bf16.msra.mxu0 0
        %4408 = vmatprep.subr.bf16.mxu0 0
        %4409 = vmatpush1.bf16.msra.mxu0 0
        %4410 = vmatprep.subr.bf16.mxu0 0
        %4411 = vmatpush1.bf16.msra.mxu0 0
        %4412 = vmatprep.subr.bf16.mxu0 0
        %4413 = vmatpush1.bf16.msra.mxu0 0
        %4414 = vmatprep.subr.bf16.mxu0 0
        %4415 = vmatpush1.bf16.msra.mxu0 0
        %4416 = vmatprep.subr.bf16.mxu0 0
        %4417 = vmatpush1.bf16.msra.mxu0 0
        %4418 = vmatprep.subr.bf16.mxu0 0
        %4419 = vmatpush1.bf16.msra.mxu0 0
        %4420 = vmatprep.subr.bf16.mxu0 0
        %4421 = vmatpush1.bf16.msra.mxu0 0
        %4422 = vmatprep.subr.bf16.mxu0 0
        %4423 = vmatpush1.bf16.msra.mxu0 0
        %4424 = vmatprep.subr.bf16.mxu0 0
        %4425 = vmatpush1.bf16.msra.mxu0 0
        %4426 = vmatprep.subr.bf16.mxu0 0
        %4427 = vmatpush1.bf16.msra.mxu0 0
        %4428 = vmatprep.subr.bf16.mxu0 0
        %4429 = vmatpush1.bf16.msra.mxu0 0
        %4430 = vmatprep.mubr.bf16.mxu0 0
        %4431 = vmatmul.mubr.bf16.gmra.mrb[0].mxu0 %v4238
        %v4432 = vpop.f32.mrb[0].mxu0
        %v4433 = vadd.f32 %v4360, %v4432
        %v4434 = vpop.f32.mrb[0].mxu0
        %v4435 = vpop.f32.mrb[0].mxu0
        %v4436 = vadd.f32 %v4363, %v4435
        %v4437 = vpop.f32.mrb[0].mxu0
        %4438 = vmatprep.mubr.bf16.mxu0 0
        %4439 = vmatmul.mubr.bf16.gmra.mrb[0].mxu0 %v4241
        %v4440 = vpop.f32.mrb[0].mxu0
        %v4441 = vadd.f32 %v4368, %v4440
        %v4442 = vpop.f32.mrb[0].mxu0
        %v4443 = vpop.f32.mrb[0].mxu0
        %v4444 = vadd.f32 %v4371, %v4443
        %v4445 = vpop.f32.mrb[0].mxu0
        %4446 = vmatprep.mubr.bf16.mxu0 0
        %4447 = vmatmul.mubr.bf16.gmra.mrb[0].mxu0 %v4244
        %v4448 = vpop.f32.mrb[0].mxu0
        %v4449 = vadd.f32 %v4376, %v4448
        %v4450 = vpop.f32.mrb[0].mxu0
        %v4451 = vpop.f32.mrb[0].mxu0
        %v4452 = vadd.f32 %v4379, %v4451
        %v4453 = vpop.f32.mrb[0].mxu0
        %4454 = vmatprep.mubr.bf16.mxu0 0
        %4455 = vmatmul.mubr.bf16.gmra.mrb[0].mxu0 %v4247
        %v4456 = vpop.f32.mrb[0].mxu0
        %v4457 = vadd.f32 %v4384, %v4456
        %v4458 = vpop.f32.mrb[0].mxu0
        %v4459 = vpop.f32.mrb[0].mxu0
        %v4460 = vadd.f32 %v4387, %v4459
        %v4461 = vpop.f32.mrb[0].mxu0
        %4462 = vmatprep.mubr.bf16.mxu0 0
        %4463 = vmatmul.mubr.bf16.gmra.mrb[0].mxu0 %v4250
        %v4464 = vpop.f32.mrb[0].mxu0
        %v4465 = vadd.f32 %v4392, %v4464
        %v4466 = vpop.f32.mrb[0].mxu0
        %v4467 = vpop.f32.mrb[0].mxu0
        %v4468 = vadd.f32 %v4395, %v4467
        %v4469 = vpop.f32.mrb[0].mxu0
        %4470 = vdwg.mxu0
        %v4481 = vcombine.high %v4433, %v4433
        %v4483 = vunpack.c.l.s4 1983009808
        %v4484 = vunpack.c.0.s8 %v4483
        %v4485 = vlaneseq
        %v4486 = vshrl.u32 %v4485, 7
        %v4487 = vsub.s32 %v4484, %v4486
        %v4488 = vrot.slane %v4433, %v4487
        %v4490 = vunpack.c.l.s4 1983009808
        %v4491 = vunpack.c.0.s8 %v4490
        %v4492 = vlaneseq
        %v4493 = vshrl.u32 %v4492, 7
        %v4494 = vsub.s32 %v4491, %v4493
        %v4495 = vrot.slane %v4481, %v4494
        %v4496 = vcombine.high %v4488, %v4488
        %v4497 = vcombine.high %v4495, %v4495
        %v4498 = vcombine.high %v4436, %v4436
        %v4500 = vunpack.c.l.s4 1983009808
        %v4501 = vunpack.c.0.s8 %v4500
        %v4502 = vlaneseq
        %v4503 = vshrl.u32 %v4502, 7
        %v4504 = vsub.s32 %v4501, %v4503
        %v4505 = vrot.slane %v4436, %v4504
        %v4507 = vunpack.c.l.s4 1983009808
        %v4508 = vunpack.c.0.s8 %v4507
        %v4509 = vlaneseq
        %v4510 = vshrl.u32 %v4509, 7
        %v4511 = vsub.s32 %v4508, %v4510
        %v4512 = vrot.slane %v4498, %v4511
        %v4513 = vcombine.high %v4505, %v4505
        %v4514 = vcombine.high %v4512, %v4512
        %v4515 = vcombine.high %v4441, %v4441
        %v4517 = vunpack.c.l.s4 1983009808
        %v4518 = vunpack.c.0.s8 %v4517
        %v4519 = vlaneseq
        %v4520 = vshrl.u32 %v4519, 7
        %v4521 = vsub.s32 %v4518, %v4520
        %v4522 = vrot.slane %v4441, %v4521
        %v4524 = vunpack.c.l.s4 1983009808
        %v4525 = vunpack.c.0.s8 %v4524
        %v4526 = vlaneseq
        %v4527 = vshrl.u32 %v4526, 7
        %v4528 = vsub.s32 %v4525, %v4527
        %v4529 = vrot.slane %v4515, %v4528
        %v4530 = vcombine.high %v4529, %v4529
        %v4531 = vcombine.high %v4444, %v4444
        %v4533 = vunpack.c.l.s4 1983009808
        %v4534 = vunpack.c.0.s8 %v4533
        %v4535 = vlaneseq
        %v4536 = vshrl.u32 %v4535, 7
        %v4537 = vsub.s32 %v4534, %v4536
        %v4538 = vrot.slane %v4444, %v4537
        %v4540 = vunpack.c.l.s4 1983009808
        %v4541 = vunpack.c.0.s8 %v4540
        %v4542 = vlaneseq
        %v4543 = vshrl.u32 %v4542, 7
        %v4544 = vsub.s32 %v4541, %v4543
        %v4545 = vrot.slane %v4531, %v4544
        %v4546 = vcombine.high %v4538, %v4538
        %v4547 = vcombine.high %v4545, %v4545
        %v4548 = vcombine.high %v4449, %v4449
        %v4550 = vunpack.c.l.s4 1983009808
        %v4551 = vunpack.c.0.s8 %v4550
        %v4552 = vlaneseq
        %v4553 = vshrl.u32 %v4552, 7
        %v4554 = vsub.s32 %v4551, %v4553
        %v4555 = vrot.slane %v4449, %v4554
        %v4557 = vunpack.c.l.s4 1983009808
        %v4558 = vunpack.c.0.s8 %v4557
        %v4559 = vlaneseq
        %v4560 = vshrl.u32 %v4559, 7
        %v4561 = vsub.s32 %v4558, %v4560
        %v4562 = vrot.slane %v4548, %v4561
        %v4563 = vcombine.high %v4555, %v4555
        %v4564 = vcombine.high %v4452, %v4452
        %v4566 = vunpack.c.l.s4 1983009808
        %v4567 = vunpack.c.0.s8 %v4566
        %v4568 = vlaneseq
        %v4569 = vshrl.u32 %v4568, 7
        %v4570 = vsub.s32 %v4567, %v4569
        %v4571 = vrot.slane %v4452, %v4570
        %v4573 = vunpack.c.l.s4 1983009808
        %v4574 = vunpack.c.0.s8 %v4573
        %v4575 = vlaneseq
        %v4576 = vshrl.u32 %v4575, 7
        %v4577 = vsub.s32 %v4574, %v4576
        %v4578 = vrot.slane %v4564, %v4577
        %v4579 = vcombine.high %v4571, %v4571
        %v4580 = vcombine.high %v4578, %v4578
        %v4581 = vcombine.high %v4457, %v4457
        %v4583 = vunpack.c.l.s4 1983009808
        %v4584 = vunpack.c.0.s8 %v4583
        %v4585 = vlaneseq
        %v4586 = vshrl.u32 %v4585, 7
        %v4587 = vsub.s32 %v4584, %v4586
        %v4588 = vrot.slane %v4457, %v4587
        %v4590 = vunpack.c.l.s4 1983009808
        %v4591 = vunpack.c.0.s8 %v4590
        %v4592 = vlaneseq
        %v4593 = vshrl.u32 %v4592, 7
        %v4594 = vsub.s32 %v4591, %v4593
        %v4595 = vrot.slane %v4581, %v4594
        %v4596 = vcombine.high %v4588, %v4588
        %v4597 = vcombine.high %v4595, %v4595
        %v4598 = vcombine.high %v4460, %v4460
        %v4600 = vunpack.c.l.s4 1983009808
        %v4601 = vunpack.c.0.s8 %v4600
        %v4602 = vlaneseq
        %v4603 = vshrl.u32 %v4602, 7
        %v4604 = vsub.s32 %v4601, %v4603
        %v4605 = vrot.slane %v4460, %v4604
        %v4607 = vunpack.c.l.s4 1983009808
        %v4608 = vunpack.c.0.s8 %v4607
        %v4609 = vlaneseq
        %v4610 = vshrl.u32 %v4609, 7
        %v4611 = vsub.s32 %v4608, %v4610
        %v4612 = vrot.slane %v4598, %v4611
        %v4613 = vcombine.high %v4612, %v4612
        %v4614 = vcombine.high %v4465, %v4465
        %v4616 = vunpack.c.l.s4 1983009808
        %v4617 = vunpack.c.0.s8 %v4616
        %v4618 = vlaneseq
        %v4619 = vshrl.u32 %v4618, 7
        %v4620 = vsub.s32 %v4617, %v4619
        %v4621 = vrot.slane %v4465, %v4620
        %v4623 = vunpack.c.l.s4 1983009808
        %v4624 = vunpack.c.0.s8 %v4623
        %v4625 = vlaneseq
        %v4626 = vshrl.u32 %v4625, 7
        %v4627 = vsub.s32 %v4624, %v4626
        %v4628 = vrot.slane %v4614, %v4627
        %v4629 = vcombine.high %v4621, %v4621
        %v4630 = vcombine.high %v4628, %v4628
        %v4631 = vcombine.high %v4468, %v4468
        %v4633 = vunpack.c.l.s4 1983009808
        %v4634 = vunpack.c.0.s8 %v4633
        %v4635 = vlaneseq
        %v4636 = vshrl.u32 %v4635, 7
        %v4637 = vsub.s32 %v4634, %v4636
        %v4638 = vrot.slane %v4468, %v4637
        %v4640 = vunpack.c.l.s4 1983009808
        %v4641 = vunpack.c.0.s8 %v4640
        %v4642 = vlaneseq
        %v4643 = vshrl.u32 %v4642, 7
        %v4644 = vsub.s32 %v4641, %v4643
        %v4645 = vrot.slane %v4631, %v4644
        %v4646 = vcombine.high %v4638, %v4638
        %v4679 = vpack.c.bf16 %v441, %v440
        %v4680 = vpack.c.bf16 %v443, %v442
        %v4681 = vpack.c.bf16 %v445, %v444
        %v4682 = vpack.c.bf16 %v447, %v446
        %v4683 = vld [vmem:[%s11] sm:$0xf]
        %v4684 = vld [vmem:[%s11 + $0x4] sm:$0xf]
        %v4685 = vld [vmem:[%s11 + $0x8] sm:$0xf]
        %v4686 = vld [vmem:[%s11 + $0xc] sm:$0xf]
        %v4687 = vld [vmem:[%s12] sm:$0x1]
        %v4689 = vlaneseq
        %v4690 = vshrl.u32 %v4689, 7
        %v4691 = vsub.s32 0, %v4690
        %v4692 = vrot.slane %v4687, %v4691
        %v4698 = vunpack.c.l.b16 %v4683
        %v4699 = vunpack.c.l.b16 %v4684
        %v4700 = vunpack.c.l.b16 %v4685
        %v4701 = vunpack.c.l.b16 %v4686
        %v4702 = vpack.c.b16 %v4699, %v4698
        %v4703 = vpack.c.b16 %v4701, %v4700
        %v4707 = vsel %vm604, %v4679, 0
        %v4710 = vsel %vm604, %v4680, 0
        %v4713 = vsel %vm604, %v4681, 0
        %v4716 = vsel %vm604, %v4682, 0
        %4718 = vmatprep.subr.bf16.mxu0 0
        %4719 = vmatpush1.bf16.msra.mxu0 %v4702
        %4720 = vmatprep.subr.bf16.mxu0 0
        %4721 = vmatpush1.bf16.msra.mxu0 %v4703
        %4722 = vmatprep.subr.bf16.mxu0 0
        %4723 = vmatpush1.bf16.msra.mxu0 0
        %4724 = vmatprep.subr.bf16.mxu0 0
        %4725 = vmatpush1.bf16.msra.mxu0 0
        %4726 = vmatprep.subr.bf16.mxu0 0
        %4727 = vmatpush1.bf16.msra.mxu0 0
        %4728 = vmatprep.subr.bf16.mxu0 0
        %4729 = vmatpush1.bf16.msra.mxu0 0
        %4730 = vmatprep.subr.bf16.mxu0 0
        %4731 = vmatpush1.bf16.msra.mxu0 0
        %4732 = vmatprep.subr.bf16.mxu0 0
        %4733 = vmatpush1.bf16.msra.mxu0 0
        %4734 = vmatprep.subr.bf16.mxu0 0
        %4735 = vmatpush1.bf16.msra.mxu0 0
        %4736 = vmatprep.subr.bf16.mxu0 0
        %4737 = vmatpush1.bf16.msra.mxu0 0
        %4738 = vmatprep.subr.bf16.mxu0 0
        %4739 = vmatpush1.bf16.msra.mxu0 0
        %4740 = vmatprep.subr.bf16.mxu0 0
        %4741 = vmatpush1.bf16.msra.mxu0 0
        %4742 = vmatprep.subr.bf16.mxu0 0
        %4743 = vmatpush1.bf16.msra.mxu0 0
        %4744 = vmatprep.subr.bf16.mxu0 0
        %4745 = vmatpush1.bf16.msra.mxu0 0
        %4746 = vmatprep.subr.bf16.mxu0 0
        %4747 = vmatpush1.bf16.msra.mxu0 0
        %4748 = vmatprep.subr.bf16.mxu0 0
        %4749 = vmatpush1.bf16.msra.mxu0 0
        %4750 = vmatprep.mubr.bf16.mxu0 0
        %4751 = vmatmul.mubr.bf16.gmra.mrb[0].mxu0 %v4707
        %v4752 = vpop.f32.mrb[0].mxu0
        %v4753 = vadd.f32 %v4692, %v4752
        %v4754 = vpop.f32.mrb[0].mxu0
        %v4755 = vpop.f32.mrb[0].mxu0
        %v4756 = vadd.f32 %v4692, %v4755
        %v4757 = vpop.f32.mrb[0].mxu0
        %4758 = vmatprep.mubr.bf16.mxu0 0
        %4759 = vmatmul.mubr.bf16.gmra.mrb[0].mxu0 %v4710
        %v4760 = vpop.f32.mrb[0].mxu0
        %v4761 = vadd.f32 %v4692, %v4760
        %v4762 = vpop.f32.mrb[0].mxu0
        %v4763 = vpop.f32.mrb[0].mxu0
        %v4764 = vadd.f32 %v4692, %v4763
        %v4765 = vpop.f32.mrb[0].mxu0
        %4766 = vmatprep.mubr.bf16.mxu0 0
        %4767 = vmatmul.mubr.bf16.gmra.mrb[0].mxu0 %v4713
        %v4768 = vpop.f32.mrb[0].mxu0
        %v4769 = vadd.f32 %v4692, %v4768
        %v4770 = vpop.f32.mrb[0].mxu0
        %v4771 = vpop.f32.mrb[0].mxu0
        %v4772 = vadd.f32 %v4692, %v4771
        %v4773 = vpop.f32.mrb[0].mxu0
        %4774 = vmatprep.mubr.bf16.mxu0 0
        %4775 = vmatmul.mubr.bf16.gmra.mrb[0].mxu0 %v4716
        %v4776 = vpop.f32.mrb[0].mxu0
        %v4777 = vadd.f32 %v4692, %v4776
        %v4778 = vpop.f32.mrb[0].mxu0
        %v4779 = vpop.f32.mrb[0].mxu0
        %v4780 = vadd.f32 %v4692, %v4779
        %v4781 = vpop.f32.mrb[0].mxu0
        %4782 = vdwg.mxu0
        %v4791 = vcombine.high %v4753, %v4753
        %v4793 = vunpack.c.l.s4 1983009808
        %v4794 = vunpack.c.0.s8 %v4793
        %v4795 = vlaneseq
        %v4796 = vshrl.u32 %v4795, 7
        %v4797 = vsub.s32 %v4794, %v4796
        %v4798 = vrot.slane %v4753, %v4797
        %v4800 = vunpack.c.l.s4 1983009808
        %v4801 = vunpack.c.0.s8 %v4800
        %v4802 = vlaneseq
        %v4803 = vshrl.u32 %v4802, 7
        %v4804 = vsub.s32 %v4801, %v4803
        %v4805 = vrot.slane %v4791, %v4804
        %v4806 = vcombine.high %v4798, %v4798
        %v4807 = vcombine.high %v4805, %v4805
        %v4808 = vcombine.high %v4756, %v4756
        %v4810 = vunpack.c.l.s4 1983009808
        %v4811 = vunpack.c.0.s8 %v4810
        %v4812 = vlaneseq
        %v4813 = vshrl.u32 %v4812, 7
        %v4814 = vsub.s32 %v4811, %v4813
        %v4815 = vrot.slane %v4756, %v4814
        %v4817 = vunpack.c.l.s4 1983009808
        %v4818 = vunpack.c.0.s8 %v4817
        %v4819 = vlaneseq
        %v4820 = vshrl.u32 %v4819, 7
        %v4821 = vsub.s32 %v4818, %v4820
        %v4822 = vrot.slane %v4808, %v4821
        %v4823 = vcombine.high %v4815, %v4815
        %v4824 = vcombine.high %v4822, %v4822
        %v4825 = vcombine.high %v4761, %v4761
        %v4827 = vunpack.c.l.s4 1983009808
        %v4828 = vunpack.c.0.s8 %v4827
        %v4829 = vlaneseq
        %v4830 = vshrl.u32 %v4829, 7
        %v4831 = vsub.s32 %v4828, %v4830
        %v4832 = vrot.slane %v4761, %v4831
        %v4834 = vunpack.c.l.s4 1983009808
        %v4835 = vunpack.c.0.s8 %v4834
        %v4836 = vlaneseq
        %v4837 = vshrl.u32 %v4836, 7
        %v4838 = vsub.s32 %v4835, %v4837
        %v4839 = vrot.slane %v4825, %v4838
        %v4840 = vcombine.high %v4832, %v4832
        %v4841 = vcombine.high %v4839, %v4839
        %v4842 = vcombine.high %v4764, %v4764
        %v4844 = vunpack.c.l.s4 1983009808
        %v4845 = vunpack.c.0.s8 %v4844
        %v4846 = vlaneseq
        %v4847 = vshrl.u32 %v4846, 7
        %v4848 = vsub.s32 %v4845, %v4847
        %v4849 = vrot.slane %v4764, %v4848
        %v4851 = vunpack.c.l.s4 1983009808
        %v4852 = vunpack.c.0.s8 %v4851
        %v4853 = vlaneseq
        %v4854 = vshrl.u32 %v4853, 7
        %v4855 = vsub.s32 %v4852, %v4854
        %v4856 = vrot.slane %v4842, %v4855
        %v4857 = vcombine.high %v4849, %v4849
        %v4858 = vcombine.high %v4856, %v4856
        %v4859 = vcombine.high %v4769, %v4769
        %v4861 = vunpack.c.l.s4 1983009808
        %v4862 = vunpack.c.0.s8 %v4861
        %v4863 = vlaneseq
        %v4864 = vshrl.u32 %v4863, 7
        %v4865 = vsub.s32 %v4862, %v4864
        %v4866 = vrot.slane %v4769, %v4865
        %v4868 = vunpack.c.l.s4 1983009808
        %v4869 = vunpack.c.0.s8 %v4868
        %v4870 = vlaneseq
        %v4871 = vshrl.u32 %v4870, 7
        %v4872 = vsub.s32 %v4869, %v4871
        %v4873 = vrot.slane %v4859, %v4872
        %v4874 = vcombine.high %v4866, %v4866
        %v4875 = vcombine.high %v4873, %v4873
        %v4876 = vcombine.high %v4772, %v4772
        %v4878 = vunpack.c.l.s4 1983009808
        %v4879 = vunpack.c.0.s8 %v4878
        %v4880 = vlaneseq
        %v4881 = vshrl.u32 %v4880, 7
        %v4882 = vsub.s32 %v4879, %v4881
        %v4883 = vrot.slane %v4772, %v4882
        %v4885 = vunpack.c.l.s4 1983009808
        %v4886 = vunpack.c.0.s8 %v4885
        %v4887 = vlaneseq
        %v4888 = vshrl.u32 %v4887, 7
        %v4889 = vsub.s32 %v4886, %v4888
        %v4890 = vrot.slane %v4876, %v4889
        %v4891 = vcombine.high %v4883, %v4883
        %v4892 = vcombine.high %v4890, %v4890
        %v4893 = vcombine.high %v4777, %v4777
        %v4895 = vunpack.c.l.s4 1983009808
        %v4896 = vunpack.c.0.s8 %v4895
        %v4897 = vlaneseq
        %v4898 = vshrl.u32 %v4897, 7
        %v4899 = vsub.s32 %v4896, %v4898
        %v4900 = vrot.slane %v4777, %v4899
        %v4902 = vunpack.c.l.s4 1983009808
        %v4903 = vunpack.c.0.s8 %v4902
        %v4904 = vlaneseq
        %v4905 = vshrl.u32 %v4904, 7
        %v4906 = vsub.s32 %v4903, %v4905
        %v4907 = vrot.slane %v4893, %v4906
        %v4908 = vcombine.high %v4900, %v4900
        %v4909 = vcombine.high %v4907, %v4907
        %v4910 = vcombine.high %v4780, %v4780
        %v4912 = vunpack.c.l.s4 1983009808
        %v4913 = vunpack.c.0.s8 %v4912
        %v4914 = vlaneseq
        %v4915 = vshrl.u32 %v4914, 7
        %v4916 = vsub.s32 %v4913, %v4915
        %v4917 = vrot.slane %v4780, %v4916
        %v4919 = vunpack.c.l.s4 1983009808
        %v4920 = vunpack.c.0.s8 %v4919
        %v4921 = vlaneseq
        %v4922 = vshrl.u32 %v4921, 7
        %v4923 = vsub.s32 %v4920, %v4922
        %v4924 = vrot.slane %v4910, %v4923
        %v4925 = vcombine.high %v4917, %v4917
        %v4926 = vcombine.high %v4924, %v4924
        %v4959 = vadd.f32 %v4488, %v4798
        %v4960 = vadd.f32 %v4496, %v4806
        %v4961 = vadd.f32 %v4495, %v4805
        %v4962 = vadd.f32 %v4497, %v4807
        %v4963 = vadd.f32 %v4513, %v4815
        %v4964 = vadd.f32 %v4512, %v4823
        %v4965 = vadd.f32 %v4514, %v4822
        %v4966 = vadd.f32 %v4522, %v4824
        %v4967 = vadd.f32 %v4529, %v4832
        %v4968 = vadd.f32 %v4530, %v4840
        %v4969 = vadd.f32 %v4538, %v4839
        %v4970 = vadd.f32 %v4546, %v4841
        %v4971 = vadd.f32 %v4547, %v4849
        %v4972 = vadd.f32 %v4555, %v4857
        %v4973 = vadd.f32 %v4563, %v4856
        %v4974 = vadd.f32 %v4562, %v4858
        %v4975 = vadd.f32 %v4571, %v4866
        %v4976 = vadd.f32 %v4579, %v4874
        %v4977 = vadd.f32 %v4578, %v4873
        %v4978 = vadd.f32 %v4580, %v4875
        %v4979 = vadd.f32 %v4596, %v4883
        %v4980 = vadd.f32 %v4595, %v4891
        %v4981 = vadd.f32 %v4597, %v4890
        %v4982 = vadd.f32 %v4605, %v4892
        %v4983 = vadd.f32 %v4612, %v4900
        %v4984 = vadd.f32 %v4613, %v4908
        %v4985 = vadd.f32 %v4621, %v4907
        %v4986 = vadd.f32 %v4629, %v4909
        %v4987 = vadd.f32 %v4630, %v4917
        %v4988 = vadd.f32 %v4638, %v4925
        %v4989 = vadd.f32 %v4646, %v4924
        %v4990 = vadd.f32 %v4645, %v4926
        %v5023 = vcombine.low %v4959, %v4960
        %v5024 = vcombine.low %v4961, %v4962
        %v5026 = vunpack.c.l.s4 1983009808
        %v5027 = vunpack.c.0.s8 %v5026
        %v5028 = vlaneseq
        %v5029 = vshrl.u32 %v5028, 7
        %v5030 = vsub.s32 %v5027, %v5029
        %v5031 = vrot.slane %v5023, %v5030
        %v5033 = vunpack.c.l.s4 1983009808
        %v5034 = vunpack.c.0.s8 %v5033
        %v5035 = vlaneseq
        %v5036 = vshrl.u32 %v5035, 7
        %v5037 = vsub.s32 %v5034, %v5036
        %v5038 = vrot.slane %v5024, %v5037
        %v5039 = vcombine.low %v5031, %v5038
        %v5040 = vcombine.low %v4963, %v4964
        %v5041 = vcombine.low %v4965, %v4966
        %v5043 = vunpack.c.l.s4 1983009808
        %v5044 = vunpack.c.0.s8 %v5043
        %v5045 = vlaneseq
        %v5046 = vshrl.u32 %v5045, 7
        %v5047 = vsub.s32 %v5044, %v5046
        %v5048 = vrot.slane %v5040, %v5047
        %v5050 = vunpack.c.l.s4 1983009808
        %v5051 = vunpack.c.0.s8 %v5050
        %v5052 = vlaneseq
        %v5053 = vshrl.u32 %v5052, 7
        %v5054 = vsub.s32 %v5051, %v5053
        %v5055 = vrot.slane %v5041, %v5054
        %v5056 = vcombine.low %v5048, %v5055
        %v5057 = vcombine.low %v4967, %v4968
        %v5058 = vcombine.low %v4969, %v4970
        %v5060 = vunpack.c.l.s4 1983009808
        %v5061 = vunpack.c.0.s8 %v5060
        %v5062 = vlaneseq
        %v5063 = vshrl.u32 %v5062, 7
        %v5064 = vsub.s32 %v5061, %v5063
        %v5065 = vrot.slane %v5057, %v5064
        %v5067 = vunpack.c.l.s4 1983009808
        %v5068 = vunpack.c.0.s8 %v5067
        %v5069 = vlaneseq
        %v5070 = vshrl.u32 %v5069, 7
        %v5071 = vsub.s32 %v5068, %v5070
        %v5072 = vrot.slane %v5058, %v5071
        %v5073 = vcombine.low %v5065, %v5072
        %v5074 = vcombine.low %v4971, %v4972
        %v5075 = vcombine.low %v4973, %v4974
        %v5077 = vunpack.c.l.s4 1983009808
        %v5078 = vunpack.c.0.s8 %v5077
        %v5079 = vlaneseq
        %v5080 = vshrl.u32 %v5079, 7
        %v5081 = vsub.s32 %v5078, %v5080
        %v5082 = vrot.slane %v5074, %v5081
        %v5084 = vunpack.c.l.s4 1983009808
        %v5085 = vunpack.c.0.s8 %v5084
        %v5086 = vlaneseq
        %v5087 = vshrl.u32 %v5086, 7
        %v5088 = vsub.s32 %v5085, %v5087
        %v5089 = vrot.slane %v5075, %v5088
        %v5090 = vcombine.low %v5082, %v5089
        %v5091 = vcombine.low %v4975, %v4976
        %v5092 = vcombine.low %v4977, %v4978
        %v5094 = vunpack.c.l.s4 1983009808
        %v5095 = vunpack.c.0.s8 %v5094
        %v5096 = vlaneseq
        %v5097 = vshrl.u32 %v5096, 7
        %v5098 = vsub.s32 %v5095, %v5097
        %v5099 = vrot.slane %v5091, %v5098
        %v5101 = vunpack.c.l.s4 1983009808
        %v5102 = vunpack.c.0.s8 %v5101
        %v5103 = vlaneseq
        %v5104 = vshrl.u32 %v5103, 7
        %v5105 = vsub.s32 %v5102, %v5104
        %v5106 = vrot.slane %v5092, %v5105
        %v5107 = vcombine.low %v5099, %v5106
        %v5108 = vcombine.low %v4979, %v4980
        %v5109 = vcombine.low %v4981, %v4982
        %v5111 = vunpack.c.l.s4 1983009808
        %v5112 = vunpack.c.0.s8 %v5111
        %v5113 = vlaneseq
        %v5114 = vshrl.u32 %v5113, 7
        %v5115 = vsub.s32 %v5112, %v5114
        %v5116 = vrot.slane %v5108, %v5115
        %v5118 = vunpack.c.l.s4 1983009808
        %v5119 = vunpack.c.0.s8 %v5118
        %v5120 = vlaneseq
        %v5121 = vshrl.u32 %v5120, 7
        %v5122 = vsub.s32 %v5119, %v5121
        %v5123 = vrot.slane %v5109, %v5122
        %v5124 = vcombine.low %v5116, %v5123
        %v5125 = vcombine.low %v4983, %v4984
        %v5126 = vcombine.low %v4985, %v4986
        %v5128 = vunpack.c.l.s4 1983009808
        %v5129 = vunpack.c.0.s8 %v5128
        %v5130 = vlaneseq
        %v5131 = vshrl.u32 %v5130, 7
        %v5132 = vsub.s32 %v5129, %v5131
        %v5133 = vrot.slane %v5125, %v5132
        %v5135 = vunpack.c.l.s4 1983009808
        %v5136 = vunpack.c.0.s8 %v5135
        %v5137 = vlaneseq
        %v5138 = vshrl.u32 %v5137, 7
        %v5139 = vsub.s32 %v5136, %v5138
        %v5140 = vrot.slane %v5126, %v5139
        %v5141 = vcombine.low %v5133, %v5140
        %v5142 = vcombine.low %v4987, %v4988
        %v5143 = vcombine.low %v4989, %v4990
        %v5145 = vunpack.c.l.s4 1983009808
        %v5146 = vunpack.c.0.s8 %v5145
        %v5147 = vlaneseq
        %v5148 = vshrl.u32 %v5147, 7
        %v5149 = vsub.s32 %v5146, %v5148
        %v5150 = vrot.slane %v5142, %v5149
        %v5152 = vunpack.c.l.s4 1983009808
        %v5153 = vunpack.c.0.s8 %v5152
        %v5154 = vlaneseq
        %v5155 = vshrl.u32 %v5154, 7
        %v5156 = vsub.s32 %v5153, %v5155
        %v5157 = vrot.slane %v5143, %v5156
        %v5158 = vcombine.low %v5150, %v5157
        %5167 = vst.msk [vmem:[%s433] sm:$0xff] %vm448, %v5039
        %5168 = vst.msk [vmem:[%s433 + $0x8] sm:$0xff] %vm448, %v5056
        %5169 = vst.msk [vmem:[%s433 + $0x10] sm:$0xff] %vm448, %v5073
        %5170 = vst.msk [vmem:[%s433 + $0x18] sm:$0xff] %vm448, %v5090
        %5171 = vst.msk [vmem:[%s433 + $0x20] sm:$0xff] %vm448, %v5107
        %5172 = vst.msk [vmem:[%s433 + $0x28] sm:$0xff] %vm448, %v5124
        %5173 = vst.msk [vmem:[%s433 + $0x30] sm:$0xff] %vm448, %v5141
        %5174 = vst.msk [vmem:[%s433 + $0x38] sm:$0xff] %vm448, %v5158
        %s5175 = sand.u32 %s313, 1
        %s5176 = scalar_lea.sflag [#allocation5], %s5175
        %s5177 = sand.u32 %s313, 1
        %s5178 = smul.addr %s5177, 64
        %s5179 = scalar_lea.vmem [#allocation4], %s5178
        // Predicated region
        $region73: #{tpu_custom_call.1} parent=71 // pred_check
          %p5180 = pneg %p323
        $region74: #{tpu_custom_call.1} parent=71 // pred_check_branch
          %5182 = sbr.rel (%p5180) target = $region76
        $region75: #{tpu_custom_call.1} parent=71 // pred_region
          %s5184 = ssub.s32 1024, 1024
          %5185 = vsyncadd %s5176, %s5184
          %s5186 = smul.addr %s27, 8
          %s5187 = smul.addr %s5186, 128
          %s5188 = scalar_lea.hbm %s13, %s5187
          %s5189 = sshll.u32 %s5179, 4
          %s5190 = int_to_ptr.vmem [resolvable:$true] %s5189
          %5195 = dma.vmem_to_hbm [thread:$0]  %s5190, 1024, %s5188, %s5176, 128, 128, 8
        $region76: #{tpu_custom_call.1} parent=71 // pred_fallthru
          _
      $region72: #{tpu_custom_call.1} parent=5 // pred_fallthru
        _
      %p5196 = scmp.le.s32.totalorder 2, %s22
      // Predicated region
      $region77: #{tpu_custom_call.1} parent=5 // pred_check
        %p5197 = pneg %p5196
      $region78: #{tpu_custom_call.1} parent=5 // pred_check_branch
        %5199 = sbr.rel (%p5197) target = $region80
      $region79: #{tpu_custom_call.1} parent=5 // pred_region
        %s5200 = ssub.s32 %s22, 2
        // Predicated region
        $region81: #{tpu_custom_call.1} parent=79 // pred_check
          %p5201 = pneg %p329
        $region82: #{tpu_custom_call.1} parent=79 // pred_check_branch
          %5203 = sbr.rel (%p5201) target = $region84
        $region83: #{tpu_custom_call.1} parent=79 // pred_region
          %s5204 = sand.u32 %s314, 1
          %s5205 = scalar_lea.sflag [#allocation5], %s5204
          %s5206 = sand.u32 %s314, 1
          %s5207 = smul.addr %s5206, 64
          %s5208 = scalar_lea.vmem [#allocation4], %s5207
          %5209 = dma.done %s5205, 1024
        $region84: #{tpu_custom_call.1} parent=79 // pred_fallthru
          _
      $region80: #{tpu_custom_call.1} parent=5 // pred_fallthru
        _
    $region6: #{tpu_custom_call.1} parent=1 // loop_footer
      %s26 = sadd.s32 1, %s22
    $region7: #{tpu_custom_call.1} parent=1 // loop_footer_branch
      %21 = sbr.rel target = $region3
    $region8: #{tpu_custom_call.1} parent=1 // loop_exit
      _
    %5210 = vsyncpa [#allocation5], 1
    %s5211 = scalar_lea.sflag [#allocation5], 1
    %5212 = vsyncpa %s5211, 1

</llo_original>
